<compile_context>
chip_gen: v6e
topology: v6e:2x2x1
jax: 0.10.0
libtpu: 0.0.40
codegen_flags: <defaults>
</compile_context>

<pallas_src>
import math

import jax
import jax.numpy as jnp
import numpy as np
from jax.experimental import pallas as pl
from jax.experimental.pallas import tpu as pltpu


def _round_up(x, m):
    return ((x + m - 1) // m) * m


# ----------------------------------------------------------------------------
# Kernels (both emit the transposed, lane-dense (nclass, TE) layout)
# ----------------------------------------------------------------------------
def _fused_gather_kernel(edges_ref, ht_ref, wt_ref, b_ref, out_ref):
    """edges_ref: (2, TE) i32 | ht_ref: (nin, N) f32 (VMEM-resident) |
       wt_ref: (nclass, nin) f32 | b_ref: (nclass, 1) f32 | out_ref: (nclass, TE)."""
    te = out_ref.shape[1]
    n_nodes = ht_ref.shape[1]

    idx = edges_ref[...]                                            # (2, TE)
    # Both endpoints' one-hots concatenated along the lane axis -> single MXU pass.
    idx_cat = jnp.concatenate([idx[0:1, :], idx[1:2, :]], axis=1)   # (1, 2*TE)
    iota = jax.lax.broadcasted_iota(jnp.int32, (n_nodes, 2 * te), 0)
    oh = jnp.where(iota == idx_cat, 1.0, 0.0)                       # (N, 2*TE) exact one-hot

    g = jnp.dot(ht_ref[...], oh, preferred_element_type=jnp.float32)  # (nin, 2*TE)
    embt = g[:, :te] * g[:, te:]                                       # hadamard, (nin, TE)

    z = jnp.dot(wt_ref[...], embt, preferred_element_type=jnp.float32) + b_ref[...]  # (nclass, TE)

    m = jnp.max(z, axis=0, keepdims=True)
    e = jnp.exp(z - m)
    out_ref[...] = e / jnp.sum(e, axis=0, keepdims=True)            # exact divide


def _pregathered_kernel(emb_ref, wt_ref, b_ref, out_ref):
    """Fallback: emb (TE, nin) already gathered+hadamard'd by XLA in the wrapper.
       Contract over nin without materializing emb^T; output stays lane-dense."""
    z = jax.lax.dot_general(
        wt_ref[...], emb_ref[...],
        dimension_numbers=(((1,), (1,)), ((), ())),
        preferred_element_type=jnp.float32) + b_ref[...]             # (nclass, TE)
    m = jnp.max(z, axis=0, keepdims=True)
    e = jnp.exp(z - m)
    out_ref[...] = e / jnp.sum(e, axis=0, keepdims=True)


# ----------------------------------------------------------------------------
# Wrapper
# ----------------------------------------------------------------------------
def _fuse_affine(weights, biases):
    """Collapse a stack of activation-free Linear layers (PyTorch x @ W^T + b)
    into one affine map: returns W_fused (nin, nclass), b_fused (nclass,)."""
    w = weights[0].T
    b = biases[0]
    for wi, bi in zip(weights[1:], biases[1:]):
        w = w @ wi.T
        b = b @ wi.T + bi
    return w, b


def edge_predict(h, edges, weights, biases, *, tile_e=2048,
                 vmem_table_budget=4 * 1024 * 1024,
                 onehot_budget=8 * 1024 * 1024,
                 max_onehot_nodes=1024):
    """EdgePredict forward: softmax(MLP(h[edges[:,0]] * h[edges[:,1]]), dim=1)."""
    n_nodes, nin = h.shape
    e_total = edges.shape[0]

    w_fused, b_fused = _fuse_affine(weights, biases)
    nclass = w_fused.shape[1]
    wt = w_fused.T.astype(jnp.float32)                 # (nclass, nin)
    b_col = b_fused.reshape(nclass, 1).astype(jnp.float32)

    # Lane axis = edges: tile must be a multiple of 128.  Aim for ~2 grid steps
    # (keeps both v7x TensorCores busy) but never more tiles than necessary.
    half = _round_up(max((e_total + 1) // 2, 128), 128)
    tile_e = max(128, min(_round_up(tile_e, 128), half))
    e_pad = _round_up(e_total, tile_e)
    grid = (e_pad // tile_e,)

    # Fused in-kernel gather only when (a) the node table is comfortably VMEM
    # resident even with double-buffering headroom and (b) the (N, 2*TE) one-hot
    # temporary stays small (its FLOPs scale with N anyway).
    fuse_gather = (
        n_nodes <= max_onehot_nodes
        and n_nodes * nin * 4 <= vmem_table_budget
        and 2 * tile_e * n_nodes * 4 <= onehot_budget)

    compiler_params = pltpu.CompilerParams(
        dimension_semantics=("parallel",),
        vmem_limit_bytes=32 * 1024 * 1024)

    if fuse_gather:
        edges_t = jnp.pad(edges.astype(jnp.int32).T, ((0, 0), (0, e_pad - e_total)))
        cost = pl.CostEstimate(
            flops=int(2 * nin * n_nodes * 2 * e_pad        # fused gather matmul
                      + e_pad * nin                        # hadamard
                      + 2 * nclass * nin * e_pad           # classifier
                      + 4 * e_pad * nclass),               # softmax vector work
            transcendentals=int(e_pad * nclass),
            bytes_accessed=int(4 * (2 * e_pad + nin * n_nodes + nclass * nin
                                    + nclass + nclass * e_pad)),
        )
        out_t = pl.pallas_call(
            _fused_gather_kernel,
            out_shape=jax.ShapeDtypeStruct((nclass, e_pad), jnp.float32),
            grid=grid,
            in_specs=[
                pl.BlockSpec((2, tile_e), lambda i: (0, i)),        # edge ids per tile
                pl.BlockSpec((nin, n_nodes), lambda i: (0, 0)),     # node table (transposed), resident
                pl.BlockSpec((nclass, nin), lambda i: (0, 0)),      # fused affine weight^T
                pl.BlockSpec((nclass, 1), lambda i: (0, 0)),        # fused bias (column)
            ],
            out_specs=pl.BlockSpec((nclass, tile_e), lambda i: (0, i)),
            compiler_params=compiler_params,
            cost_estimate=cost,
        )(edges_t, h.T.astype(jnp.float32), wt, b_col)
    else:
        # Large node table: pad the *tiny* edges array (not the big emb slab),
        # then gather + hadamard fused by XLA; classifier + softmax in the kernel.
        edges_pad = jnp.pad(edges.astype(jnp.int32), ((0, e_pad - e_total), (0, 0)))
        emb = (h[edges_pad[:, 0]] * h[edges_pad[:, 1]]).astype(jnp.float32)   # (e_pad, nin)
        cost = pl.CostEstimate(
            flops=int(2 * nclass * nin * e_pad + 4 * e_pad * nclass),
            transcendentals=int(e_pad * nclass),
            bytes_accessed=int(4 * (e_pad * nin + nclass * nin + nclass + nclass * e_pad)),
        )
        out_t = pl.pallas_call(
            _pregathered_kernel,
            out_shape=jax.ShapeDtypeStruct((nclass, e_pad), jnp.float32),
            grid=grid,
            in_specs=[
                pl.BlockSpec((tile_e, nin), lambda i: (i, 0)),
                pl.BlockSpec((nclass, nin), lambda i: (0, 0)),
                pl.BlockSpec((nclass, 1), lambda i: (0, 0)),
            ],
            out_specs=pl.BlockSpec((nclass, tile_e), lambda i: (0, i)),
            compiler_params=compiler_params,
            cost_estimate=cost,
        )(emb, wt, b_col)

    # Tiny (nclass, e_pad) -> (E, nclass) transpose + slice done by XLA.
    return out_t.T[:e_total]


# ----------------------------------------------------------------------------
# Reference + demo
# ----------------------------------------------------------------------------
def xavier_uniform(key, out_f, in_f):
    bound = math.sqrt(6.0 / (in_f + out_f))
    return jax.random.uniform(key, (out_f, in_f), jnp.float32, -bound, bound)


def reference(h, edges, weights, biases):
    out = h[edges[:, 0]] * h[edges[:, 1]]
    for w, b in zip(weights, biases):        # layer-by-layer, matching PyTorch
        out = out @ w.T + b
    return jax.nn.softmax(out, axis=1)


if __name__ == "__main__":
    # Module config: aggregator='hadamard', classifier='mlp', nin=32, nclass=4, L=2
    N, nin, E, nclass, L = 64, 32, 4096, 4, 2

    key = jax.random.PRNGKey(0)
    k_h, k_e, k_w1, k_w2 = jax.random.split(key, 4)

    h = jax.random.normal(k_h, (N, nin), jnp.float32)
    edges = jax.random.randint(k_e, (E, 2), 0, N, jnp.int32)

    # Classifier('mlp', nin, nclass, L=2): Linear(nin, nin//2), Linear(nin//2, nclass)
    hidden = nin // 2
    w1 = xavier_uniform(k_w1, hidden, nin)
    b1 = jnp.zeros((hidden,), jnp.float32)
    w2 = xavier_uniform(k_w2, nclass, hidden)
    b2 = jnp.zeros((nclass,), jnp.float32)
    weights, biases = [w1, w2], [b1, b2]

    ref = reference(h, edges, weights, biases)

    # Primary path: in-kernel fused gather, VMEM-resident node table, lane-dense output.
    out = edge_predict(h, edges, weights, biases)
    out = jax.block_until_ready(out)
    np.testing.assert_allclose(np.asarray(out), np.asarray(ref), atol=1e-4, rtol=1e-4)

    # Also exercise the large-node-table fallback path once.
    out_fb = edge_predict(h, edges, weights, biases, max_onehot_nodes=0)
    out_fb = jax.block_until_ready(out_fb)
    np.testing.assert_allclose(np.asarray(out_fb), np.asarray(ref), atol=1e-4, rtol=1e-4)

    print("KERNEL_OK")
</pallas_src>

<mosaic_0001>
module attributes {stable_mosaic.version = 11 : i64} {
  func.func @_fused_gather_kernel(%arg0: i32, %arg1: memref<2x2048xi32, #tpu.memory_space<vmem>>, %arg2: memref<32x64xf32, #tpu.memory_space<vmem>>, %arg3: memref<4x32xf32, #tpu.memory_space<vmem>>, %arg4: memref<4x1xf32, #tpu.memory_space<vmem>>, %arg5: memref<4x2048xf32, #tpu.memory_space<vmem>>) attributes {dimension_semantics = [#tpu.dimension_semantics<parallel>], iteration_bounds = array<i64: 2>, scalar_prefetch = 0 : i64, scratch_operands = 0 : i64, tpu.core_type = #tpu.core_type<tc>, window_params = [{transform_indices = @transform_0, window_bounds = array<i64: 2, 2048>}, {pipeline_mode = #tpu.pipeline_mode<synchronous>, transform_indices = @transform_1, window_bounds = array<i64: 32, 64>}, {pipeline_mode = #tpu.pipeline_mode<synchronous>, transform_indices = @transform_2, window_bounds = array<i64: 4, 32>}, {pipeline_mode = #tpu.pipeline_mode<synchronous>, transform_indices = @transform_3, window_bounds = array<i64: 4, 1>}, {transform_indices = @transform_4, window_bounds = array<i64: 4, 2048>}]} {
    %c0 = arith.constant 0 : index
    %c0_0 = arith.constant 0 : index
    %0 = vector.load %arg1[%c0, %c0_0] : memref<2x2048xi32, #tpu.memory_space<vmem>>, vector<2x2048xi32>
    %1 = vector.extract_strided_slice %0 {offsets = [0, 0], sizes = [1, 2048], strides = [1, 1]} : vector<2x2048xi32> to vector<1x2048xi32>
    %2 = vector.extract_strided_slice %0 {offsets = [1, 0], sizes = [1, 2048], strides = [1, 1]} : vector<2x2048xi32> to vector<1x2048xi32>
    %3 = tpu.concatenate %1, %2 in 1 : vector<1x2048xi32>, vector<1x2048xi32> -> vector<1x4096xi32>
    %4 = tpu.iota {dimensions = array<i32: 0>} : vector<64x4096xi32>
    %5 = vector.broadcast %3 : vector<1x4096xi32> to vector<64x4096xi32>
    %6 = arith.cmpi eq, %4, %5 : vector<64x4096xi32>
    %cst = arith.constant 1.000000e+00 : f32
    %cst_1 = arith.constant 0.000000e+00 : f32
    %7 = vector.broadcast %cst : f32 to vector<64x4096xf32>
    %8 = vector.broadcast %cst_1 : f32 to vector<64x4096xf32>
    %9 = arith.select %6, %7, %8 : vector<64x4096xi1>, vector<64x4096xf32>
    %c0_2 = arith.constant 0 : index
    %c0_3 = arith.constant 0 : index
    %10 = vector.load %arg2[%c0_2, %c0_3] : memref<32x64xf32, #tpu.memory_space<vmem>>, vector<32x64xf32>
    %cst_4 = arith.constant dense<0.000000e+00> : vector<32x4096xf32>
    %11 = tpu.matmul %10, %9, %cst_4 {dimension_numbers = #tpu.dot_dimension_numbers<[1], [0], [0], [1], [0, 0, 1, 1], [], []>} : vector<32x64xf32>, vector<64x4096xf32>, vector<32x4096xf32> -> vector<32x4096xf32>
    %12 = vector.extract_strided_slice %11 {offsets = [0, 0], sizes = [32, 2048], strides = [1, 1]} : vector<32x4096xf32> to vector<32x2048xf32>
    %13 = vector.extract_strided_slice %11 {offsets = [0, 2048], sizes = [32, 2048], strides = [1, 1]} : vector<32x4096xf32> to vector<32x2048xf32>
    %14 = arith.mulf %12, %13 : vector<32x2048xf32>
    %c0_5 = arith.constant 0 : index
    %c0_6 = arith.constant 0 : index
    %15 = vector.load %arg3[%c0_5, %c0_6] : memref<4x32xf32, #tpu.memory_space<vmem>>, vector<4x32xf32>
    %cst_7 = arith.constant dense<0.000000e+00> : vector<4x2048xf32>
    %16 = tpu.matmul %15, %14, %cst_7 {dimension_numbers = #tpu.dot_dimension_numbers<[1], [0], [0], [1], [0, 0, 1, 1], [], []>} : vector<4x32xf32>, vector<32x2048xf32>, vector<4x2048xf32> -> vector<4x2048xf32>
    %c0_8 = arith.constant 0 : index
    %c0_9 = arith.constant 0 : index
    %17 = vector.load %arg4[%c0_8, %c0_9] : memref<4x1xf32, #tpu.memory_space<vmem>>, vector<4x1xf32>
    %18 = vector.broadcast %17 : vector<4x1xf32> to vector<4x2048xf32>
    %19 = arith.addf %16, %18 : vector<4x2048xf32>
    %cst_10 = arith.constant dense<0xFF800000> : vector<2048xf32>
    %20 = vector.multi_reduction <maximumf>, %19, %cst_10 [0] : vector<4x2048xf32> to vector<2048xf32>
    %21 = vector.shape_cast %20 : vector<2048xf32> to vector<1x2048xf32>
    %22 = vector.broadcast %21 : vector<1x2048xf32> to vector<4x2048xf32>
    %23 = arith.subf %19, %22 : vector<4x2048xf32>
    %24 = math.exp %23 : vector<4x2048xf32>
    %cst_11 = arith.constant dense<0.000000e+00> : vector<2048xf32>
    %25 = vector.multi_reduction <add>, %24, %cst_11 [0] : vector<4x2048xf32> to vector<2048xf32>
    %26 = vector.shape_cast %25 : vector<2048xf32> to vector<1x2048xf32>
    %27 = vector.broadcast %26 : vector<1x2048xf32> to vector<4x2048xf32>
    %28 = arith.divf %24, %27 : vector<4x2048xf32>
    %c0_12 = arith.constant 0 : index
    %c0_13 = arith.constant 0 : index
    %29 = vector.load %arg5[%c0_12, %c0_13] : memref<4x2048xf32, #tpu.memory_space<vmem>>, vector<4x2048xf32>
    tpu.vector_store %arg5[%c0_12, %c0_13], %28 {strides = array<i32>} : memref<4x2048xf32, #tpu.memory_space<vmem>>, vector<4x2048xf32>,
    return
  }
  func.func @transform_0(%arg0: i32) -> (i32, i32) {
    %c0_i32 = arith.constant 0 : i32
    %c0_i32_0 = arith.constant 0 : i32
    return %c0_i32, %arg0 : i32, i32
  }
  func.func @transform_1(%arg0: i32) -> (i32, i32) {
    %c0_i32 = arith.constant 0 : i32
    %c0_i32_0 = arith.constant 0 : i32
    %c0_i32_1 = arith.constant 0 : i32
    return %c0_i32, %c0_i32_0 : i32, i32
  }
  func.func @transform_2(%arg0: i32) -> (i32, i32) {
    %c0_i32 = arith.constant 0 : i32
    %c0_i32_0 = arith.constant 0 : i32
    %c0_i32_1 = arith.constant 0 : i32
    return %c0_i32, %c0_i32_0 : i32, i32
  }
  func.func @transform_3(%arg0: i32) -> (i32, i32) {
    %c0_i32 = arith.constant 0 : i32
    %c0_i32_0 = arith.constant 0 : i32
    %c0_i32_1 = arith.constant 0 : i32
    return %c0_i32, %c0_i32_0 : i32, i32
  }
  func.func @transform_4(%arg0: i32) -> (i32, i32) {
    %c0_i32 = arith.constant 0 : i32
    %c0_i32_0 = arith.constant 0 : i32
    return %c0_i32, %arg0 : i32, i32
  }
}

</mosaic_0001>

<llo_original>
// kernel: tpu_custom_call.1
$region0: #{tpu_custom_call.1}
  #allocation0 [shape = 'u32[]', space=smem, size = 0x4, offset = 0x4, fixed_abs, tag = 'smem constant byte address 0x4 - core index']
  #allocation1 [shape = 'u32[144,128]{1,0:T(1,128)}', space=vmem, size = 0x12000, scoped, tag = 'internal scratch']
  %s0 = inlined_call_operand.hbm [shape: s32[2,4096], index: 0, kind: input, shape index: {}]
  %s1 = inlined_call_operand.hbm [shape: f32[32,64], index: 1, kind: input, shape index: {}]
  %s2 = inlined_call_operand.vmem [shape: f32[4,32], index: 2, kind: input, shape index: {}]
  %s3 = inlined_call_operand.vmem [shape: f32[4,1], index: 3, kind: input, shape index: {}]
  %s4 = inlined_call_operand.hbm [shape: f32[4,4096], index: 4, kind: output, shape index: {}]
  %s5 = sld [smem:[#allocation0]]
  $region57: #{tpu_custom_call.1} parent=0
    _
  %s7 = ssub.s32 1, %s5
  %s8 = scalar_select 0, %s7, %s5
  $region1: #{tpu_custom_call.1} parent=0
    #allocation2 [shape = 'u8[32768]{0}', space=vmem, size = 0x8000, scoped, tag = 'input window, operand 0']
    #allocation3 [shape = 's32[2]{0}', space=sflag, size = 0x8, scoped, tag = 'scoped memory for tpu_custom_call.1']
    #allocation4 [shape = 's32[2]{0}', space=sflag, size = 0x8, scoped, tag = 'scoped memory for tpu_custom_call.1']
    #allocation5 [shape = 'u8[16384]{0}', space=vmem, size = 0x4000, scoped, tag = 'input window, operand 1, single buffered']
    #allocation6 [shape = 's32[1]{0}', space=sflag, size = 0x4, scoped, tag = 'scoped memory for tpu_custom_call.1']
    #allocation7 [shape = 'u8[65536]{0}', space=vmem, size = 0x10000, scoped, tag = 'output window, operand 0']
    %9 = vsyncpa [#allocation3], 0
    %s10 = scalar_lea.sflag [#allocation3], 1
    %11 = vsyncpa %s10, 0
    %12 = vsyncpa [#allocation6], 0
    %13 = vsyncpa [#allocation4], 0
    %s14 = scalar_lea.sflag [#allocation4], 1
    %15 = vsyncpa %s14, 0
    loop: start=0, step=1, limit=4
    $region2: #{tpu_custom_call.1} parent=1 // loop_pre_header
      _
    $region3: #{tpu_custom_call.1} parent=1 // loop_header
      %s17 = sphi 0, %s21
      %p18 = scmp.ge.s32.totalorder %s17, 4
      %s27 = sphi 0, %s29
      %s30 = sphi 0, %s27
      %s31 = sphi 0, %s30
      %s47 = sphi 0, %s31
      %s51 = sphi 0, %s51
      %s53 = sphi 0, %s51
      %s54 = sphi 0, %s53
      %s68 = sphi 0, %s54
      %s72 = sphi 0, %s72
      %s74 = sphi 0, %s72
      %s75 = sphi 0, %s74
      %s89 = sphi 0, %s75
      %s93 = sphi 0, %s93
      %s95 = sphi 0, %s93
      %s96 = sphi 0, %s95
      %s110 = sphi 0, %s96
      %s116 = sphi 0, %s118
      %s119 = sphi 0, %s116
      %s120 = sphi 0, %s119
      %s136 = sphi 0, %s120
    $region4: #{tpu_custom_call.1} parent=1 // loop_header_branch
      %20 = sbr.rel (%p18) target = $region8
    $region5: #{tpu_custom_call.1} parent=1 // loop_body
      %s22 = ssub.s32 %s17, 1
      %s23 = ssub.s32 %s17, 2
      %s24 = sadd.s32 %s17, 1
      %s25 = ssub.s32 %s17, %s24
      %p26 = scmp.eq.s32.totalorder %s25, 0
      %s28 = sadd.s32 %s27, 1
      %s29 = scalar_select %p26, %s27, %s28
      %p32 = pneg %p26
      %p33 = scmp.eq.s32.totalorder %s17, 1
      %p34 = por %p32, %p33
      %p35 = scmp.ne.s32.totalorder %s27, %s30
      %p36 = scmp.eq.s32.totalorder %s17, 0
      %p37 = por %p35, %p36
      %p38 = scmp.ne.s32.totalorder %s27, %s30
      %p39 = scmp.eq.s32.totalorder %s22, 1
      %p40 = por %p38, %p39
      %p41 = scmp.ne.s32.totalorder %s30, %s31
      %p42 = scmp.eq.s32.totalorder %s22, 0
      %p43 = por %p41, %p42
      %p44 = scmp.ne.s32.totalorder %s30, %s31
      %p45 = scmp.eq.s32.totalorder %s23, 1
      %p46 = por %p44, %p45
      %p48 = scmp.ne.s32.totalorder %s31, %s47
      %p49 = scmp.eq.s32.totalorder %s23, 0
      %p50 = por %p48, %p49
      %s52 = sadd.s32 %s51, 1
      %p55 = scmp.eq.s32.totalorder %s17, 1
      %p56 = scmp.ne.s32.totalorder %s51, %s53
      %p57 = scmp.eq.s32.totalorder %s17, 0
      %p58 = por %p56, %p57
      %p59 = scmp.ne.s32.totalorder %s51, %s53
      %p60 = scmp.eq.s32.totalorder %s22, 1
      %p61 = por %p59, %p60
      %p62 = scmp.ne.s32.totalorder %s53, %s54
      %p63 = scmp.eq.s32.totalorder %s22, 0
      %p64 = por %p62, %p63
      %p65 = scmp.ne.s32.totalorder %s53, %s54
      %p66 = scmp.eq.s32.totalorder %s23, 1
      %p67 = por %p65, %p66
      %p69 = scmp.ne.s32.totalorder %s54, %s68
      %p70 = scmp.eq.s32.totalorder %s23, 0
      %p71 = por %p69, %p70
      %s73 = sadd.s32 %s72, 1
      %p76 = scmp.eq.s32.totalorder %s17, 1
      %p77 = scmp.ne.s32.totalorder %s72, %s74
      %p78 = scmp.eq.s32.totalorder %s17, 0
      %p79 = por %p77, %p78
      %p80 = scmp.ne.s32.totalorder %s72, %s74
      %p81 = scmp.eq.s32.totalorder %s22, 1
      %p82 = por %p80, %p81
      %p83 = scmp.ne.s32.totalorder %s74, %s75
      %p84 = scmp.eq.s32.totalorder %s22, 0
      %p85 = por %p83, %p84
      %p86 = scmp.ne.s32.totalorder %s74, %s75
      %p87 = scmp.eq.s32.totalorder %s23, 1
      %p88 = por %p86, %p87
      %p90 = scmp.ne.s32.totalorder %s75, %s89
      %p91 = scmp.eq.s32.totalorder %s23, 0
      %p92 = por %p90, %p91
      %s94 = sadd.s32 %s93, 1
      %p97 = scmp.eq.s32.totalorder %s17, 1
      %p98 = scmp.ne.s32.totalorder %s93, %s95
      %p99 = scmp.eq.s32.totalorder %s17, 0
      %p100 = por %p98, %p99
      %p101 = scmp.ne.s32.totalorder %s93, %s95
      %p102 = scmp.eq.s32.totalorder %s22, 1
      %p103 = por %p101, %p102
      %p104 = scmp.ne.s32.totalorder %s95, %s96
      %p105 = scmp.eq.s32.totalorder %s22, 0
      %p106 = por %p104, %p105
      %p107 = scmp.ne.s32.totalorder %s95, %s96
      %p108 = scmp.eq.s32.totalorder %s23, 1
      %p109 = por %p107, %p108
      %p111 = scmp.ne.s32.totalorder %s96, %s110
      %p112 = scmp.eq.s32.totalorder %s23, 0
      %p113 = por %p111, %p112
      %s114 = ssub.s32 %s17, %s24
      %p115 = scmp.eq.s32.totalorder %s114, 0
      %s117 = sadd.s32 %s116, 1
      %s118 = scalar_select %p115, %s116, %s117
      %p121 = pneg %p115
      %p122 = scmp.eq.s32.totalorder %s17, 1
      %p123 = por %p121, %p122
      %p124 = scmp.ne.s32.totalorder %s116, %s119
      %p125 = scmp.eq.s32.totalorder %s17, 0
      %p126 = por %p124, %p125
      %p127 = scmp.ne.s32.totalorder %s116, %s119
      %p128 = scmp.eq.s32.totalorder %s22, 1
      %p129 = por %p127, %p128
      %p130 = scmp.ne.s32.totalorder %s119, %s120
      %p131 = scmp.eq.s32.totalorder %s22, 0
      %p132 = por %p130, %p131
      %p133 = scmp.ne.s32.totalorder %s119, %s120
      %p134 = scmp.eq.s32.totalorder %s23, 1
      %p135 = por %p133, %p134
      %p137 = scmp.ne.s32.totalorder %s120, %s136
      %p138 = scmp.eq.s32.totalorder %s23, 0
      %p139 = por %p137, %p138
      %p140 = scmp.le.s32.totalorder 1, %s17
      %p141 = scmp.lt.s32.totalorder %s17, 3
      %p142 = pnand %p140, %p141
      %p143 = pneg %p142
      // Predicated region
      $region9: #{tpu_custom_call.1} parent=5 // pred_check
        _
      $region10: #{tpu_custom_call.1} parent=5 // pred_check_branch
        %145 = sbr.rel (%p142) target = $region12
      $region11: #{tpu_custom_call.1} parent=5 // pred_region
        %s146 = ssub.s32 %s17, 1
        // Predicated region
        $region13: #{tpu_custom_call.1} parent=11 // pred_check
          %p147 = pneg %p64
        $region14: #{tpu_custom_call.1} parent=11 // pred_check_branch
          %149 = sbr.rel (%p147) target = $region16
        $region15: #{tpu_custom_call.1} parent=11 // pred_region
          %s151 = ssub.s32 512, 512
          %152 = vsyncadd [#allocation6], %s151
          %s153 = sshll.u32 [#allocation5], 4
          %s154 = int_to_ptr.vmem [resolvable:$true] %s153
          %159 = dma.hbm_to_vmem [thread:$0]  %s1, 512, %s154, [#allocation6], 128, 128, 8
        $region16: #{tpu_custom_call.1} parent=11 // pred_fallthru
          _
        // Predicated region
        $region17: #{tpu_custom_call.1} parent=11 // pred_check
          %p160 = pneg %p85
        $region18: #{tpu_custom_call.1} parent=11 // pred_check_branch
          %162 = sbr.rel (%p160) target = $region20
        $region19: #{tpu_custom_call.1} parent=11 // pred_region
          _
        $region20: #{tpu_custom_call.1} parent=11 // pred_fallthru
          _
        // Predicated region
        $region21: #{tpu_custom_call.1} parent=11 // pred_check
          %p163 = pneg %p106
        $region22: #{tpu_custom_call.1} parent=11 // pred_check_branch
          %165 = sbr.rel (%p163) target = $region24
        $region23: #{tpu_custom_call.1} parent=11 // pred_region
          _
        $region24: #{tpu_custom_call.1} parent=11 // pred_fallthru
          _
      $region12: #{tpu_custom_call.1} parent=5 // pred_fallthru
        _
      %p166 = scmp.lt.s32.totalorder %s17, 2
      // Predicated region
      $region25: #{tpu_custom_call.1} parent=5 // pred_check
        %p167 = pneg %p166
      $region26: #{tpu_custom_call.1} parent=5 // pred_check_branch
        %169 = sbr.rel (%p167) target = $region28
      $region27: #{tpu_custom_call.1} parent=5 // pred_region
        // Predicated region
        $region29: #{tpu_custom_call.1} parent=27 // pred_check
          %p170 = pneg %p37
        $region30: #{tpu_custom_call.1} parent=27 // pred_check_branch
          %172 = sbr.rel (%p170) target = $region32
        $region31: #{tpu_custom_call.1} parent=27 // pred_region
          %s173 = sand.u32 %s27, 1
          %s174 = scalar_lea.sflag [#allocation3], %s173
          %s175 = sand.u32 %s27, 1
          %s176 = smul.addr %s175, 32
          %s177 = scalar_lea.vmem [#allocation2], %s176
          %s178 = smul.u32 16, %s17
          %s180 = ssub.s32 512, 512
          %181 = vsyncadd %s174, %s180
          %s182 = smul.addr %s178, 32
          %s183 = scalar_lea.hbm %s0, %s182
          %s185 = sshll.u32 %s177, 4
          %s186 = int_to_ptr.vmem [resolvable:$true] %s185
          %188 = dma.hbm_to_vmem [thread:$0]  %s183, 512, %s186, %s174
        $region32: #{tpu_custom_call.1} parent=27 // pred_fallthru
          _
      $region28: #{tpu_custom_call.1} parent=5 // pred_fallthru
        _
      %p189 = scmp.le.s32.totalorder 1, %s17
      %p190 = scmp.lt.s32.totalorder %s17, 3
      %p191 = pnand %p189, %p190
      %p192 = pneg %p191
      // Predicated region
      $region33: #{tpu_custom_call.1} parent=5 // pred_check
        _
      $region34: #{tpu_custom_call.1} parent=5 // pred_check_branch
        %194 = sbr.rel (%p191) target = $region36
      $region35: #{tpu_custom_call.1} parent=5 // pred_region
        %s195 = ssub.s32 %s17, 1
        %s196 = sand.u32 %s30, 1
        %s197 = scalar_lea.sflag [#allocation3], %s196
        %s198 = sand.u32 %s30, 1
        %s199 = smul.addr %s198, 32
        %s200 = scalar_lea.vmem [#allocation2], %s199
        // Predicated region
        $region37: #{tpu_custom_call.1} parent=35 // pred_check
          %p201 = pneg %p43
        $region38: #{tpu_custom_call.1} parent=35 // pred_check_branch
          %203 = sbr.rel (%p201) target = $region40
        $region39: #{tpu_custom_call.1} parent=35 // pred_region
          %204 = dma.done %s197, 512
        $region40: #{tpu_custom_call.1} parent=35 // pred_fallthru
          _
        // Predicated region
        $region41: #{tpu_custom_call.1} parent=35 // pred_check
          %p205 = pneg %p64
        $region42: #{tpu_custom_call.1} parent=35 // pred_check_branch
          %207 = sbr.rel (%p205) target = $region44
        $region43: #{tpu_custom_call.1} parent=35 // pred_region
          %208 = dma.done [#allocation6], 512
        $region44: #{tpu_custom_call.1} parent=35 // pred_fallthru
          _
        %s209 = sand.u32 %s30, 1
        %s210 = scalar_lea.sflag [#allocation3], %s209
        %s211 = sand.u32 %s30, 1
        %s212 = smul.addr %s211, 32
        %s213 = scalar_lea.vmem [#allocation2], %s212
        %p214 = pneg %p43
        %p215 = pneg %p40
        %p216 = pneg %p64
        %p217 = pneg %p61
        %p218 = pneg %p85
        %p219 = pneg %p82
        %p220 = pneg %p106
        %p221 = pneg %p103
        %p222 = pneg %p132
        %p223 = pneg %p129
        %s224 = sand.u32 %s119, 1
        %s225 = scalar_lea.sflag [#allocation4], %s224
        %s226 = sand.u32 %s119, 1
        %s227 = smul.addr %s226, 64
        %s228 = scalar_lea.vmem [#allocation7], %s227
        %s229 = smul.u32 16, %s22
        %s230 = smul.u32 16, %s22
        %v231 = vld [vmem:[%s200] sm:$0xff]
        %v232 = vld [vmem:[%s200 + $0x8] sm:$0xff]
        %v233 = vld [vmem:[%s200 + $0x10] sm:$0xff]
        %v234 = vld [vmem:[%s200 + $0x18] sm:$0xff]
        %v235 = vlaneseq
        %v236 = vshrl.u32 %v235, 7
        %v237 = vsub.s32 0, %v236
        %v238 = vrot.slane %v231, %v237
        %v239 = vlaneseq
        %v240 = vshrl.u32 %v239, 7
        %v241 = vsub.s32 2, %v240
        %v242 = vrot.slane %v231, %v241
        %v243 = vlaneseq
        %v244 = vshrl.u32 %v243, 7
        %v245 = vsub.s32 4, %v244
        %v246 = vrot.slane %v231, %v245
        %v247 = vlaneseq
        %v248 = vshrl.u32 %v247, 7
        %v249 = vsub.s32 6, %v248
        %v250 = vrot.slane %v231, %v249
        %v251 = vlaneseq
        %v252 = vshrl.u32 %v251, 7
        %v253 = vsub.s32 0, %v252
        %v254 = vrot.slane %v232, %v253
        %v255 = vlaneseq
        %v256 = vshrl.u32 %v255, 7
        %v257 = vsub.s32 2, %v256
        %v258 = vrot.slane %v232, %v257
        %v259 = vlaneseq
        %v260 = vshrl.u32 %v259, 7
        %v261 = vsub.s32 4, %v260
        %v262 = vrot.slane %v232, %v261
        %v263 = vlaneseq
        %v264 = vshrl.u32 %v263, 7
        %v265 = vsub.s32 6, %v264
        %v266 = vrot.slane %v232, %v265
        %v267 = vlaneseq
        %v268 = vshrl.u32 %v267, 7
        %v269 = vsub.s32 0, %v268
        %v270 = vrot.slane %v233, %v269
        %v271 = vlaneseq
        %v272 = vshrl.u32 %v271, 7
        %v273 = vsub.s32 2, %v272
        %v274 = vrot.slane %v233, %v273
        %v275 = vlaneseq
        %v276 = vshrl.u32 %v275, 7
        %v277 = vsub.s32 4, %v276
        %v278 = vrot.slane %v233, %v277
        %v279 = vlaneseq
        %v280 = vshrl.u32 %v279, 7
        %v281 = vsub.s32 6, %v280
        %v282 = vrot.slane %v233, %v281
        %v283 = vlaneseq
        %v284 = vshrl.u32 %v283, 7
        %v285 = vsub.s32 0, %v284
        %v286 = vrot.slane %v234, %v285
        %v287 = vlaneseq
        %v288 = vshrl.u32 %v287, 7
        %v289 = vsub.s32 2, %v288
        %v290 = vrot.slane %v234, %v289
        %v291 = vlaneseq
        %v292 = vshrl.u32 %v291, 7
        %v293 = vsub.s32 4, %v292
        %v294 = vrot.slane %v234, %v293
        %v295 = vlaneseq
        %v296 = vshrl.u32 %v295, 7
        %v297 = vsub.s32 6, %v296
        %v298 = vrot.slane %v234, %v297
        %v299 = vlaneseq
        %v300 = vshrl.u32 %v299, 7
        %v301 = vsub.s32 1, %v300
        %v302 = vrot.slane %v231, %v301
        %v303 = vlaneseq
        %v304 = vshrl.u32 %v303, 7
        %v305 = vsub.s32 3, %v304
        %v306 = vrot.slane %v231, %v305
        %v307 = vlaneseq
        %v308 = vshrl.u32 %v307, 7
        %v309 = vsub.s32 5, %v308
        %v310 = vrot.slane %v231, %v309
        %v311 = vlaneseq
        %v312 = vshrl.u32 %v311, 7
        %v313 = vsub.s32 7, %v312
        %v314 = vrot.slane %v231, %v313
        %v315 = vlaneseq
        %v316 = vshrl.u32 %v315, 7
        %v317 = vsub.s32 1, %v316
        %v318 = vrot.slane %v232, %v317
        %v319 = vlaneseq
        %v320 = vshrl.u32 %v319, 7
        %v321 = vsub.s32 3, %v320
        %v322 = vrot.slane %v232, %v321
        %v323 = vlaneseq
        %v324 = vshrl.u32 %v323, 7
        %v325 = vsub.s32 5, %v324
        %v326 = vrot.slane %v232, %v325
        %v327 = vlaneseq
        %v328 = vshrl.u32 %v327, 7
        %v329 = vsub.s32 7, %v328
        %v330 = vrot.slane %v232, %v329
        %v331 = vlaneseq
        %v332 = vshrl.u32 %v331, 7
        %v333 = vsub.s32 1, %v332
        %v334 = vrot.slane %v233, %v333
        %v335 = vlaneseq
        %v336 = vshrl.u32 %v335, 7
        %v337 = vsub.s32 3, %v336
        %v338 = vrot.slane %v233, %v337
        %v339 = vlaneseq
        %v340 = vshrl.u32 %v339, 7
        %v341 = vsub.s32 5, %v340
        %v342 = vrot.slane %v233, %v341
        %v343 = vlaneseq
        %v344 = vshrl.u32 %v343, 7
        %v345 = vsub.s32 7, %v344
        %v346 = vrot.slane %v233, %v345
        %v347 = vlaneseq
        %v348 = vshrl.u32 %v347, 7
        %v349 = vsub.s32 1, %v348
        %v350 = vrot.slane %v234, %v349
        %v351 = vlaneseq
        %v352 = vshrl.u32 %v351, 7
        %v353 = vsub.s32 3, %v352
        %v354 = vrot.slane %v234, %v353
        %v355 = vlaneseq
        %v356 = vshrl.u32 %v355, 7
        %v357 = vsub.s32 5, %v356
        %v358 = vrot.slane %v234, %v357
        %v359 = vlaneseq
        %v360 = vshrl.u32 %v359, 7
        %v361 = vsub.s32 7, %v360
        %v362 = vrot.slane %v234, %v361
        %v363 = vlaneseq
        %v364 = vshrl.u32 %v363, 7
        %v365 = vadd.s32 %v364, 8
        %v366 = vadd.s32 %v364, 16
        %v367 = vadd.s32 %v364, 24
        %v368 = vadd.s32 %v364, 32
        %v369 = vadd.s32 %v364, 40
        %v370 = vadd.s32 %v364, 48
        %v371 = vadd.s32 %v364, 56
        %v372 = vlaneseq
        %v373 = vshrl.u32 %v372, 7
        %v374 = vsub.s32 0, %v373
        %v375 = vrot.slane %v238, %v374
        %v376 = vlaneseq
        %v377 = vshrl.u32 %v376, 7
        %v378 = vsub.s32 0, %v377
        %v379 = vrot.slane %v242, %v378
        %v380 = vlaneseq
        %v381 = vshrl.u32 %v380, 7
        %v382 = vsub.s32 0, %v381
        %v383 = vrot.slane %v246, %v382
        %v384 = vlaneseq
        %v385 = vshrl.u32 %v384, 7
        %v386 = vsub.s32 0, %v385
        %v387 = vrot.slane %v250, %v386
        %v388 = vlaneseq
        %v389 = vshrl.u32 %v388, 7
        %v390 = vsub.s32 0, %v389
        %v391 = vrot.slane %v254, %v390
        %v392 = vlaneseq
        %v393 = vshrl.u32 %v392, 7
        %v394 = vsub.s32 0, %v393
        %v395 = vrot.slane %v258, %v394
        %v396 = vlaneseq
        %v397 = vshrl.u32 %v396, 7
        %v398 = vsub.s32 0, %v397
        %v399 = vrot.slane %v262, %v398
        %v400 = vlaneseq
        %v401 = vshrl.u32 %v400, 7
        %v402 = vsub.s32 0, %v401
        %v403 = vrot.slane %v266, %v402
        %v404 = vlaneseq
        %v405 = vshrl.u32 %v404, 7
        %v406 = vsub.s32 0, %v405
        %v407 = vrot.slane %v270, %v406
        %v408 = vlaneseq
        %v409 = vshrl.u32 %v408, 7
        %v410 = vsub.s32 0, %v409
        %v411 = vrot.slane %v274, %v410
        %v412 = vlaneseq
        %v413 = vshrl.u32 %v412, 7
        %v414 = vsub.s32 0, %v413
        %v415 = vrot.slane %v278, %v414
        %v416 = vlaneseq
        %v417 = vshrl.u32 %v416, 7
        %v418 = vsub.s32 0, %v417
        %v419 = vrot.slane %v282, %v418
        %v420 = vlaneseq
        %v421 = vshrl.u32 %v420, 7
        %v422 = vsub.s32 0, %v421
        %v423 = vrot.slane %v286, %v422
        %v424 = vlaneseq
        %v425 = vshrl.u32 %v424, 7
        %v426 = vsub.s32 0, %v425
        %v427 = vrot.slane %v290, %v426
        %v428 = vlaneseq
        %v429 = vshrl.u32 %v428, 7
        %v430 = vsub.s32 0, %v429
        %v431 = vrot.slane %v294, %v430
        %v432 = vlaneseq
        %v433 = vshrl.u32 %v432, 7
        %v434 = vsub.s32 0, %v433
        %v435 = vrot.slane %v298, %v434
        %v436 = vlaneseq
        %v437 = vshrl.u32 %v436, 7
        %v438 = vsub.s32 0, %v437
        %v439 = vrot.slane %v302, %v438
        %v440 = vlaneseq
        %v441 = vshrl.u32 %v440, 7
        %v442 = vsub.s32 0, %v441
        %v443 = vrot.slane %v306, %v442
        %v444 = vlaneseq
        %v445 = vshrl.u32 %v444, 7
        %v446 = vsub.s32 0, %v445
        %v447 = vrot.slane %v310, %v446
        %v448 = vlaneseq
        %v449 = vshrl.u32 %v448, 7
        %v450 = vsub.s32 0, %v449
        %v451 = vrot.slane %v314, %v450
        %v452 = vlaneseq
        %v453 = vshrl.u32 %v452, 7
        %v454 = vsub.s32 0, %v453
        %v455 = vrot.slane %v318, %v454
        %v456 = vlaneseq
        %v457 = vshrl.u32 %v456, 7
        %v458 = vsub.s32 0, %v457
        %v459 = vrot.slane %v322, %v458
        %v460 = vlaneseq
        %v461 = vshrl.u32 %v460, 7
        %v462 = vsub.s32 0, %v461
        %v463 = vrot.slane %v326, %v462
        %v464 = vlaneseq
        %v465 = vshrl.u32 %v464, 7
        %v466 = vsub.s32 0, %v465
        %v467 = vrot.slane %v330, %v466
        %v468 = vlaneseq
        %v469 = vshrl.u32 %v468, 7
        %v470 = vsub.s32 0, %v469
        %v471 = vrot.slane %v334, %v470
        %v472 = vlaneseq
        %v473 = vshrl.u32 %v472, 7
        %v474 = vsub.s32 0, %v473
        %v475 = vrot.slane %v338, %v474
        %v476 = vlaneseq
        %v477 = vshrl.u32 %v476, 7
        %v478 = vsub.s32 0, %v477
        %v479 = vrot.slane %v342, %v478
        %v480 = vlaneseq
        %v481 = vshrl.u32 %v480, 7
        %v482 = vsub.s32 0, %v481
        %v483 = vrot.slane %v346, %v482
        %v484 = vlaneseq
        %v485 = vshrl.u32 %v484, 7
        %v486 = vsub.s32 0, %v485
        %v487 = vrot.slane %v350, %v486
        %v488 = vlaneseq
        %v489 = vshrl.u32 %v488, 7
        %v490 = vsub.s32 0, %v489
        %v491 = vrot.slane %v354, %v490
        %v492 = vlaneseq
        %v493 = vshrl.u32 %v492, 7
        %v494 = vsub.s32 0, %v493
        %v495 = vrot.slane %v358, %v494
        %v496 = vlaneseq
        %v497 = vshrl.u32 %v496, 7
        %v498 = vsub.s32 0, %v497
        %v499 = vrot.slane %v362, %v498
        %vm500 = vcmp.eq.s32.totalorder %v364, %v375
        %vm501 = vcmp.eq.s32.totalorder %v364, %v379
        %vm502 = vcmp.eq.s32.totalorder %v364, %v383
        %vm503 = vcmp.eq.s32.totalorder %v364, %v387
        %vm504 = vcmp.eq.s32.totalorder %v364, %v391
        %vm505 = vcmp.eq.s32.totalorder %v364, %v395
        %vm506 = vcmp.eq.s32.totalorder %v364, %v399
        %vm507 = vcmp.eq.s32.totalorder %v364, %v403
        %vm508 = vcmp.eq.s32.totalorder %v364, %v407
        %vm509 = vcmp.eq.s32.totalorder %v364, %v411
        %vm510 = vcmp.eq.s32.totalorder %v364, %v415
        %vm511 = vcmp.eq.s32.totalorder %v364, %v419
        %vm512 = vcmp.eq.s32.totalorder %v364, %v423
        %vm513 = vcmp.eq.s32.totalorder %v364, %v427
        %vm514 = vcmp.eq.s32.totalorder %v364, %v431
        %vm515 = vcmp.eq.s32.totalorder %v364, %v435
        %vm516 = vcmp.eq.s32.totalorder %v364, %v439
        %vm517 = vcmp.eq.s32.totalorder %v364, %v443
        %vm518 = vcmp.eq.s32.totalorder %v364, %v447
        %vm519 = vcmp.eq.s32.totalorder %v364, %v451
        %vm520 = vcmp.eq.s32.totalorder %v364, %v455
        %vm521 = vcmp.eq.s32.totalorder %v364, %v459
        %vm522 = vcmp.eq.s32.totalorder %v364, %v463
        %vm523 = vcmp.eq.s32.totalorder %v364, %v467
        %vm524 = vcmp.eq.s32.totalorder %v364, %v471
        %vm525 = vcmp.eq.s32.totalorder %v364, %v475
        %vm526 = vcmp.eq.s32.totalorder %v364, %v479
        %vm527 = vcmp.eq.s32.totalorder %v364, %v483
        %vm528 = vcmp.eq.s32.totalorder %v364, %v487
        %vm529 = vcmp.eq.s32.totalorder %v364, %v491
        %vm530 = vcmp.eq.s32.totalorder %v364, %v495
        %vm531 = vcmp.eq.s32.totalorder %v364, %v499
        %vm532 = vcmp.eq.s32.totalorder %v365, %v375
        %vm533 = vcmp.eq.s32.totalorder %v365, %v379
        %vm534 = vcmp.eq.s32.totalorder %v365, %v383
        %vm535 = vcmp.eq.s32.totalorder %v365, %v387
        %vm536 = vcmp.eq.s32.totalorder %v365, %v391
        %vm537 = vcmp.eq.s32.totalorder %v365, %v395
        %vm538 = vcmp.eq.s32.totalorder %v365, %v399
        %vm539 = vcmp.eq.s32.totalorder %v365, %v403
        %vm540 = vcmp.eq.s32.totalorder %v365, %v407
        %vm541 = vcmp.eq.s32.totalorder %v365, %v411
        %vm542 = vcmp.eq.s32.totalorder %v365, %v415
        %vm543 = vcmp.eq.s32.totalorder %v365, %v419
        %vm544 = vcmp.eq.s32.totalorder %v365, %v423
        %vm545 = vcmp.eq.s32.totalorder %v365, %v427
        %vm546 = vcmp.eq.s32.totalorder %v365, %v431
        %vm547 = vcmp.eq.s32.totalorder %v365, %v435
        %vm548 = vcmp.eq.s32.totalorder %v365, %v439
        %vm549 = vcmp.eq.s32.totalorder %v365, %v443
        %vm550 = vcmp.eq.s32.totalorder %v365, %v447
        %vm551 = vcmp.eq.s32.totalorder %v365, %v451
        %vm552 = vcmp.eq.s32.totalorder %v365, %v455
        %vm553 = vcmp.eq.s32.totalorder %v365, %v459
        %vm554 = vcmp.eq.s32.totalorder %v365, %v463
        %vm555 = vcmp.eq.s32.totalorder %v365, %v467
        %vm556 = vcmp.eq.s32.totalorder %v365, %v471
        %vm557 = vcmp.eq.s32.totalorder %v365, %v475
        %vm558 = vcmp.eq.s32.totalorder %v365, %v479
        %vm559 = vcmp.eq.s32.totalorder %v365, %v483
        %vm560 = vcmp.eq.s32.totalorder %v365, %v487
        %vm561 = vcmp.eq.s32.totalorder %v365, %v491
        %vm562 = vcmp.eq.s32.totalorder %v365, %v495
        %vm563 = vcmp.eq.s32.totalorder %v365, %v499
        %vm564 = vcmp.eq.s32.totalorder %v366, %v375
        %vm565 = vcmp.eq.s32.totalorder %v366, %v379
        %vm566 = vcmp.eq.s32.totalorder %v366, %v383
        %vm567 = vcmp.eq.s32.totalorder %v366, %v387
        %vm568 = vcmp.eq.s32.totalorder %v366, %v391
        %vm569 = vcmp.eq.s32.totalorder %v366, %v395
        %vm570 = vcmp.eq.s32.totalorder %v366, %v399
        %vm571 = vcmp.eq.s32.totalorder %v366, %v403
        %vm572 = vcmp.eq.s32.totalorder %v366, %v407
        %vm573 = vcmp.eq.s32.totalorder %v366, %v411
        %vm574 = vcmp.eq.s32.totalorder %v366, %v415
        %vm575 = vcmp.eq.s32.totalorder %v366, %v419
        %vm576 = vcmp.eq.s32.totalorder %v366, %v423
        %vm577 = vcmp.eq.s32.totalorder %v366, %v427
        %vm578 = vcmp.eq.s32.totalorder %v366, %v431
        %vm579 = vcmp.eq.s32.totalorder %v366, %v435
        %vm580 = vcmp.eq.s32.totalorder %v366, %v439
        %vm581 = vcmp.eq.s32.totalorder %v366, %v443
        %vm582 = vcmp.eq.s32.totalorder %v366, %v447
        %vm583 = vcmp.eq.s32.totalorder %v366, %v451
        %vm584 = vcmp.eq.s32.totalorder %v366, %v455
        %vm585 = vcmp.eq.s32.totalorder %v366, %v459
        %vm586 = vcmp.eq.s32.totalorder %v366, %v463
        %vm587 = vcmp.eq.s32.totalorder %v366, %v467
        %vm588 = vcmp.eq.s32.totalorder %v366, %v471
        %vm589 = vcmp.eq.s32.totalorder %v366, %v475
        %vm590 = vcmp.eq.s32.totalorder %v366, %v479
        %vm591 = vcmp.eq.s32.totalorder %v366, %v483
        %vm592 = vcmp.eq.s32.totalorder %v366, %v487
        %vm593 = vcmp.eq.s32.totalorder %v366, %v491
        %vm594 = vcmp.eq.s32.totalorder %v366, %v495
        %vm595 = vcmp.eq.s32.totalorder %v366, %v499
        %vm596 = vcmp.eq.s32.totalorder %v367, %v375
        %vm597 = vcmp.eq.s32.totalorder %v367, %v379
        %vm598 = vcmp.eq.s32.totalorder %v367, %v383
        %vm599 = vcmp.eq.s32.totalorder %v367, %v387
        %vm600 = vcmp.eq.s32.totalorder %v367, %v391
        %vm601 = vcmp.eq.s32.totalorder %v367, %v395
        %vm602 = vcmp.eq.s32.totalorder %v367, %v399
        %vm603 = vcmp.eq.s32.totalorder %v367, %v403
        %vm604 = vcmp.eq.s32.totalorder %v367, %v407
        %vm605 = vcmp.eq.s32.totalorder %v367, %v411
        %vm606 = vcmp.eq.s32.totalorder %v367, %v415
        %vm607 = vcmp.eq.s32.totalorder %v367, %v419
        %vm608 = vcmp.eq.s32.totalorder %v367, %v423
        %vm609 = vcmp.eq.s32.totalorder %v367, %v427
        %vm610 = vcmp.eq.s32.totalorder %v367, %v431
        %vm611 = vcmp.eq.s32.totalorder %v367, %v435
        %vm612 = vcmp.eq.s32.totalorder %v367, %v439
        %vm613 = vcmp.eq.s32.totalorder %v367, %v443
        %vm614 = vcmp.eq.s32.totalorder %v367, %v447
        %vm615 = vcmp.eq.s32.totalorder %v367, %v451
        %vm616 = vcmp.eq.s32.totalorder %v367, %v455
        %vm617 = vcmp.eq.s32.totalorder %v367, %v459
        %vm618 = vcmp.eq.s32.totalorder %v367, %v463
        %vm619 = vcmp.eq.s32.totalorder %v367, %v467
        %vm620 = vcmp.eq.s32.totalorder %v367, %v471
        %vm621 = vcmp.eq.s32.totalorder %v367, %v475
        %vm622 = vcmp.eq.s32.totalorder %v367, %v479
        %vm623 = vcmp.eq.s32.totalorder %v367, %v483
        %vm624 = vcmp.eq.s32.totalorder %v367, %v487
        %vm625 = vcmp.eq.s32.totalorder %v367, %v491
        %vm626 = vcmp.eq.s32.totalorder %v367, %v495
        %vm627 = vcmp.eq.s32.totalorder %v367, %v499
        %vm628 = vcmp.eq.s32.totalorder %v368, %v375
        %vm629 = vcmp.eq.s32.totalorder %v368, %v379
        %vm630 = vcmp.eq.s32.totalorder %v368, %v383
        %vm631 = vcmp.eq.s32.totalorder %v368, %v387
        %vm632 = vcmp.eq.s32.totalorder %v368, %v391
        %vm633 = vcmp.eq.s32.totalorder %v368, %v395
        %vm634 = vcmp.eq.s32.totalorder %v368, %v399
        %vm635 = vcmp.eq.s32.totalorder %v368, %v403
        %vm636 = vcmp.eq.s32.totalorder %v368, %v407
        %vm637 = vcmp.eq.s32.totalorder %v368, %v411
        %vm638 = vcmp.eq.s32.totalorder %v368, %v415
        %vm639 = vcmp.eq.s32.totalorder %v368, %v419
        %vm640 = vcmp.eq.s32.totalorder %v368, %v423
        %vm641 = vcmp.eq.s32.totalorder %v368, %v427
        %vm642 = vcmp.eq.s32.totalorder %v368, %v431
        %vm643 = vcmp.eq.s32.totalorder %v368, %v435
        %vm644 = vcmp.eq.s32.totalorder %v368, %v439
        %vm645 = vcmp.eq.s32.totalorder %v368, %v443
        %vm646 = vcmp.eq.s32.totalorder %v368, %v447
        %vm647 = vcmp.eq.s32.totalorder %v368, %v451
        %vm648 = vcmp.eq.s32.totalorder %v368, %v455
        %vm649 = vcmp.eq.s32.totalorder %v368, %v459
        %vm650 = vcmp.eq.s32.totalorder %v368, %v463
        %vm651 = vcmp.eq.s32.totalorder %v368, %v467
        %vm652 = vcmp.eq.s32.totalorder %v368, %v471
        %vm653 = vcmp.eq.s32.totalorder %v368, %v475
        %vm654 = vcmp.eq.s32.totalorder %v368, %v479
        %vm655 = vcmp.eq.s32.totalorder %v368, %v483
        %vm656 = vcmp.eq.s32.totalorder %v368, %v487
        %vm657 = vcmp.eq.s32.totalorder %v368, %v491
        %vm658 = vcmp.eq.s32.totalorder %v368, %v495
        %vm659 = vcmp.eq.s32.totalorder %v368, %v499
        %vm660 = vcmp.eq.s32.totalorder %v369, %v375
        %vm661 = vcmp.eq.s32.totalorder %v369, %v379
        %vm662 = vcmp.eq.s32.totalorder %v369, %v383
        %vm663 = vcmp.eq.s32.totalorder %v369, %v387
        %vm664 = vcmp.eq.s32.totalorder %v369, %v391
        %vm665 = vcmp.eq.s32.totalorder %v369, %v395
        %vm666 = vcmp.eq.s32.totalorder %v369, %v399
        %vm667 = vcmp.eq.s32.totalorder %v369, %v403
        %vm668 = vcmp.eq.s32.totalorder %v369, %v407
        %vm669 = vcmp.eq.s32.totalorder %v369, %v411
        %vm670 = vcmp.eq.s32.totalorder %v369, %v415
        %vm671 = vcmp.eq.s32.totalorder %v369, %v419
        %vm672 = vcmp.eq.s32.totalorder %v369, %v423
        %vm673 = vcmp.eq.s32.totalorder %v369, %v427
        %vm674 = vcmp.eq.s32.totalorder %v369, %v431
        %vm675 = vcmp.eq.s32.totalorder %v369, %v435
        %vm676 = vcmp.eq.s32.totalorder %v369, %v439
        %vm677 = vcmp.eq.s32.totalorder %v369, %v443
        %vm678 = vcmp.eq.s32.totalorder %v369, %v447
        %vm679 = vcmp.eq.s32.totalorder %v369, %v451
        %vm680 = vcmp.eq.s32.totalorder %v369, %v455
        %vm681 = vcmp.eq.s32.totalorder %v369, %v459
        %vm682 = vcmp.eq.s32.totalorder %v369, %v463
        %vm683 = vcmp.eq.s32.totalorder %v369, %v467
        %vm684 = vcmp.eq.s32.totalorder %v369, %v471
        %vm685 = vcmp.eq.s32.totalorder %v369, %v475
        %vm686 = vcmp.eq.s32.totalorder %v369, %v479
        %vm687 = vcmp.eq.s32.totalorder %v369, %v483
        %vm688 = vcmp.eq.s32.totalorder %v369, %v487
        %vm689 = vcmp.eq.s32.totalorder %v369, %v491
        %vm690 = vcmp.eq.s32.totalorder %v369, %v495
        %vm691 = vcmp.eq.s32.totalorder %v369, %v499
        %vm692 = vcmp.eq.s32.totalorder %v370, %v375
        %vm693 = vcmp.eq.s32.totalorder %v370, %v379
        %vm694 = vcmp.eq.s32.totalorder %v370, %v383
        %vm695 = vcmp.eq.s32.totalorder %v370, %v387
        %vm696 = vcmp.eq.s32.totalorder %v370, %v391
        %vm697 = vcmp.eq.s32.totalorder %v370, %v395
        %vm698 = vcmp.eq.s32.totalorder %v370, %v399
        %vm699 = vcmp.eq.s32.totalorder %v370, %v403
        %vm700 = vcmp.eq.s32.totalorder %v370, %v407
        %vm701 = vcmp.eq.s32.totalorder %v370, %v411
        %vm702 = vcmp.eq.s32.totalorder %v370, %v415
        %vm703 = vcmp.eq.s32.totalorder %v370, %v419
        %vm704 = vcmp.eq.s32.totalorder %v370, %v423
        %vm705 = vcmp.eq.s32.totalorder %v370, %v427
        %vm706 = vcmp.eq.s32.totalorder %v370, %v431
        %vm707 = vcmp.eq.s32.totalorder %v370, %v435
        %vm708 = vcmp.eq.s32.totalorder %v370, %v439
        %vm709 = vcmp.eq.s32.totalorder %v370, %v443
        %vm710 = vcmp.eq.s32.totalorder %v370, %v447
        %vm711 = vcmp.eq.s32.totalorder %v370, %v451
        %vm712 = vcmp.eq.s32.totalorder %v370, %v455
        %vm713 = vcmp.eq.s32.totalorder %v370, %v459
        %vm714 = vcmp.eq.s32.totalorder %v370, %v463
        %vm715 = vcmp.eq.s32.totalorder %v370, %v467
        %vm716 = vcmp.eq.s32.totalorder %v370, %v471
        %vm717 = vcmp.eq.s32.totalorder %v370, %v475
        %vm718 = vcmp.eq.s32.totalorder %v370, %v479
        %vm719 = vcmp.eq.s32.totalorder %v370, %v483
        %vm720 = vcmp.eq.s32.totalorder %v370, %v487
        %vm721 = vcmp.eq.s32.totalorder %v370, %v491
        %vm722 = vcmp.eq.s32.totalorder %v370, %v495
        %vm723 = vcmp.eq.s32.totalorder %v370, %v499
        %vm724 = vcmp.eq.s32.totalorder %v371, %v375
        %vm725 = vcmp.eq.s32.totalorder %v371, %v379
        %vm726 = vcmp.eq.s32.totalorder %v371, %v383
        %vm727 = vcmp.eq.s32.totalorder %v371, %v387
        %vm728 = vcmp.eq.s32.totalorder %v371, %v391
        %vm729 = vcmp.eq.s32.totalorder %v371, %v395
        %vm730 = vcmp.eq.s32.totalorder %v371, %v399
        %vm731 = vcmp.eq.s32.totalorder %v371, %v403
        %vm732 = vcmp.eq.s32.totalorder %v371, %v407
        %vm733 = vcmp.eq.s32.totalorder %v371, %v411
        %vm734 = vcmp.eq.s32.totalorder %v371, %v415
        %vm735 = vcmp.eq.s32.totalorder %v371, %v419
        %vm736 = vcmp.eq.s32.totalorder %v371, %v423
        %vm737 = vcmp.eq.s32.totalorder %v371, %v427
        %vm738 = vcmp.eq.s32.totalorder %v371, %v431
        %vm739 = vcmp.eq.s32.totalorder %v371, %v435
        %vm740 = vcmp.eq.s32.totalorder %v371, %v439
        %vm741 = vcmp.eq.s32.totalorder %v371, %v443
        %vm742 = vcmp.eq.s32.totalorder %v371, %v447
        %vm743 = vcmp.eq.s32.totalorder %v371, %v451
        %vm744 = vcmp.eq.s32.totalorder %v371, %v455
        %vm745 = vcmp.eq.s32.totalorder %v371, %v459
        %vm746 = vcmp.eq.s32.totalorder %v371, %v463
        %vm747 = vcmp.eq.s32.totalorder %v371, %v467
        %vm748 = vcmp.eq.s32.totalorder %v371, %v471
        %vm749 = vcmp.eq.s32.totalorder %v371, %v475
        %vm750 = vcmp.eq.s32.totalorder %v371, %v479
        %vm751 = vcmp.eq.s32.totalorder %v371, %v483
        %vm752 = vcmp.eq.s32.totalorder %v371, %v487
        %vm753 = vcmp.eq.s32.totalorder %v371, %v491
        %vm754 = vcmp.eq.s32.totalorder %v371, %v495
        %vm755 = vcmp.eq.s32.totalorder %v371, %v499
        %v756 = vsel %vm500, 1.0, 0.0
        %v757 = vsel %vm501, 1.0, 0.0
        %v758 = vsel %vm502, 1.0, 0.0
        %v759 = vsel %vm503, 1.0, 0.0
        %v760 = vsel %vm504, 1.0, 0.0
        %v761 = vsel %vm505, 1.0, 0.0
        %v762 = vsel %vm506, 1.0, 0.0
        %v763 = vsel %vm507, 1.0, 0.0
        %v764 = vsel %vm508, 1.0, 0.0
        %v765 = vsel %vm509, 1.0, 0.0
        %v766 = vsel %vm510, 1.0, 0.0
        %v767 = vsel %vm511, 1.0, 0.0
        %v768 = vsel %vm512, 1.0, 0.0
        %v769 = vsel %vm513, 1.0, 0.0
        %v770 = vsel %vm514, 1.0, 0.0
        %v771 = vsel %vm515, 1.0, 0.0
        %v772 = vsel %vm516, 1.0, 0.0
        %v773 = vsel %vm517, 1.0, 0.0
        %v774 = vsel %vm518, 1.0, 0.0
        %v775 = vsel %vm519, 1.0, 0.0
        %v776 = vsel %vm520, 1.0, 0.0
        %v777 = vsel %vm521, 1.0, 0.0
        %v778 = vsel %vm522, 1.0, 0.0
        %v779 = vsel %vm523, 1.0, 0.0
        %v780 = vsel %vm524, 1.0, 0.0
        %v781 = vsel %vm525, 1.0, 0.0
        %v782 = vsel %vm526, 1.0, 0.0
        %v783 = vsel %vm527, 1.0, 0.0
        %v784 = vsel %vm528, 1.0, 0.0
        %v785 = vsel %vm529, 1.0, 0.0
        %v786 = vsel %vm530, 1.0, 0.0
        %v787 = vsel %vm531, 1.0, 0.0
        %v788 = vsel %vm532, 1.0, 0.0
        %v789 = vsel %vm533, 1.0, 0.0
        %v790 = vsel %vm534, 1.0, 0.0
        %v791 = vsel %vm535, 1.0, 0.0
        %v792 = vsel %vm536, 1.0, 0.0
        %v793 = vsel %vm537, 1.0, 0.0
        %v794 = vsel %vm538, 1.0, 0.0
        %v795 = vsel %vm539, 1.0, 0.0
        %v796 = vsel %vm540, 1.0, 0.0
        %v797 = vsel %vm541, 1.0, 0.0
        %v798 = vsel %vm542, 1.0, 0.0
        %v799 = vsel %vm543, 1.0, 0.0
        %v800 = vsel %vm544, 1.0, 0.0
        %v801 = vsel %vm545, 1.0, 0.0
        %v802 = vsel %vm546, 1.0, 0.0
        %v803 = vsel %vm547, 1.0, 0.0
        %v804 = vsel %vm548, 1.0, 0.0
        %v805 = vsel %vm549, 1.0, 0.0
        %v806 = vsel %vm550, 1.0, 0.0
        %v807 = vsel %vm551, 1.0, 0.0
        %v808 = vsel %vm552, 1.0, 0.0
        %v809 = vsel %vm553, 1.0, 0.0
        %v810 = vsel %vm554, 1.0, 0.0
        %v811 = vsel %vm555, 1.0, 0.0
        %v812 = vsel %vm556, 1.0, 0.0
        %v813 = vsel %vm557, 1.0, 0.0
        %v814 = vsel %vm558, 1.0, 0.0
        %v815 = vsel %vm559, 1.0, 0.0
        %v816 = vsel %vm560, 1.0, 0.0
        %v817 = vsel %vm561, 1.0, 0.0
        %v818 = vsel %vm562, 1.0, 0.0
        %v819 = vsel %vm563, 1.0, 0.0
        %v820 = vsel %vm564, 1.0, 0.0
        %v821 = vsel %vm565, 1.0, 0.0
        %v822 = vsel %vm566, 1.0, 0.0
        %v823 = vsel %vm567, 1.0, 0.0
        %v824 = vsel %vm568, 1.0, 0.0
        %v825 = vsel %vm569, 1.0, 0.0
        %v826 = vsel %vm570, 1.0, 0.0
        %v827 = vsel %vm571, 1.0, 0.0
        %v828 = vsel %vm572, 1.0, 0.0
        %v829 = vsel %vm573, 1.0, 0.0
        %v830 = vsel %vm574, 1.0, 0.0
        %v831 = vsel %vm575, 1.0, 0.0
        %v832 = vsel %vm576, 1.0, 0.0
        %v833 = vsel %vm577, 1.0, 0.0
        %v834 = vsel %vm578, 1.0, 0.0
        %v835 = vsel %vm579, 1.0, 0.0
        %v836 = vsel %vm580, 1.0, 0.0
        %v837 = vsel %vm581, 1.0, 0.0
        %v838 = vsel %vm582, 1.0, 0.0
        %v839 = vsel %vm583, 1.0, 0.0
        %v840 = vsel %vm584, 1.0, 0.0
        %v841 = vsel %vm585, 1.0, 0.0
        %v842 = vsel %vm586, 1.0, 0.0
        %v843 = vsel %vm587, 1.0, 0.0
        %v844 = vsel %vm588, 1.0, 0.0
        %v845 = vsel %vm589, 1.0, 0.0
        %v846 = vsel %vm590, 1.0, 0.0
        %v847 = vsel %vm591, 1.0, 0.0
        %v848 = vsel %vm592, 1.0, 0.0
        %v849 = vsel %vm593, 1.0, 0.0
        %v850 = vsel %vm594, 1.0, 0.0
        %v851 = vsel %vm595, 1.0, 0.0
        %v852 = vsel %vm596, 1.0, 0.0
        %v853 = vsel %vm597, 1.0, 0.0
        %v854 = vsel %vm598, 1.0, 0.0
        %v855 = vsel %vm599, 1.0, 0.0
        %v856 = vsel %vm600, 1.0, 0.0
        %v857 = vsel %vm601, 1.0, 0.0
        %v858 = vsel %vm602, 1.0, 0.0
        %v859 = vsel %vm603, 1.0, 0.0
        %v860 = vsel %vm604, 1.0, 0.0
        %v861 = vsel %vm605, 1.0, 0.0
        %v862 = vsel %vm606, 1.0, 0.0
        %v863 = vsel %vm607, 1.0, 0.0
        %v864 = vsel %vm608, 1.0, 0.0
        %v865 = vsel %vm609, 1.0, 0.0
        %v866 = vsel %vm610, 1.0, 0.0
        %v867 = vsel %vm611, 1.0, 0.0
        %v868 = vsel %vm612, 1.0, 0.0
        %v869 = vsel %vm613, 1.0, 0.0
        %v870 = vsel %vm614, 1.0, 0.0
        %v871 = vsel %vm615, 1.0, 0.0
        %v872 = vsel %vm616, 1.0, 0.0
        %v873 = vsel %vm617, 1.0, 0.0
        %v874 = vsel %vm618, 1.0, 0.0
        %v875 = vsel %vm619, 1.0, 0.0
        %v876 = vsel %vm620, 1.0, 0.0
        %v877 = vsel %vm621, 1.0, 0.0
        %v878 = vsel %vm622, 1.0, 0.0
        %v879 = vsel %vm623, 1.0, 0.0
        %v880 = vsel %vm624, 1.0, 0.0
        %v881 = vsel %vm625, 1.0, 0.0
        %v882 = vsel %vm626, 1.0, 0.0
        %v883 = vsel %vm627, 1.0, 0.0
        %v884 = vsel %vm628, 1.0, 0.0
        %v885 = vsel %vm629, 1.0, 0.0
        %v886 = vsel %vm630, 1.0, 0.0
        %v887 = vsel %vm631, 1.0, 0.0
        %v888 = vsel %vm632, 1.0, 0.0
        %v889 = vsel %vm633, 1.0, 0.0
        %v890 = vsel %vm634, 1.0, 0.0
        %v891 = vsel %vm635, 1.0, 0.0
        %v892 = vsel %vm636, 1.0, 0.0
        %v893 = vsel %vm637, 1.0, 0.0
        %v894 = vsel %vm638, 1.0, 0.0
        %v895 = vsel %vm639, 1.0, 0.0
        %v896 = vsel %vm640, 1.0, 0.0
        %v897 = vsel %vm641, 1.0, 0.0
        %v898 = vsel %vm642, 1.0, 0.0
        %v899 = vsel %vm643, 1.0, 0.0
        %v900 = vsel %vm644, 1.0, 0.0
        %v901 = vsel %vm645, 1.0, 0.0
        %v902 = vsel %vm646, 1.0, 0.0
        %v903 = vsel %vm647, 1.0, 0.0
        %v904 = vsel %vm648, 1.0, 0.0
        %v905 = vsel %vm649, 1.0, 0.0
        %v906 = vsel %vm650, 1.0, 0.0
        %v907 = vsel %vm651, 1.0, 0.0
        %v908 = vsel %vm652, 1.0, 0.0
        %v909 = vsel %vm653, 1.0, 0.0
        %v910 = vsel %vm654, 1.0, 0.0
        %v911 = vsel %vm655, 1.0, 0.0
        %v912 = vsel %vm656, 1.0, 0.0
        %v913 = vsel %vm657, 1.0, 0.0
        %v914 = vsel %vm658, 1.0, 0.0
        %v915 = vsel %vm659, 1.0, 0.0
        %v916 = vsel %vm660, 1.0, 0.0
        %v917 = vsel %vm661, 1.0, 0.0
        %v918 = vsel %vm662, 1.0, 0.0
        %v919 = vsel %vm663, 1.0, 0.0
        %v920 = vsel %vm664, 1.0, 0.0
        %v921 = vsel %vm665, 1.0, 0.0
        %v922 = vsel %vm666, 1.0, 0.0
        %v923 = vsel %vm667, 1.0, 0.0
        %v924 = vsel %vm668, 1.0, 0.0
        %v925 = vsel %vm669, 1.0, 0.0
        %v926 = vsel %vm670, 1.0, 0.0
        %v927 = vsel %vm671, 1.0, 0.0
        %v928 = vsel %vm672, 1.0, 0.0
        %v929 = vsel %vm673, 1.0, 0.0
        %v930 = vsel %vm674, 1.0, 0.0
        %v931 = vsel %vm675, 1.0, 0.0
        %v932 = vsel %vm676, 1.0, 0.0
        %v933 = vsel %vm677, 1.0, 0.0
        %v934 = vsel %vm678, 1.0, 0.0
        %v935 = vsel %vm679, 1.0, 0.0
        %v936 = vsel %vm680, 1.0, 0.0
        %v937 = vsel %vm681, 1.0, 0.0
        %v938 = vsel %vm682, 1.0, 0.0
        %v939 = vsel %vm683, 1.0, 0.0
        %v940 = vsel %vm684, 1.0, 0.0
        %v941 = vsel %vm685, 1.0, 0.0
        %v942 = vsel %vm686, 1.0, 0.0
        %v943 = vsel %vm687, 1.0, 0.0
        %v944 = vsel %vm688, 1.0, 0.0
        %v945 = vsel %vm689, 1.0, 0.0
        %v946 = vsel %vm690, 1.0, 0.0
        %v947 = vsel %vm691, 1.0, 0.0
        %v948 = vsel %vm692, 1.0, 0.0
        %v949 = vsel %vm693, 1.0, 0.0
        %v950 = vsel %vm694, 1.0, 0.0
        %v951 = vsel %vm695, 1.0, 0.0
        %v952 = vsel %vm696, 1.0, 0.0
        %v953 = vsel %vm697, 1.0, 0.0
        %v954 = vsel %vm698, 1.0, 0.0
        %v955 = vsel %vm699, 1.0, 0.0
        %v956 = vsel %vm700, 1.0, 0.0
        %v957 = vsel %vm701, 1.0, 0.0
        %v958 = vsel %vm702, 1.0, 0.0
        %v959 = vsel %vm703, 1.0, 0.0
        %v960 = vsel %vm704, 1.0, 0.0
        %v961 = vsel %vm705, 1.0, 0.0
        %v962 = vsel %vm706, 1.0, 0.0
        %v963 = vsel %vm707, 1.0, 0.0
        %v964 = vsel %vm708, 1.0, 0.0
        %v965 = vsel %vm709, 1.0, 0.0
        %v966 = vsel %vm710, 1.0, 0.0
        %v967 = vsel %vm711, 1.0, 0.0
        %v968 = vsel %vm712, 1.0, 0.0
        %v969 = vsel %vm713, 1.0, 0.0
        %v970 = vsel %vm714, 1.0, 0.0
        %v971 = vsel %vm715, 1.0, 0.0
        %v972 = vsel %vm716, 1.0, 0.0
        %v973 = vsel %vm717, 1.0, 0.0
        %v974 = vsel %vm718, 1.0, 0.0
        %v975 = vsel %vm719, 1.0, 0.0
        %v976 = vsel %vm720, 1.0, 0.0
        %v977 = vsel %vm721, 1.0, 0.0
        %v978 = vsel %vm722, 1.0, 0.0
        %v979 = vsel %vm723, 1.0, 0.0
        %v980 = vsel %vm724, 1.0, 0.0
        %v981 = vsel %vm725, 1.0, 0.0
        %v982 = vsel %vm726, 1.0, 0.0
        %v983 = vsel %vm727, 1.0, 0.0
        %v984 = vsel %vm728, 1.0, 0.0
        %v985 = vsel %vm729, 1.0, 0.0
        %v986 = vsel %vm730, 1.0, 0.0
        %v987 = vsel %vm731, 1.0, 0.0
        %v988 = vsel %vm732, 1.0, 0.0
        %v989 = vsel %vm733, 1.0, 0.0
        %v990 = vsel %vm734, 1.0, 0.0
        %v991 = vsel %vm735, 1.0, 0.0
        %v992 = vsel %vm736, 1.0, 0.0
        %v993 = vsel %vm737, 1.0, 0.0
        %v994 = vsel %vm738, 1.0, 0.0
        %v995 = vsel %vm739, 1.0, 0.0
        %v996 = vsel %vm740, 1.0, 0.0
        %v997 = vsel %vm741, 1.0, 0.0
        %v998 = vsel %vm742, 1.0, 0.0
        %v999 = vsel %vm743, 1.0, 0.0
        %v1000 = vsel %vm744, 1.0, 0.0
        %v1001 = vsel %vm745, 1.0, 0.0
        %v1002 = vsel %vm746, 1.0, 0.0
        %v1003 = vsel %vm747, 1.0, 0.0
        %v1004 = vsel %vm748, 1.0, 0.0
        %v1005 = vsel %vm749, 1.0, 0.0
        %v1006 = vsel %vm750, 1.0, 0.0
        %v1007 = vsel %vm751, 1.0, 0.0
        %v1008 = vsel %vm752, 1.0, 0.0
        %v1009 = vsel %vm753, 1.0, 0.0
        %v1010 = vsel %vm754, 1.0, 0.0
        %v1011 = vsel %vm755, 1.0, 0.0
        %v1012 = vld [vmem:[#allocation5] sm:$0xff]
        %v1013 = vld [vmem:[#allocation5 + $0x8] sm:$0xff]
        %v1014 = vld [vmem:[#allocation5 + $0x10] sm:$0xff]
        %v1015 = vld [vmem:[#allocation5 + $0x18] sm:$0xff]
        %vm1016 = vcmask 523264
        %v1018 = vsel %vm1016, %v1012, 0
        %v1021 = vsel %vm1016, %v1013, 0
        %v1024 = vsel %vm1016, %v1014, 0
        %v1027 = vsel %vm1016, %v1015, 0
        %1029 = vmatprep.subr.mxu0 0.0
        %1030 = vmatpush1.msra.mxu0 0.0
        %1031 = vmatprep.subr.mxu0 0.0
        %1032 = vmatpush1.msra.mxu0 0.0
        %1033 = vmatprep.subr.mxu0 0.0
        %1034 = vmatpush1.msra.mxu0 0.0
        %1035 = vmatprep.subr.mxu0 0.0
        %1036 = vmatpush1.msra.mxu0 0.0
        %1037 = vmatprep.subr.mxu0 0.0
        %1038 = vmatpush1.msra.mxu0 0.0
        %1039 = vmatprep.subr.mxu0 0.0
        %1040 = vmatpush1.msra.mxu0 0.0
        %1041 = vmatprep.subr.mxu0 0.0
        %1042 = vmatpush1.msra.mxu0 0.0
        %1043 = vmatprep.subr.mxu0 0.0
        %1044 = vmatpush1.msra.mxu0 0.0
        %1045 = vmatprep.subr.mxu0 %v981
        %1046 = vmatpush1.msra.mxu0 %v980
        %1047 = vmatprep.subr.mxu0 %v949
        %1048 = vmatpush1.msra.mxu0 %v948
        %1049 = vmatprep.subr.mxu0 %v917
        %1050 = vmatpush1.msra.mxu0 %v916
        %1051 = vmatprep.subr.mxu0 %v885
        %1052 = vmatpush1.msra.mxu0 %v884
        %1053 = vmatprep.subr.mxu0 %v853
        %1054 = vmatpush1.msra.mxu0 %v852
        %1055 = vmatprep.subr.mxu0 %v821
        %1056 = vmatpush1.msra.mxu0 %v820
        %1057 = vmatprep.subr.mxu0 %v789
        %1058 = vmatpush1.msra.mxu0 %v788
        %1059 = vmatprep.subr.mxu0 %v757
        %1060 = vmatpush1.msra.mxu0 %v756
        %1061 = vmatprep.subr.mxu0 0.0
        %1062 = vmatpush2.msra.mxu0 0.0
        %1063 = vmatprep.subr.mxu0 0.0
        %1064 = vmatpush2.msra.mxu0 0.0
        %1065 = vmatprep.subr.mxu0 0.0
        %1066 = vmatpush2.msra.mxu0 0.0
        %1067 = vmatprep.subr.mxu0 0.0
        %1068 = vmatpush2.msra.mxu0 0.0
        %1069 = vmatprep.subr.mxu0 0.0
        %1070 = vmatpush2.msra.mxu0 0.0
        %1071 = vmatprep.subr.mxu0 0.0
        %1072 = vmatpush2.msra.mxu0 0.0
        %1073 = vmatprep.subr.mxu0 0.0
        %1074 = vmatpush2.msra.mxu0 0.0
        %1075 = vmatprep.subr.mxu0 0.0
        %1076 = vmatpush2.msra.mxu0 0.0
        %1077 = vmatprep.subr.mxu0 0.0
        %1078 = vmatpush2.msra.mxu0 0.0
        %1079 = vmatprep.subr.mxu0 0.0
        %1080 = vmatpush2.msra.mxu0 0.0
        %1081 = vmatprep.subr.mxu0 0.0
        %1082 = vmatpush2.msra.mxu0 0.0
        %1083 = vmatprep.subr.mxu0 0.0
        %1084 = vmatpush2.msra.mxu0 0.0
        %1085 = vmatprep.subr.mxu0 0.0
        %1086 = vmatpush2.msra.mxu0 0.0
        %1087 = vmatprep.subr.mxu0 0.0
        %1088 = vmatpush2.msra.mxu0 0.0
        %1089 = vmatprep.subr.mxu0 0.0
        %1090 = vmatpush2.msra.mxu0 0.0
        %1091 = vmatprep.subr.mxu0 0.0
        %1092 = vmatpush2.msra.mxu0 0.0
        %1093 = vmatprep.mubr.f32.mxu0 0.0
        %1094 = vmatmul.mubr.f32.gmra.mxu0 %v1018
        %v1095 = vpop.f32.mrf.mxu0
        %v1096 = vadd.f32 0.0, %v1095
        %v1097 = vpop.f32.mrf.mxu0
        %v1098 = vadd.f32 0.0, %v1097
        %1099 = vmatprep.mubr.f32.mxu0 0.0
        %1100 = vmatmul.mubr.f32.gmra.mxu0 %v1021
        %v1101 = vpop.f32.mrf.mxu0
        %v1102 = vadd.f32 0.0, %v1101
        %v1103 = vpop.f32.mrf.mxu0
        %v1104 = vadd.f32 0.0, %v1103
        %1105 = vmatprep.mubr.f32.mxu0 0.0
        %1106 = vmatmul.mubr.f32.gmra.mxu0 %v1024
        %v1107 = vpop.f32.mrf.mxu0
        %v1108 = vadd.f32 0.0, %v1107
        %v1109 = vpop.f32.mrf.mxu0
        %v1110 = vadd.f32 0.0, %v1109
        %1111 = vmatprep.mubr.f32.mxu0 0.0
        %1112 = vmatmul.mubr.f32.gmra.mxu0 %v1027
        %v1113 = vpop.f32.mrf.mxu0
        %v1114 = vadd.f32 0.0, %v1113
        %v1115 = vpop.f32.mrf.mxu0
        %v1116 = vadd.f32 0.0, %v1115
        %1117 = vdwg.mxu0
        %1118 = vmatprep.subr.mxu0 0.0
        %1119 = vmatpush1.msra.mxu0 0.0
        %1120 = vmatprep.subr.mxu0 0.0
        %1121 = vmatpush1.msra.mxu0 0.0
        %1122 = vmatprep.subr.mxu0 0.0
        %1123 = vmatpush1.msra.mxu0 0.0
        %1124 = vmatprep.subr.mxu0 0.0
        %1125 = vmatpush1.msra.mxu0 0.0
        %1126 = vmatprep.subr.mxu0 0.0
        %1127 = vmatpush1.msra.mxu0 0.0
        %1128 = vmatprep.subr.mxu0 0.0
        %1129 = vmatpush1.msra.mxu0 0.0
        %1130 = vmatprep.subr.mxu0 0.0
        %1131 = vmatpush1.msra.mxu0 0.0
        %1132 = vmatprep.subr.mxu0 0.0
        %1133 = vmatpush1.msra.mxu0 0.0
        %1134 = vmatprep.subr.mxu0 %v983
        %1135 = vmatpush1.msra.mxu0 %v982
        %1136 = vmatprep.subr.mxu0 %v951
        %1137 = vmatpush1.msra.mxu0 %v950
        %1138 = vmatprep.subr.mxu0 %v919
        %1139 = vmatpush1.msra.mxu0 %v918
        %1140 = vmatprep.subr.mxu0 %v887
        %1141 = vmatpush1.msra.mxu0 %v886
        %1142 = vmatprep.subr.mxu0 %v855
        %1143 = vmatpush1.msra.mxu0 %v854
        %1144 = vmatprep.subr.mxu0 %v823
        %1145 = vmatpush1.msra.mxu0 %v822
        %1146 = vmatprep.subr.mxu0 %v791
        %1147 = vmatpush1.msra.mxu0 %v790
        %1148 = vmatprep.subr.mxu0 %v759
        %1149 = vmatpush1.msra.mxu0 %v758
        %1150 = vmatprep.subr.mxu0 0.0
        %1151 = vmatpush2.msra.mxu0 0.0
        %1152 = vmatprep.subr.mxu0 0.0
        %1153 = vmatpush2.msra.mxu0 0.0
        %1154 = vmatprep.subr.mxu0 0.0
        %1155 = vmatpush2.msra.mxu0 0.0
        %1156 = vmatprep.subr.mxu0 0.0
        %1157 = vmatpush2.msra.mxu0 0.0
        %1158 = vmatprep.subr.mxu0 0.0
        %1159 = vmatpush2.msra.mxu0 0.0
        %1160 = vmatprep.subr.mxu0 0.0
        %1161 = vmatpush2.msra.mxu0 0.0
        %1162 = vmatprep.subr.mxu0 0.0
        %1163 = vmatpush2.msra.mxu0 0.0
        %1164 = vmatprep.subr.mxu0 0.0
        %1165 = vmatpush2.msra.mxu0 0.0
        %1166 = vmatprep.subr.mxu0 0.0
        %1167 = vmatpush2.msra.mxu0 0.0
        %1168 = vmatprep.subr.mxu0 0.0
        %1169 = vmatpush2.msra.mxu0 0.0
        %1170 = vmatprep.subr.mxu0 0.0
        %1171 = vmatpush2.msra.mxu0 0.0
        %1172 = vmatprep.subr.mxu0 0.0
        %1173 = vmatpush2.msra.mxu0 0.0
        %1174 = vmatprep.subr.mxu0 0.0
        %1175 = vmatpush2.msra.mxu0 0.0
        %1176 = vmatprep.subr.mxu0 0.0
        %1177 = vmatpush2.msra.mxu0 0.0
        %1178 = vmatprep.subr.mxu0 0.0
        %1179 = vmatpush2.msra.mxu0 0.0
        %1180 = vmatprep.subr.mxu0 0.0
        %1181 = vmatpush2.msra.mxu0 0.0
        %1182 = vmatprep.mubr.f32.mxu0 0.0
        %1183 = vmatmul.mubr.f32.gmra.mxu0 %v1018
        %v1184 = vpop.f32.mrf.mxu0
        %v1185 = vadd.f32 0.0, %v1184
        %v1186 = vpop.f32.mrf.mxu0
        %v1187 = vadd.f32 0.0, %v1186
        %1188 = vmatprep.mubr.f32.mxu0 0.0
        %1189 = vmatmul.mubr.f32.gmra.mxu0 %v1021
        %v1190 = vpop.f32.mrf.mxu0
        %v1191 = vadd.f32 0.0, %v1190
        %v1192 = vpop.f32.mrf.mxu0
        %v1193 = vadd.f32 0.0, %v1192
        %1194 = vmatprep.mubr.f32.mxu0 0.0
        %1195 = vmatmul.mubr.f32.gmra.mxu0 %v1024
        %v1196 = vpop.f32.mrf.mxu0
        %v1197 = vadd.f32 0.0, %v1196
        %v1198 = vpop.f32.mrf.mxu0
        %v1199 = vadd.f32 0.0, %v1198
        %1200 = vmatprep.mubr.f32.mxu0 0.0
        %1201 = vmatmul.mubr.f32.gmra.mxu0 %v1027
        %v1202 = vpop.f32.mrf.mxu0
        %v1203 = vadd.f32 0.0, %v1202
        %v1204 = vpop.f32.mrf.mxu0
        %v1205 = vadd.f32 0.0, %v1204
        %1206 = vdwg.mxu0
        %1207 = vmatprep.subr.mxu0 0.0
        %1208 = vmatpush1.msra.mxu0 0.0
        %1209 = vmatprep.subr.mxu0 0.0
        %1210 = vmatpush1.msra.mxu0 0.0
        %1211 = vmatprep.subr.mxu0 0.0
        %1212 = vmatpush1.msra.mxu0 0.0
        %1213 = vmatprep.subr.mxu0 0.0
        %1214 = vmatpush1.msra.mxu0 0.0
        %1215 = vmatprep.subr.mxu0 0.0
        %1216 = vmatpush1.msra.mxu0 0.0
        %1217 = vmatprep.subr.mxu0 0.0
        %1218 = vmatpush1.msra.mxu0 0.0
        %1219 = vmatprep.subr.mxu0 0.0
        %1220 = vmatpush1.msra.mxu0 0.0
        %1221 = vmatprep.subr.mxu0 0.0
        %1222 = vmatpush1.msra.mxu0 0.0
        %1223 = vmatprep.subr.mxu0 %v985
        %1224 = vmatpush1.msra.mxu0 %v984
        %1225 = vmatprep.subr.mxu0 %v953
        %1226 = vmatpush1.msra.mxu0 %v952
        %1227 = vmatprep.subr.mxu0 %v921
        %1228 = vmatpush1.msra.mxu0 %v920
        %1229 = vmatprep.subr.mxu0 %v889
        %1230 = vmatpush1.msra.mxu0 %v888
        %1231 = vmatprep.subr.mxu0 %v857
        %1232 = vmatpush1.msra.mxu0 %v856
        %1233 = vmatprep.subr.mxu0 %v825
        %1234 = vmatpush1.msra.mxu0 %v824
        %1235 = vmatprep.subr.mxu0 %v793
        %1236 = vmatpush1.msra.mxu0 %v792
        %1237 = vmatprep.subr.mxu0 %v761
        %1238 = vmatpush1.msra.mxu0 %v760
        %1239 = vmatprep.subr.mxu0 0.0
        %1240 = vmatpush2.msra.mxu0 0.0
        %1241 = vmatprep.subr.mxu0 0.0
        %1242 = vmatpush2.msra.mxu0 0.0
        %1243 = vmatprep.subr.mxu0 0.0
        %1244 = vmatpush2.msra.mxu0 0.0
        %1245 = vmatprep.subr.mxu0 0.0
        %1246 = vmatpush2.msra.mxu0 0.0
        %1247 = vmatprep.subr.mxu0 0.0
        %1248 = vmatpush2.msra.mxu0 0.0
        %1249 = vmatprep.subr.mxu0 0.0
        %1250 = vmatpush2.msra.mxu0 0.0
        %1251 = vmatprep.subr.mxu0 0.0
        %1252 = vmatpush2.msra.mxu0 0.0
        %1253 = vmatprep.subr.mxu0 0.0
        %1254 = vmatpush2.msra.mxu0 0.0
        %1255 = vmatprep.subr.mxu0 0.0
        %1256 = vmatpush2.msra.mxu0 0.0
        %1257 = vmatprep.subr.mxu0 0.0
        %1258 = vmatpush2.msra.mxu0 0.0
        %1259 = vmatprep.subr.mxu0 0.0
        %1260 = vmatpush2.msra.mxu0 0.0
        %1261 = vmatprep.subr.mxu0 0.0
        %1262 = vmatpush2.msra.mxu0 0.0
        %1263 = vmatprep.subr.mxu0 0.0
        %1264 = vmatpush2.msra.mxu0 0.0
        %1265 = vmatprep.subr.mxu0 0.0
        %1266 = vmatpush2.msra.mxu0 0.0
        %1267 = vmatprep.subr.mxu0 0.0
        %1268 = vmatpush2.msra.mxu0 0.0
        %1269 = vmatprep.subr.mxu0 0.0
        %1270 = vmatpush2.msra.mxu0 0.0
        %1271 = vmatprep.mubr.f32.mxu0 0.0
        %1272 = vmatmul.mubr.f32.gmra.mxu0 %v1018
        %v1273 = vpop.f32.mrf.mxu0
        %v1274 = vadd.f32 0.0, %v1273
        %v1275 = vpop.f32.mrf.mxu0
        %v1276 = vadd.f32 0.0, %v1275
        %1277 = vmatprep.mubr.f32.mxu0 0.0
        %1278 = vmatmul.mubr.f32.gmra.mxu0 %v1021
        %v1279 = vpop.f32.mrf.mxu0
        %v1280 = vadd.f32 0.0, %v1279
        %v1281 = vpop.f32.mrf.mxu0
        %v1282 = vadd.f32 0.0, %v1281
        %1283 = vmatprep.mubr.f32.mxu0 0.0
        %1284 = vmatmul.mubr.f32.gmra.mxu0 %v1024
        %v1285 = vpop.f32.mrf.mxu0
        %v1286 = vadd.f32 0.0, %v1285
        %v1287 = vpop.f32.mrf.mxu0
        %v1288 = vadd.f32 0.0, %v1287
        %1289 = vmatprep.mubr.f32.mxu0 0.0
        %1290 = vmatmul.mubr.f32.gmra.mxu0 %v1027
        %v1291 = vpop.f32.mrf.mxu0
        %v1292 = vadd.f32 0.0, %v1291
        %v1293 = vpop.f32.mrf.mxu0
        %v1294 = vadd.f32 0.0, %v1293
        %1295 = vdwg.mxu0
        %1296 = vmatprep.subr.mxu0 0.0
        %1297 = vmatpush1.msra.mxu0 0.0
        %1298 = vmatprep.subr.mxu0 0.0
        %1299 = vmatpush1.msra.mxu0 0.0
        %1300 = vmatprep.subr.mxu0 0.0
        %1301 = vmatpush1.msra.mxu0 0.0
        %1302 = vmatprep.subr.mxu0 0.0
        %1303 = vmatpush1.msra.mxu0 0.0
        %1304 = vmatprep.subr.mxu0 0.0
        %1305 = vmatpush1.msra.mxu0 0.0
        %1306 = vmatprep.subr.mxu0 0.0
        %1307 = vmatpush1.msra.mxu0 0.0
        %1308 = vmatprep.subr.mxu0 0.0
        %1309 = vmatpush1.msra.mxu0 0.0
        %1310 = vmatprep.subr.mxu0 0.0
        %1311 = vmatpush1.msra.mxu0 0.0
        %1312 = vmatprep.subr.mxu0 %v987
        %1313 = vmatpush1.msra.mxu0 %v986
        %1314 = vmatprep.subr.mxu0 %v955
        %1315 = vmatpush1.msra.mxu0 %v954
        %1316 = vmatprep.subr.mxu0 %v923
        %1317 = vmatpush1.msra.mxu0 %v922
        %1318 = vmatprep.subr.mxu0 %v891
        %1319 = vmatpush1.msra.mxu0 %v890
        %1320 = vmatprep.subr.mxu0 %v859
        %1321 = vmatpush1.msra.mxu0 %v858
        %1322 = vmatprep.subr.mxu0 %v827
        %1323 = vmatpush1.msra.mxu0 %v826
        %1324 = vmatprep.subr.mxu0 %v795
        %1325 = vmatpush1.msra.mxu0 %v794
        %1326 = vmatprep.subr.mxu0 %v763
        %1327 = vmatpush1.msra.mxu0 %v762
        %1328 = vmatprep.subr.mxu0 0.0
        %1329 = vmatpush2.msra.mxu0 0.0
        %1330 = vmatprep.subr.mxu0 0.0
        %1331 = vmatpush2.msra.mxu0 0.0
        %1332 = vmatprep.subr.mxu0 0.0
        %1333 = vmatpush2.msra.mxu0 0.0
        %1334 = vmatprep.subr.mxu0 0.0
        %1335 = vmatpush2.msra.mxu0 0.0
        %1336 = vmatprep.subr.mxu0 0.0
        %1337 = vmatpush2.msra.mxu0 0.0
        %1338 = vmatprep.subr.mxu0 0.0
        %1339 = vmatpush2.msra.mxu0 0.0
        %1340 = vmatprep.subr.mxu0 0.0
        %1341 = vmatpush2.msra.mxu0 0.0
        %1342 = vmatprep.subr.mxu0 0.0
        %1343 = vmatpush2.msra.mxu0 0.0
        %1344 = vmatprep.subr.mxu0 0.0
        %1345 = vmatpush2.msra.mxu0 0.0
        %1346 = vmatprep.subr.mxu0 0.0
        %1347 = vmatpush2.msra.mxu0 0.0
        %1348 = vmatprep.subr.mxu0 0.0
        %1349 = vmatpush2.msra.mxu0 0.0
        %1350 = vmatprep.subr.mxu0 0.0
        %1351 = vmatpush2.msra.mxu0 0.0
        %1352 = vmatprep.subr.mxu0 0.0
        %1353 = vmatpush2.msra.mxu0 0.0
        %1354 = vmatprep.subr.mxu0 0.0
        %1355 = vmatpush2.msra.mxu0 0.0
        %1356 = vmatprep.subr.mxu0 0.0
        %1357 = vmatpush2.msra.mxu0 0.0
        %1358 = vmatprep.subr.mxu0 0.0
        %1359 = vmatpush2.msra.mxu0 0.0
        %1360 = vmatprep.mubr.f32.mxu0 0.0
        %1361 = vmatmul.mubr.f32.gmra.mxu0 %v1018
        %v1362 = vpop.f32.mrf.mxu0
        %v1363 = vadd.f32 0.0, %v1362
        %v1364 = vpop.f32.mrf.mxu0
        %v1365 = vadd.f32 0.0, %v1364
        %1366 = vmatprep.mubr.f32.mxu0 0.0
        %1367 = vmatmul.mubr.f32.gmra.mxu0 %v1021
        %v1368 = vpop.f32.mrf.mxu0
        %v1369 = vadd.f32 0.0, %v1368
        %v1370 = vpop.f32.mrf.mxu0
        %v1371 = vadd.f32 0.0, %v1370
        %1372 = vmatprep.mubr.f32.mxu0 0.0
        %1373 = vmatmul.mubr.f32.gmra.mxu0 %v1024
        %v1374 = vpop.f32.mrf.mxu0
        %v1375 = vadd.f32 0.0, %v1374
        %v1376 = vpop.f32.mrf.mxu0
        %v1377 = vadd.f32 0.0, %v1376
        %1378 = vmatprep.mubr.f32.mxu0 0.0
        %1379 = vmatmul.mubr.f32.gmra.mxu0 %v1027
        %v1380 = vpop.f32.mrf.mxu0
        %v1381 = vadd.f32 0.0, %v1380
        %v1382 = vpop.f32.mrf.mxu0
        %v1383 = vadd.f32 0.0, %v1382
        %1384 = vdwg.mxu0
        %1385 = vmatprep.subr.mxu0 0.0
        %1386 = vmatpush1.msra.mxu0 0.0
        %1387 = vmatprep.subr.mxu0 0.0
        %1388 = vmatpush1.msra.mxu0 0.0
        %1389 = vmatprep.subr.mxu0 0.0
        %1390 = vmatpush1.msra.mxu0 0.0
        %1391 = vmatprep.subr.mxu0 0.0
        %1392 = vmatpush1.msra.mxu0 0.0
        %1393 = vmatprep.subr.mxu0 0.0
        %1394 = vmatpush1.msra.mxu0 0.0
        %1395 = vmatprep.subr.mxu0 0.0
        %1396 = vmatpush1.msra.mxu0 0.0
        %1397 = vmatprep.subr.mxu0 0.0
        %1398 = vmatpush1.msra.mxu0 0.0
        %1399 = vmatprep.subr.mxu0 0.0
        %1400 = vmatpush1.msra.mxu0 0.0
        %1401 = vmatprep.subr.mxu0 %v989
        %1402 = vmatpush1.msra.mxu0 %v988
        %1403 = vmatprep.subr.mxu0 %v957
        %1404 = vmatpush1.msra.mxu0 %v956
        %1405 = vmatprep.subr.mxu0 %v925
        %1406 = vmatpush1.msra.mxu0 %v924
        %1407 = vmatprep.subr.mxu0 %v893
        %1408 = vmatpush1.msra.mxu0 %v892
        %1409 = vmatprep.subr.mxu0 %v861
        %1410 = vmatpush1.msra.mxu0 %v860
        %1411 = vmatprep.subr.mxu0 %v829
        %1412 = vmatpush1.msra.mxu0 %v828
        %1413 = vmatprep.subr.mxu0 %v797
        %1414 = vmatpush1.msra.mxu0 %v796
        %1415 = vmatprep.subr.mxu0 %v765
        %1416 = vmatpush1.msra.mxu0 %v764
        %1417 = vmatprep.subr.mxu0 0.0
        %1418 = vmatpush2.msra.mxu0 0.0
        %1419 = vmatprep.subr.mxu0 0.0
        %1420 = vmatpush2.msra.mxu0 0.0
        %1421 = vmatprep.subr.mxu0 0.0
        %1422 = vmatpush2.msra.mxu0 0.0
        %1423 = vmatprep.subr.mxu0 0.0
        %1424 = vmatpush2.msra.mxu0 0.0
        %1425 = vmatprep.subr.mxu0 0.0
        %1426 = vmatpush2.msra.mxu0 0.0
        %1427 = vmatprep.subr.mxu0 0.0
        %1428 = vmatpush2.msra.mxu0 0.0
        %1429 = vmatprep.subr.mxu0 0.0
        %1430 = vmatpush2.msra.mxu0 0.0
        %1431 = vmatprep.subr.mxu0 0.0
        %1432 = vmatpush2.msra.mxu0 0.0
        %1433 = vmatprep.subr.mxu0 0.0
        %1434 = vmatpush2.msra.mxu0 0.0
        %1435 = vmatprep.subr.mxu0 0.0
        %1436 = vmatpush2.msra.mxu0 0.0
        %1437 = vmatprep.subr.mxu0 0.0
        %1438 = vmatpush2.msra.mxu0 0.0
        %1439 = vmatprep.subr.mxu0 0.0
        %1440 = vmatpush2.msra.mxu0 0.0
        %1441 = vmatprep.subr.mxu0 0.0
        %1442 = vmatpush2.msra.mxu0 0.0
        %1443 = vmatprep.subr.mxu0 0.0
        %1444 = vmatpush2.msra.mxu0 0.0
        %1445 = vmatprep.subr.mxu0 0.0
        %1446 = vmatpush2.msra.mxu0 0.0
        %1447 = vmatprep.subr.mxu0 0.0
        %1448 = vmatpush2.msra.mxu0 0.0
        %1449 = vmatprep.mubr.f32.mxu0 0.0
        %1450 = vmatmul.mubr.f32.gmra.mxu0 %v1018
        %v1451 = vpop.f32.mrf.mxu0
        %v1452 = vadd.f32 0.0, %v1451
        %v1453 = vpop.f32.mrf.mxu0
        %v1454 = vadd.f32 0.0, %v1453
        %1455 = vmatprep.mubr.f32.mxu0 0.0
        %1456 = vmatmul.mubr.f32.gmra.mxu0 %v1021
        %v1457 = vpop.f32.mrf.mxu0
        %v1458 = vadd.f32 0.0, %v1457
        %v1459 = vpop.f32.mrf.mxu0
        %v1460 = vadd.f32 0.0, %v1459
        %1461 = vmatprep.mubr.f32.mxu0 0.0
        %1462 = vmatmul.mubr.f32.gmra.mxu0 %v1024
        %v1463 = vpop.f32.mrf.mxu0
        %v1464 = vadd.f32 0.0, %v1463
        %v1465 = vpop.f32.mrf.mxu0
        %v1466 = vadd.f32 0.0, %v1465
        %1467 = vmatprep.mubr.f32.mxu0 0.0
        %1468 = vmatmul.mubr.f32.gmra.mxu0 %v1027
        %v1469 = vpop.f32.mrf.mxu0
        %v1470 = vadd.f32 0.0, %v1469
        %v1471 = vpop.f32.mrf.mxu0
        %v1472 = vadd.f32 0.0, %v1471
        %1473 = vdwg.mxu0
        %1474 = vmatprep.subr.mxu0 0.0
        %1475 = vmatpush1.msra.mxu0 0.0
        %1476 = vmatprep.subr.mxu0 0.0
        %1477 = vmatpush1.msra.mxu0 0.0
        %1478 = vmatprep.subr.mxu0 0.0
        %1479 = vmatpush1.msra.mxu0 0.0
        %1480 = vmatprep.subr.mxu0 0.0
        %1481 = vmatpush1.msra.mxu0 0.0
        %1482 = vmatprep.subr.mxu0 0.0
        %1483 = vmatpush1.msra.mxu0 0.0
        %1484 = vmatprep.subr.mxu0 0.0
        %1485 = vmatpush1.msra.mxu0 0.0
        %1486 = vmatprep.subr.mxu0 0.0
        %1487 = vmatpush1.msra.mxu0 0.0
        %1488 = vmatprep.subr.mxu0 0.0
        %1489 = vmatpush1.msra.mxu0 0.0
        %1490 = vmatprep.subr.mxu0 %v991
        %1491 = vmatpush1.msra.mxu0 %v990
        %1492 = vmatprep.subr.mxu0 %v959
        %1493 = vmatpush1.msra.mxu0 %v958
        %1494 = vmatprep.subr.mxu0 %v927
        %1495 = vmatpush1.msra.mxu0 %v926
        %1496 = vmatprep.subr.mxu0 %v895
        %1497 = vmatpush1.msra.mxu0 %v894
        %1498 = vmatprep.subr.mxu0 %v863
        %1499 = vmatpush1.msra.mxu0 %v862
        %1500 = vmatprep.subr.mxu0 %v831
        %1501 = vmatpush1.msra.mxu0 %v830
        %1502 = vmatprep.subr.mxu0 %v799
        %1503 = vmatpush1.msra.mxu0 %v798
        %1504 = vmatprep.subr.mxu0 %v767
        %1505 = vmatpush1.msra.mxu0 %v766
        %1506 = vmatprep.subr.mxu0 0.0
        %1507 = vmatpush2.msra.mxu0 0.0
        %1508 = vmatprep.subr.mxu0 0.0
        %1509 = vmatpush2.msra.mxu0 0.0
        %1510 = vmatprep.subr.mxu0 0.0
        %1511 = vmatpush2.msra.mxu0 0.0
        %1512 = vmatprep.subr.mxu0 0.0
        %1513 = vmatpush2.msra.mxu0 0.0
        %1514 = vmatprep.subr.mxu0 0.0
        %1515 = vmatpush2.msra.mxu0 0.0
        %1516 = vmatprep.subr.mxu0 0.0
        %1517 = vmatpush2.msra.mxu0 0.0
        %1518 = vmatprep.subr.mxu0 0.0
        %1519 = vmatpush2.msra.mxu0 0.0
        %1520 = vmatprep.subr.mxu0 0.0
        %1521 = vmatpush2.msra.mxu0 0.0
        %1522 = vmatprep.subr.mxu0 0.0
        %1523 = vmatpush2.msra.mxu0 0.0
        %1524 = vmatprep.subr.mxu0 0.0
        %1525 = vmatpush2.msra.mxu0 0.0
        %1526 = vmatprep.subr.mxu0 0.0
        %1527 = vmatpush2.msra.mxu0 0.0
        %1528 = vmatprep.subr.mxu0 0.0
        %1529 = vmatpush2.msra.mxu0 0.0
        %1530 = vmatprep.subr.mxu0 0.0
        %1531 = vmatpush2.msra.mxu0 0.0
        %1532 = vmatprep.subr.mxu0 0.0
        %1533 = vmatpush2.msra.mxu0 0.0
        %1534 = vmatprep.subr.mxu0 0.0
        %1535 = vmatpush2.msra.mxu0 0.0
        %1536 = vmatprep.subr.mxu0 0.0
        %1537 = vmatpush2.msra.mxu0 0.0
        %1538 = vmatprep.mubr.f32.mxu0 0.0
        %1539 = vmatmul.mubr.f32.gmra.mxu0 %v1018
        %v1540 = vpop.f32.mrf.mxu0
        %v1541 = vadd.f32 0.0, %v1540
        %v1542 = vpop.f32.mrf.mxu0
        %v1543 = vadd.f32 0.0, %v1542
        %1544 = vmatprep.mubr.f32.mxu0 0.0
        %1545 = vmatmul.mubr.f32.gmra.mxu0 %v1021
        %v1546 = vpop.f32.mrf.mxu0
        %v1547 = vadd.f32 0.0, %v1546
        %v1548 = vpop.f32.mrf.mxu0
        %v1549 = vadd.f32 0.0, %v1548
        %1550 = vmatprep.mubr.f32.mxu0 0.0
        %1551 = vmatmul.mubr.f32.gmra.mxu0 %v1024
        %v1552 = vpop.f32.mrf.mxu0
        %v1553 = vadd.f32 0.0, %v1552
        %v1554 = vpop.f32.mrf.mxu0
        %v1555 = vadd.f32 0.0, %v1554
        %1556 = vmatprep.mubr.f32.mxu0 0.0
        %1557 = vmatmul.mubr.f32.gmra.mxu0 %v1027
        %v1558 = vpop.f32.mrf.mxu0
        %v1559 = vadd.f32 0.0, %v1558
        %v1560 = vpop.f32.mrf.mxu0
        %v1561 = vadd.f32 0.0, %v1560
        %1562 = vdwg.mxu0
        %1563 = vmatprep.subr.mxu0 0.0
        %1564 = vmatpush1.msra.mxu0 0.0
        %1565 = vmatprep.subr.mxu0 0.0
        %1566 = vmatpush1.msra.mxu0 0.0
        %1567 = vmatprep.subr.mxu0 0.0
        %1568 = vmatpush1.msra.mxu0 0.0
        %1569 = vmatprep.subr.mxu0 0.0
        %1570 = vmatpush1.msra.mxu0 0.0
        %1571 = vmatprep.subr.mxu0 0.0
        %1572 = vmatpush1.msra.mxu0 0.0
        %1573 = vmatprep.subr.mxu0 0.0
        %1574 = vmatpush1.msra.mxu0 0.0
        %1575 = vmatprep.subr.mxu0 0.0
        %1576 = vmatpush1.msra.mxu0 0.0
        %1577 = vmatprep.subr.mxu0 0.0
        %1578 = vmatpush1.msra.mxu0 0.0
        %1579 = vmatprep.subr.mxu0 %v993
        %1580 = vmatpush1.msra.mxu0 %v992
        %1581 = vmatprep.subr.mxu0 %v961
        %1582 = vmatpush1.msra.mxu0 %v960
        %1583 = vmatprep.subr.mxu0 %v929
        %1584 = vmatpush1.msra.mxu0 %v928
        %1585 = vmatprep.subr.mxu0 %v897
        %1586 = vmatpush1.msra.mxu0 %v896
        %1587 = vmatprep.subr.mxu0 %v865
        %1588 = vmatpush1.msra.mxu0 %v864
        %1589 = vmatprep.subr.mxu0 %v833
        %1590 = vmatpush1.msra.mxu0 %v832
        %1591 = vmatprep.subr.mxu0 %v801
        %1592 = vmatpush1.msra.mxu0 %v800
        %1593 = vmatprep.subr.mxu0 %v769
        %1594 = vmatpush1.msra.mxu0 %v768
        %1595 = vmatprep.subr.mxu0 0.0
        %1596 = vmatpush2.msra.mxu0 0.0
        %1597 = vmatprep.subr.mxu0 0.0
        %1598 = vmatpush2.msra.mxu0 0.0
        %1599 = vmatprep.subr.mxu0 0.0
        %1600 = vmatpush2.msra.mxu0 0.0
        %1601 = vmatprep.subr.mxu0 0.0
        %1602 = vmatpush2.msra.mxu0 0.0
        %1603 = vmatprep.subr.mxu0 0.0
        %1604 = vmatpush2.msra.mxu0 0.0
        %1605 = vmatprep.subr.mxu0 0.0
        %1606 = vmatpush2.msra.mxu0 0.0
        %1607 = vmatprep.subr.mxu0 0.0
        %1608 = vmatpush2.msra.mxu0 0.0
        %1609 = vmatprep.subr.mxu0 0.0
        %1610 = vmatpush2.msra.mxu0 0.0
        %1611 = vmatprep.subr.mxu0 0.0
        %1612 = vmatpush2.msra.mxu0 0.0
        %1613 = vmatprep.subr.mxu0 0.0
        %1614 = vmatpush2.msra.mxu0 0.0
        %1615 = vmatprep.subr.mxu0 0.0
        %1616 = vmatpush2.msra.mxu0 0.0
        %1617 = vmatprep.subr.mxu0 0.0
        %1618 = vmatpush2.msra.mxu0 0.0
        %1619 = vmatprep.subr.mxu0 0.0
        %1620 = vmatpush2.msra.mxu0 0.0
        %1621 = vmatprep.subr.mxu0 0.0
        %1622 = vmatpush2.msra.mxu0 0.0
        %1623 = vmatprep.subr.mxu0 0.0
        %1624 = vmatpush2.msra.mxu0 0.0
        %1625 = vmatprep.subr.mxu0 0.0
        %1626 = vmatpush2.msra.mxu0 0.0
        %1627 = vmatprep.mubr.f32.mxu0 0.0
        %1628 = vmatmul.mubr.f32.gmra.mxu0 %v1018
        %v1629 = vpop.f32.mrf.mxu0
        %v1630 = vadd.f32 0.0, %v1629
        %v1631 = vpop.f32.mrf.mxu0
        %v1632 = vadd.f32 0.0, %v1631
        %1633 = vmatprep.mubr.f32.mxu0 0.0
        %1634 = vmatmul.mubr.f32.gmra.mxu0 %v1021
        %v1635 = vpop.f32.mrf.mxu0
        %v1636 = vadd.f32 0.0, %v1635
        %v1637 = vpop.f32.mrf.mxu0
        %v1638 = vadd.f32 0.0, %v1637
        %1639 = vmatprep.mubr.f32.mxu0 0.0
        %1640 = vmatmul.mubr.f32.gmra.mxu0 %v1024
        %v1641 = vpop.f32.mrf.mxu0
        %v1642 = vadd.f32 0.0, %v1641
        %v1643 = vpop.f32.mrf.mxu0
        %v1644 = vadd.f32 0.0, %v1643
        %1645 = vmatprep.mubr.f32.mxu0 0.0
        %1646 = vmatmul.mubr.f32.gmra.mxu0 %v1027
        %v1647 = vpop.f32.mrf.mxu0
        %v1648 = vadd.f32 0.0, %v1647
        %v1649 = vpop.f32.mrf.mxu0
        %v1650 = vadd.f32 0.0, %v1649
        %1651 = vdwg.mxu0
        %1652 = vmatprep.subr.mxu0 0.0
        %1653 = vmatpush1.msra.mxu0 0.0
        %1654 = vmatprep.subr.mxu0 0.0
        %1655 = vmatpush1.msra.mxu0 0.0
        %1656 = vmatprep.subr.mxu0 0.0
        %1657 = vmatpush1.msra.mxu0 0.0
        %1658 = vmatprep.subr.mxu0 0.0
        %1659 = vmatpush1.msra.mxu0 0.0
        %1660 = vmatprep.subr.mxu0 0.0
        %1661 = vmatpush1.msra.mxu0 0.0
        %1662 = vmatprep.subr.mxu0 0.0
        %1663 = vmatpush1.msra.mxu0 0.0
        %1664 = vmatprep.subr.mxu0 0.0
        %1665 = vmatpush1.msra.mxu0 0.0
        %1666 = vmatprep.subr.mxu0 0.0
        %1667 = vmatpush1.msra.mxu0 0.0
        %1668 = vmatprep.subr.mxu0 %v995
        %1669 = vmatpush1.msra.mxu0 %v994
        %1670 = vmatprep.subr.mxu0 %v963
        %1671 = vmatpush1.msra.mxu0 %v962
        %1672 = vmatprep.subr.mxu0 %v931
        %1673 = vmatpush1.msra.mxu0 %v930
        %1674 = vmatprep.subr.mxu0 %v899
        %1675 = vmatpush1.msra.mxu0 %v898
        %1676 = vmatprep.subr.mxu0 %v867
        %1677 = vmatpush1.msra.mxu0 %v866
        %1678 = vmatprep.subr.mxu0 %v835
        %1679 = vmatpush1.msra.mxu0 %v834
        %1680 = vmatprep.subr.mxu0 %v803
        %1681 = vmatpush1.msra.mxu0 %v802
        %1682 = vmatprep.subr.mxu0 %v771
        %1683 = vmatpush1.msra.mxu0 %v770
        %1684 = vmatprep.subr.mxu0 0.0
        %1685 = vmatpush2.msra.mxu0 0.0
        %1686 = vmatprep.subr.mxu0 0.0
        %1687 = vmatpush2.msra.mxu0 0.0
        %1688 = vmatprep.subr.mxu0 0.0
        %1689 = vmatpush2.msra.mxu0 0.0
        %1690 = vmatprep.subr.mxu0 0.0
        %1691 = vmatpush2.msra.mxu0 0.0
        %1692 = vmatprep.subr.mxu0 0.0
        %1693 = vmatpush2.msra.mxu0 0.0
        %1694 = vmatprep.subr.mxu0 0.0
        %1695 = vmatpush2.msra.mxu0 0.0
        %1696 = vmatprep.subr.mxu0 0.0
        %1697 = vmatpush2.msra.mxu0 0.0
        %1698 = vmatprep.subr.mxu0 0.0
        %1699 = vmatpush2.msra.mxu0 0.0
        %1700 = vmatprep.subr.mxu0 0.0
        %1701 = vmatpush2.msra.mxu0 0.0
        %1702 = vmatprep.subr.mxu0 0.0
        %1703 = vmatpush2.msra.mxu0 0.0
        %1704 = vmatprep.subr.mxu0 0.0
        %1705 = vmatpush2.msra.mxu0 0.0
        %1706 = vmatprep.subr.mxu0 0.0
        %1707 = vmatpush2.msra.mxu0 0.0
        %1708 = vmatprep.subr.mxu0 0.0
        %1709 = vmatpush2.msra.mxu0 0.0
        %1710 = vmatprep.subr.mxu0 0.0
        %1711 = vmatpush2.msra.mxu0 0.0
        %1712 = vmatprep.subr.mxu0 0.0
        %1713 = vmatpush2.msra.mxu0 0.0
        %1714 = vmatprep.subr.mxu0 0.0
        %1715 = vmatpush2.msra.mxu0 0.0
        %1716 = vmatprep.mubr.f32.mxu0 0.0
        %1717 = vmatmul.mubr.f32.gmra.mxu0 %v1018
        %v1718 = vpop.f32.mrf.mxu0
        %v1719 = vadd.f32 0.0, %v1718
        %v1720 = vpop.f32.mrf.mxu0
        %v1721 = vadd.f32 0.0, %v1720
        %1722 = vmatprep.mubr.f32.mxu0 0.0
        %1723 = vmatmul.mubr.f32.gmra.mxu0 %v1021
        %v1724 = vpop.f32.mrf.mxu0
        %v1725 = vadd.f32 0.0, %v1724
        %v1726 = vpop.f32.mrf.mxu0
        %v1727 = vadd.f32 0.0, %v1726
        %1728 = vmatprep.mubr.f32.mxu0 0.0
        %1729 = vmatmul.mubr.f32.gmra.mxu0 %v1024
        %v1730 = vpop.f32.mrf.mxu0
        %v1731 = vadd.f32 0.0, %v1730
        %v1732 = vpop.f32.mrf.mxu0
        %v1733 = vadd.f32 0.0, %v1732
        %1734 = vmatprep.mubr.f32.mxu0 0.0
        %1735 = vmatmul.mubr.f32.gmra.mxu0 %v1027
        %v1736 = vpop.f32.mrf.mxu0
        %v1737 = vadd.f32 0.0, %v1736
        %v1738 = vpop.f32.mrf.mxu0
        %v1739 = vadd.f32 0.0, %v1738
        %1740 = vdwg.mxu0
        %1741 = vmatprep.subr.mxu0 0.0
        %1742 = vmatpush1.msra.mxu0 0.0
        %1743 = vmatprep.subr.mxu0 0.0
        %1744 = vmatpush1.msra.mxu0 0.0
        %1745 = vmatprep.subr.mxu0 0.0
        %1746 = vmatpush1.msra.mxu0 0.0
        %1747 = vmatprep.subr.mxu0 0.0
        %1748 = vmatpush1.msra.mxu0 0.0
        %1749 = vmatprep.subr.mxu0 0.0
        %1750 = vmatpush1.msra.mxu0 0.0
        %1751 = vmatprep.subr.mxu0 0.0
        %1752 = vmatpush1.msra.mxu0 0.0
        %1753 = vmatprep.subr.mxu0 0.0
        %1754 = vmatpush1.msra.mxu0 0.0
        %1755 = vmatprep.subr.mxu0 0.0
        %1756 = vmatpush1.msra.mxu0 0.0
        %1757 = vmatprep.subr.mxu0 %v997
        %1758 = vmatpush1.msra.mxu0 %v996
        %1759 = vmatprep.subr.mxu0 %v965
        %1760 = vmatpush1.msra.mxu0 %v964
        %1761 = vmatprep.subr.mxu0 %v933
        %1762 = vmatpush1.msra.mxu0 %v932
        %1763 = vmatprep.subr.mxu0 %v901
        %1764 = vmatpush1.msra.mxu0 %v900
        %1765 = vmatprep.subr.mxu0 %v869
        %1766 = vmatpush1.msra.mxu0 %v868
        %1767 = vmatprep.subr.mxu0 %v837
        %1768 = vmatpush1.msra.mxu0 %v836
        %1769 = vmatprep.subr.mxu0 %v805
        %1770 = vmatpush1.msra.mxu0 %v804
        %1771 = vmatprep.subr.mxu0 %v773
        %1772 = vmatpush1.msra.mxu0 %v772
        %1773 = vmatprep.subr.mxu0 0.0
        %1774 = vmatpush2.msra.mxu0 0.0
        %1775 = vmatprep.subr.mxu0 0.0
        %1776 = vmatpush2.msra.mxu0 0.0
        %1777 = vmatprep.subr.mxu0 0.0
        %1778 = vmatpush2.msra.mxu0 0.0
        %1779 = vmatprep.subr.mxu0 0.0
        %1780 = vmatpush2.msra.mxu0 0.0
        %1781 = vmatprep.subr.mxu0 0.0
        %1782 = vmatpush2.msra.mxu0 0.0
        %1783 = vmatprep.subr.mxu0 0.0
        %1784 = vmatpush2.msra.mxu0 0.0
        %1785 = vmatprep.subr.mxu0 0.0
        %1786 = vmatpush2.msra.mxu0 0.0
        %1787 = vmatprep.subr.mxu0 0.0
        %1788 = vmatpush2.msra.mxu0 0.0
        %1789 = vmatprep.subr.mxu0 0.0
        %1790 = vmatpush2.msra.mxu0 0.0
        %1791 = vmatprep.subr.mxu0 0.0
        %1792 = vmatpush2.msra.mxu0 0.0
        %1793 = vmatprep.subr.mxu0 0.0
        %1794 = vmatpush2.msra.mxu0 0.0
        %1795 = vmatprep.subr.mxu0 0.0
        %1796 = vmatpush2.msra.mxu0 0.0
        %1797 = vmatprep.subr.mxu0 0.0
        %1798 = vmatpush2.msra.mxu0 0.0
        %1799 = vmatprep.subr.mxu0 0.0
        %1800 = vmatpush2.msra.mxu0 0.0
        %1801 = vmatprep.subr.mxu0 0.0
        %1802 = vmatpush2.msra.mxu0 0.0
        %1803 = vmatprep.subr.mxu0 0.0
        %1804 = vmatpush2.msra.mxu0 0.0
        %1805 = vmatprep.mubr.f32.mxu0 0.0
        %1806 = vmatmul.mubr.f32.gmra.mxu0 %v1018
        %v1807 = vpop.f32.mrf.mxu0
        %v1808 = vadd.f32 0.0, %v1807
        %v1809 = vpop.f32.mrf.mxu0
        %v1810 = vadd.f32 0.0, %v1809
        %1811 = vmatprep.mubr.f32.mxu0 0.0
        %1812 = vmatmul.mubr.f32.gmra.mxu0 %v1021
        %v1813 = vpop.f32.mrf.mxu0
        %v1814 = vadd.f32 0.0, %v1813
        %v1815 = vpop.f32.mrf.mxu0
        %v1816 = vadd.f32 0.0, %v1815
        %1817 = vmatprep.mubr.f32.mxu0 0.0
        %1818 = vmatmul.mubr.f32.gmra.mxu0 %v1024
        %v1819 = vpop.f32.mrf.mxu0
        %v1820 = vadd.f32 0.0, %v1819
        %v1821 = vpop.f32.mrf.mxu0
        %v1822 = vadd.f32 0.0, %v1821
        %1823 = vmatprep.mubr.f32.mxu0 0.0
        %1824 = vmatmul.mubr.f32.gmra.mxu0 %v1027
        %v1825 = vpop.f32.mrf.mxu0
        %v1826 = vadd.f32 0.0, %v1825
        %v1827 = vpop.f32.mrf.mxu0
        %v1828 = vadd.f32 0.0, %v1827
        %1829 = vdwg.mxu0
        %1830 = vmatprep.subr.mxu0 0.0
        %1831 = vmatpush1.msra.mxu0 0.0
        %1832 = vmatprep.subr.mxu0 0.0
        %1833 = vmatpush1.msra.mxu0 0.0
        %1834 = vmatprep.subr.mxu0 0.0
        %1835 = vmatpush1.msra.mxu0 0.0
        %1836 = vmatprep.subr.mxu0 0.0
        %1837 = vmatpush1.msra.mxu0 0.0
        %1838 = vmatprep.subr.mxu0 0.0
        %1839 = vmatpush1.msra.mxu0 0.0
        %1840 = vmatprep.subr.mxu0 0.0
        %1841 = vmatpush1.msra.mxu0 0.0
        %1842 = vmatprep.subr.mxu0 0.0
        %1843 = vmatpush1.msra.mxu0 0.0
        %1844 = vmatprep.subr.mxu0 0.0
        %1845 = vmatpush1.msra.mxu0 0.0
        %1846 = vmatprep.subr.mxu0 %v999
        %1847 = vmatpush1.msra.mxu0 %v998
        %1848 = vmatprep.subr.mxu0 %v967
        %1849 = vmatpush1.msra.mxu0 %v966
        %1850 = vmatprep.subr.mxu0 %v935
        %1851 = vmatpush1.msra.mxu0 %v934
        %1852 = vmatprep.subr.mxu0 %v903
        %1853 = vmatpush1.msra.mxu0 %v902
        %1854 = vmatprep.subr.mxu0 %v871
        %1855 = vmatpush1.msra.mxu0 %v870
        %1856 = vmatprep.subr.mxu0 %v839
        %1857 = vmatpush1.msra.mxu0 %v838
        %1858 = vmatprep.subr.mxu0 %v807
        %1859 = vmatpush1.msra.mxu0 %v806
        %1860 = vmatprep.subr.mxu0 %v775
        %1861 = vmatpush1.msra.mxu0 %v774
        %1862 = vmatprep.subr.mxu0 0.0
        %1863 = vmatpush2.msra.mxu0 0.0
        %1864 = vmatprep.subr.mxu0 0.0
        %1865 = vmatpush2.msra.mxu0 0.0
        %1866 = vmatprep.subr.mxu0 0.0
        %1867 = vmatpush2.msra.mxu0 0.0
        %1868 = vmatprep.subr.mxu0 0.0
        %1869 = vmatpush2.msra.mxu0 0.0
        %1870 = vmatprep.subr.mxu0 0.0
        %1871 = vmatpush2.msra.mxu0 0.0
        %1872 = vmatprep.subr.mxu0 0.0
        %1873 = vmatpush2.msra.mxu0 0.0
        %1874 = vmatprep.subr.mxu0 0.0
        %1875 = vmatpush2.msra.mxu0 0.0
        %1876 = vmatprep.subr.mxu0 0.0
        %1877 = vmatpush2.msra.mxu0 0.0
        %1878 = vmatprep.subr.mxu0 0.0
        %1879 = vmatpush2.msra.mxu0 0.0
        %1880 = vmatprep.subr.mxu0 0.0
        %1881 = vmatpush2.msra.mxu0 0.0
        %1882 = vmatprep.subr.mxu0 0.0
        %1883 = vmatpush2.msra.mxu0 0.0
        %1884 = vmatprep.subr.mxu0 0.0
        %1885 = vmatpush2.msra.mxu0 0.0
        %1886 = vmatprep.subr.mxu0 0.0
        %1887 = vmatpush2.msra.mxu0 0.0
        %1888 = vmatprep.subr.mxu0 0.0
        %1889 = vmatpush2.msra.mxu0 0.0
        %1890 = vmatprep.subr.mxu0 0.0
        %1891 = vmatpush2.msra.mxu0 0.0
        %1892 = vmatprep.subr.mxu0 0.0
        %1893 = vmatpush2.msra.mxu0 0.0
        %1894 = vmatprep.mubr.f32.mxu0 0.0
        %1895 = vmatmul.mubr.f32.gmra.mxu0 %v1018
        %v1896 = vpop.f32.mrf.mxu0
        %v1897 = vadd.f32 0.0, %v1896
        %v1898 = vpop.f32.mrf.mxu0
        %v1899 = vadd.f32 0.0, %v1898
        %1900 = vmatprep.mubr.f32.mxu0 0.0
        %1901 = vmatmul.mubr.f32.gmra.mxu0 %v1021
        %v1902 = vpop.f32.mrf.mxu0
        %v1903 = vadd.f32 0.0, %v1902
        %v1904 = vpop.f32.mrf.mxu0
        %v1905 = vadd.f32 0.0, %v1904
        %1906 = vmatprep.mubr.f32.mxu0 0.0
        %1907 = vmatmul.mubr.f32.gmra.mxu0 %v1024
        %v1908 = vpop.f32.mrf.mxu0
        %v1909 = vadd.f32 0.0, %v1908
        %v1910 = vpop.f32.mrf.mxu0
        %v1911 = vadd.f32 0.0, %v1910
        %1912 = vmatprep.mubr.f32.mxu0 0.0
        %1913 = vmatmul.mubr.f32.gmra.mxu0 %v1027
        %v1914 = vpop.f32.mrf.mxu0
        %v1915 = vadd.f32 0.0, %v1914
        %v1916 = vpop.f32.mrf.mxu0
        %v1917 = vadd.f32 0.0, %v1916
        %1918 = vdwg.mxu0
        %1919 = vmatprep.subr.mxu0 0.0
        %1920 = vmatpush1.msra.mxu0 0.0
        %1921 = vmatprep.subr.mxu0 0.0
        %1922 = vmatpush1.msra.mxu0 0.0
        %1923 = vmatprep.subr.mxu0 0.0
        %1924 = vmatpush1.msra.mxu0 0.0
        %1925 = vmatprep.subr.mxu0 0.0
        %1926 = vmatpush1.msra.mxu0 0.0
        %1927 = vmatprep.subr.mxu0 0.0
        %1928 = vmatpush1.msra.mxu0 0.0
        %1929 = vmatprep.subr.mxu0 0.0
        %1930 = vmatpush1.msra.mxu0 0.0
        %1931 = vmatprep.subr.mxu0 0.0
        %1932 = vmatpush1.msra.mxu0 0.0
        %1933 = vmatprep.subr.mxu0 0.0
        %1934 = vmatpush1.msra.mxu0 0.0
        %1935 = vmatprep.subr.mxu0 %v1001
        %1936 = vmatpush1.msra.mxu0 %v1000
        %1937 = vmatprep.subr.mxu0 %v969
        %1938 = vmatpush1.msra.mxu0 %v968
        %1939 = vmatprep.subr.mxu0 %v937
        %1940 = vmatpush1.msra.mxu0 %v936
        %1941 = vmatprep.subr.mxu0 %v905
        %1942 = vmatpush1.msra.mxu0 %v904
        %1943 = vmatprep.subr.mxu0 %v873
        %1944 = vmatpush1.msra.mxu0 %v872
        %1945 = vmatprep.subr.mxu0 %v841
        %1946 = vmatpush1.msra.mxu0 %v840
        %1947 = vmatprep.subr.mxu0 %v809
        %1948 = vmatpush1.msra.mxu0 %v808
        %1949 = vmatprep.subr.mxu0 %v777
        %1950 = vmatpush1.msra.mxu0 %v776
        %1951 = vmatprep.subr.mxu0 0.0
        %1952 = vmatpush2.msra.mxu0 0.0
        %1953 = vmatprep.subr.mxu0 0.0
        %1954 = vmatpush2.msra.mxu0 0.0
        %1955 = vmatprep.subr.mxu0 0.0
        %1956 = vmatpush2.msra.mxu0 0.0
        %1957 = vmatprep.subr.mxu0 0.0
        %1958 = vmatpush2.msra.mxu0 0.0
        %1959 = vmatprep.subr.mxu0 0.0
        %1960 = vmatpush2.msra.mxu0 0.0
        %1961 = vmatprep.subr.mxu0 0.0
        %1962 = vmatpush2.msra.mxu0 0.0
        %1963 = vmatprep.subr.mxu0 0.0
        %1964 = vmatpush2.msra.mxu0 0.0
        %1965 = vmatprep.subr.mxu0 0.0
        %1966 = vmatpush2.msra.mxu0 0.0
        %1967 = vmatprep.subr.mxu0 0.0
        %1968 = vmatpush2.msra.mxu0 0.0
        %1969 = vmatprep.subr.mxu0 0.0
        %1970 = vmatpush2.msra.mxu0 0.0
        %1971 = vmatprep.subr.mxu0 0.0
        %1972 = vmatpush2.msra.mxu0 0.0
        %1973 = vmatprep.subr.mxu0 0.0
        %1974 = vmatpush2.msra.mxu0 0.0
        %1975 = vmatprep.subr.mxu0 0.0
        %1976 = vmatpush2.msra.mxu0 0.0
        %1977 = vmatprep.subr.mxu0 0.0
        %1978 = vmatpush2.msra.mxu0 0.0
        %1979 = vmatprep.subr.mxu0 0.0
        %1980 = vmatpush2.msra.mxu0 0.0
        %1981 = vmatprep.subr.mxu0 0.0
        %1982 = vmatpush2.msra.mxu0 0.0
        %1983 = vmatprep.mubr.f32.mxu0 0.0
        %1984 = vmatmul.mubr.f32.gmra.mxu0 %v1018
        %v1985 = vpop.f32.mrf.mxu0
        %v1986 = vadd.f32 0.0, %v1985
        %v1987 = vpop.f32.mrf.mxu0
        %v1988 = vadd.f32 0.0, %v1987
        %1989 = vmatprep.mubr.f32.mxu0 0.0
        %1990 = vmatmul.mubr.f32.gmra.mxu0 %v1021
        %v1991 = vpop.f32.mrf.mxu0
        %v1992 = vadd.f32 0.0, %v1991
        %v1993 = vpop.f32.mrf.mxu0
        %v1994 = vadd.f32 0.0, %v1993
        %1995 = vmatprep.mubr.f32.mxu0 0.0
        %1996 = vmatmul.mubr.f32.gmra.mxu0 %v1024
        %v1997 = vpop.f32.mrf.mxu0
        %v1998 = vadd.f32 0.0, %v1997
        %v1999 = vpop.f32.mrf.mxu0
        %v2000 = vadd.f32 0.0, %v1999
        %2001 = vmatprep.mubr.f32.mxu0 0.0
        %2002 = vmatmul.mubr.f32.gmra.mxu0 %v1027
        %v2003 = vpop.f32.mrf.mxu0
        %v2004 = vadd.f32 0.0, %v2003
        %v2005 = vpop.f32.mrf.mxu0
        %v2006 = vadd.f32 0.0, %v2005
        %2007 = vdwg.mxu0
        %2008 = vmatprep.subr.mxu0 0.0
        %2009 = vmatpush1.msra.mxu0 0.0
        %2010 = vmatprep.subr.mxu0 0.0
        %2011 = vmatpush1.msra.mxu0 0.0
        %2012 = vmatprep.subr.mxu0 0.0
        %2013 = vmatpush1.msra.mxu0 0.0
        %2014 = vmatprep.subr.mxu0 0.0
        %2015 = vmatpush1.msra.mxu0 0.0
        %2016 = vmatprep.subr.mxu0 0.0
        %2017 = vmatpush1.msra.mxu0 0.0
        %2018 = vmatprep.subr.mxu0 0.0
        %2019 = vmatpush1.msra.mxu0 0.0
        %2020 = vmatprep.subr.mxu0 0.0
        %2021 = vmatpush1.msra.mxu0 0.0
        %2022 = vmatprep.subr.mxu0 0.0
        %2023 = vmatpush1.msra.mxu0 0.0
        %2024 = vmatprep.subr.mxu0 %v1003
        %2025 = vmatpush1.msra.mxu0 %v1002
        %2026 = vmatprep.subr.mxu0 %v971
        %2027 = vmatpush1.msra.mxu0 %v970
        %2028 = vmatprep.subr.mxu0 %v939
        %2029 = vmatpush1.msra.mxu0 %v938
        %2030 = vmatprep.subr.mxu0 %v907
        %2031 = vmatpush1.msra.mxu0 %v906
        %2032 = vmatprep.subr.mxu0 %v875
        %2033 = vmatpush1.msra.mxu0 %v874
        %2034 = vmatprep.subr.mxu0 %v843
        %2035 = vmatpush1.msra.mxu0 %v842
        %2036 = vmatprep.subr.mxu0 %v811
        %2037 = vmatpush1.msra.mxu0 %v810
        %2038 = vmatprep.subr.mxu0 %v779
        %2039 = vmatpush1.msra.mxu0 %v778
        %2040 = vmatprep.subr.mxu0 0.0
        %2041 = vmatpush2.msra.mxu0 0.0
        %2042 = vmatprep.subr.mxu0 0.0
        %2043 = vmatpush2.msra.mxu0 0.0
        %2044 = vmatprep.subr.mxu0 0.0
        %2045 = vmatpush2.msra.mxu0 0.0
        %2046 = vmatprep.subr.mxu0 0.0
        %2047 = vmatpush2.msra.mxu0 0.0
        %2048 = vmatprep.subr.mxu0 0.0
        %2049 = vmatpush2.msra.mxu0 0.0
        %2050 = vmatprep.subr.mxu0 0.0
        %2051 = vmatpush2.msra.mxu0 0.0
        %2052 = vmatprep.subr.mxu0 0.0
        %2053 = vmatpush2.msra.mxu0 0.0
        %2054 = vmatprep.subr.mxu0 0.0
        %2055 = vmatpush2.msra.mxu0 0.0
        %2056 = vmatprep.subr.mxu0 0.0
        %2057 = vmatpush2.msra.mxu0 0.0
        %2058 = vmatprep.subr.mxu0 0.0
        %2059 = vmatpush2.msra.mxu0 0.0
        %2060 = vmatprep.subr.mxu0 0.0
        %2061 = vmatpush2.msra.mxu0 0.0
        %2062 = vmatprep.subr.mxu0 0.0
        %2063 = vmatpush2.msra.mxu0 0.0
        %2064 = vmatprep.subr.mxu0 0.0
        %2065 = vmatpush2.msra.mxu0 0.0
        %2066 = vmatprep.subr.mxu0 0.0
        %2067 = vmatpush2.msra.mxu0 0.0
        %2068 = vmatprep.subr.mxu0 0.0
        %2069 = vmatpush2.msra.mxu0 0.0
        %2070 = vmatprep.subr.mxu0 0.0
        %2071 = vmatpush2.msra.mxu0 0.0
        %2072 = vmatprep.mubr.f32.mxu0 0.0
        %2073 = vmatmul.mubr.f32.gmra.mxu0 %v1018
        %v2074 = vpop.f32.mrf.mxu0
        %v2075 = vadd.f32 0.0, %v2074
        %v2076 = vpop.f32.mrf.mxu0
        %v2077 = vadd.f32 0.0, %v2076
        %2078 = vmatprep.mubr.f32.mxu0 0.0
        %2079 = vmatmul.mubr.f32.gmra.mxu0 %v1021
        %v2080 = vpop.f32.mrf.mxu0
        %v2081 = vadd.f32 0.0, %v2080
        %v2082 = vpop.f32.mrf.mxu0
        %v2083 = vadd.f32 0.0, %v2082
        %2084 = vmatprep.mubr.f32.mxu0 0.0
        %2085 = vmatmul.mubr.f32.gmra.mxu0 %v1024
        %v2086 = vpop.f32.mrf.mxu0
        %v2087 = vadd.f32 0.0, %v2086
        %v2088 = vpop.f32.mrf.mxu0
        %v2089 = vadd.f32 0.0, %v2088
        %2090 = vmatprep.mubr.f32.mxu0 0.0
        %2091 = vmatmul.mubr.f32.gmra.mxu0 %v1027
        %v2092 = vpop.f32.mrf.mxu0
        %v2093 = vadd.f32 0.0, %v2092
        %v2094 = vpop.f32.mrf.mxu0
        %v2095 = vadd.f32 0.0, %v2094
        %2096 = vdwg.mxu0
        %2097 = vmatprep.subr.mxu0 0.0
        %2098 = vmatpush1.msra.mxu0 0.0
        %2099 = vmatprep.subr.mxu0 0.0
        %2100 = vmatpush1.msra.mxu0 0.0
        %2101 = vmatprep.subr.mxu0 0.0
        %2102 = vmatpush1.msra.mxu0 0.0
        %2103 = vmatprep.subr.mxu0 0.0
        %2104 = vmatpush1.msra.mxu0 0.0
        %2105 = vmatprep.subr.mxu0 0.0
        %2106 = vmatpush1.msra.mxu0 0.0
        %2107 = vmatprep.subr.mxu0 0.0
        %2108 = vmatpush1.msra.mxu0 0.0
        %2109 = vmatprep.subr.mxu0 0.0
        %2110 = vmatpush1.msra.mxu0 0.0
        %2111 = vmatprep.subr.mxu0 0.0
        %2112 = vmatpush1.msra.mxu0 0.0
        %2113 = vmatprep.subr.mxu0 %v1005
        %2114 = vmatpush1.msra.mxu0 %v1004
        %2115 = vmatprep.subr.mxu0 %v973
        %2116 = vmatpush1.msra.mxu0 %v972
        %2117 = vmatprep.subr.mxu0 %v941
        %2118 = vmatpush1.msra.mxu0 %v940
        %2119 = vmatprep.subr.mxu0 %v909
        %2120 = vmatpush1.msra.mxu0 %v908
        %2121 = vmatprep.subr.mxu0 %v877
        %2122 = vmatpush1.msra.mxu0 %v876
        %2123 = vmatprep.subr.mxu0 %v845
        %2124 = vmatpush1.msra.mxu0 %v844
        %2125 = vmatprep.subr.mxu0 %v813
        %2126 = vmatpush1.msra.mxu0 %v812
        %2127 = vmatprep.subr.mxu0 %v781
        %2128 = vmatpush1.msra.mxu0 %v780
        %2129 = vmatprep.subr.mxu0 0.0
        %2130 = vmatpush2.msra.mxu0 0.0
        %2131 = vmatprep.subr.mxu0 0.0
        %2132 = vmatpush2.msra.mxu0 0.0
        %2133 = vmatprep.subr.mxu0 0.0
        %2134 = vmatpush2.msra.mxu0 0.0
        %2135 = vmatprep.subr.mxu0 0.0
        %2136 = vmatpush2.msra.mxu0 0.0
        %2137 = vmatprep.subr.mxu0 0.0
        %2138 = vmatpush2.msra.mxu0 0.0
        %2139 = vmatprep.subr.mxu0 0.0
        %2140 = vmatpush2.msra.mxu0 0.0
        %2141 = vmatprep.subr.mxu0 0.0
        %2142 = vmatpush2.msra.mxu0 0.0
        %2143 = vmatprep.subr.mxu0 0.0
        %2144 = vmatpush2.msra.mxu0 0.0
        %2145 = vmatprep.subr.mxu0 0.0
        %2146 = vmatpush2.msra.mxu0 0.0
        %2147 = vmatprep.subr.mxu0 0.0
        %2148 = vmatpush2.msra.mxu0 0.0
        %2149 = vmatprep.subr.mxu0 0.0
        %2150 = vmatpush2.msra.mxu0 0.0
        %2151 = vmatprep.subr.mxu0 0.0
        %2152 = vmatpush2.msra.mxu0 0.0
        %2153 = vmatprep.subr.mxu0 0.0
        %2154 = vmatpush2.msra.mxu0 0.0
        %2155 = vmatprep.subr.mxu0 0.0
        %2156 = vmatpush2.msra.mxu0 0.0
        %2157 = vmatprep.subr.mxu0 0.0
        %2158 = vmatpush2.msra.mxu0 0.0
        %2159 = vmatprep.subr.mxu0 0.0
        %2160 = vmatpush2.msra.mxu0 0.0
        %2161 = vmatprep.mubr.f32.mxu0 0.0
        %2162 = vmatmul.mubr.f32.gmra.mxu0 %v1018
        %v2163 = vpop.f32.mrf.mxu0
        %v2164 = vadd.f32 0.0, %v2163
        %v2165 = vpop.f32.mrf.mxu0
        %v2166 = vadd.f32 0.0, %v2165
        %2167 = vmatprep.mubr.f32.mxu0 0.0
        %2168 = vmatmul.mubr.f32.gmra.mxu0 %v1021
        %v2169 = vpop.f32.mrf.mxu0
        %v2170 = vadd.f32 0.0, %v2169
        %v2171 = vpop.f32.mrf.mxu0
        %v2172 = vadd.f32 0.0, %v2171
        %2173 = vmatprep.mubr.f32.mxu0 0.0
        %2174 = vmatmul.mubr.f32.gmra.mxu0 %v1024
        %v2175 = vpop.f32.mrf.mxu0
        %v2176 = vadd.f32 0.0, %v2175
        %v2177 = vpop.f32.mrf.mxu0
        %v2178 = vadd.f32 0.0, %v2177
        %2179 = vmatprep.mubr.f32.mxu0 0.0
        %2180 = vmatmul.mubr.f32.gmra.mxu0 %v1027
        %v2181 = vpop.f32.mrf.mxu0
        %v2182 = vadd.f32 0.0, %v2181
        %v2183 = vpop.f32.mrf.mxu0
        %v2184 = vadd.f32 0.0, %v2183
        %2185 = vdwg.mxu0
        %2186 = vmatprep.subr.mxu0 0.0
        %2187 = vmatpush1.msra.mxu0 0.0
        %2188 = vmatprep.subr.mxu0 0.0
        %2189 = vmatpush1.msra.mxu0 0.0
        %2190 = vmatprep.subr.mxu0 0.0
        %2191 = vmatpush1.msra.mxu0 0.0
        %2192 = vmatprep.subr.mxu0 0.0
        %2193 = vmatpush1.msra.mxu0 0.0
        %2194 = vmatprep.subr.mxu0 0.0
        %2195 = vmatpush1.msra.mxu0 0.0
        %2196 = vmatprep.subr.mxu0 0.0
        %2197 = vmatpush1.msra.mxu0 0.0
        %2198 = vmatprep.subr.mxu0 0.0
        %2199 = vmatpush1.msra.mxu0 0.0
        %2200 = vmatprep.subr.mxu0 0.0
        %2201 = vmatpush1.msra.mxu0 0.0
        %2202 = vmatprep.subr.mxu0 %v1007
        %2203 = vmatpush1.msra.mxu0 %v1006
        %2204 = vmatprep.subr.mxu0 %v975
        %2205 = vmatpush1.msra.mxu0 %v974
        %2206 = vmatprep.subr.mxu0 %v943
        %2207 = vmatpush1.msra.mxu0 %v942
        %2208 = vmatprep.subr.mxu0 %v911
        %2209 = vmatpush1.msra.mxu0 %v910
        %2210 = vmatprep.subr.mxu0 %v879
        %2211 = vmatpush1.msra.mxu0 %v878
        %2212 = vmatprep.subr.mxu0 %v847
        %2213 = vmatpush1.msra.mxu0 %v846
        %2214 = vmatprep.subr.mxu0 %v815
        %2215 = vmatpush1.msra.mxu0 %v814
        %2216 = vmatprep.subr.mxu0 %v783
        %2217 = vmatpush1.msra.mxu0 %v782
        %2218 = vmatprep.subr.mxu0 0.0
        %2219 = vmatpush2.msra.mxu0 0.0
        %2220 = vmatprep.subr.mxu0 0.0
        %2221 = vmatpush2.msra.mxu0 0.0
        %2222 = vmatprep.subr.mxu0 0.0
        %2223 = vmatpush2.msra.mxu0 0.0
        %2224 = vmatprep.subr.mxu0 0.0
        %2225 = vmatpush2.msra.mxu0 0.0
        %2226 = vmatprep.subr.mxu0 0.0
        %2227 = vmatpush2.msra.mxu0 0.0
        %2228 = vmatprep.subr.mxu0 0.0
        %2229 = vmatpush2.msra.mxu0 0.0
        %2230 = vmatprep.subr.mxu0 0.0
        %2231 = vmatpush2.msra.mxu0 0.0
        %2232 = vmatprep.subr.mxu0 0.0
        %2233 = vmatpush2.msra.mxu0 0.0
        %2234 = vmatprep.subr.mxu0 0.0
        %2235 = vmatpush2.msra.mxu0 0.0
        %2236 = vmatprep.subr.mxu0 0.0
        %2237 = vmatpush2.msra.mxu0 0.0
        %2238 = vmatprep.subr.mxu0 0.0
        %2239 = vmatpush2.msra.mxu0 0.0
        %2240 = vmatprep.subr.mxu0 0.0
        %2241 = vmatpush2.msra.mxu0 0.0
        %2242 = vmatprep.subr.mxu0 0.0
        %2243 = vmatpush2.msra.mxu0 0.0
        %2244 = vmatprep.subr.mxu0 0.0
        %2245 = vmatpush2.msra.mxu0 0.0
        %2246 = vmatprep.subr.mxu0 0.0
        %2247 = vmatpush2.msra.mxu0 0.0
        %2248 = vmatprep.subr.mxu0 0.0
        %2249 = vmatpush2.msra.mxu0 0.0
        %2250 = vmatprep.mubr.f32.mxu0 0.0
        %2251 = vmatmul.mubr.f32.gmra.mxu0 %v1018
        %v2252 = vpop.f32.mrf.mxu0
        %v2253 = vadd.f32 0.0, %v2252
        %v2254 = vpop.f32.mrf.mxu0
        %v2255 = vadd.f32 0.0, %v2254
        %2256 = vmatprep.mubr.f32.mxu0 0.0
        %2257 = vmatmul.mubr.f32.gmra.mxu0 %v1021
        %v2258 = vpop.f32.mrf.mxu0
        %v2259 = vadd.f32 0.0, %v2258
        %v2260 = vpop.f32.mrf.mxu0
        %v2261 = vadd.f32 0.0, %v2260
        %2262 = vmatprep.mubr.f32.mxu0 0.0
        %2263 = vmatmul.mubr.f32.gmra.mxu0 %v1024
        %v2264 = vpop.f32.mrf.mxu0
        %v2265 = vadd.f32 0.0, %v2264
        %v2266 = vpop.f32.mrf.mxu0
        %v2267 = vadd.f32 0.0, %v2266
        %2268 = vmatprep.mubr.f32.mxu0 0.0
        %2269 = vmatmul.mubr.f32.gmra.mxu0 %v1027
        %v2270 = vpop.f32.mrf.mxu0
        %v2271 = vadd.f32 0.0, %v2270
        %v2272 = vpop.f32.mrf.mxu0
        %v2273 = vadd.f32 0.0, %v2272
        %2274 = vdwg.mxu0
        %2275 = vmatprep.subr.mxu0 0.0
        %2276 = vmatpush1.msra.mxu0 0.0
        %2277 = vmatprep.subr.mxu0 0.0
        %2278 = vmatpush1.msra.mxu0 0.0
        %2279 = vmatprep.subr.mxu0 0.0
        %2280 = vmatpush1.msra.mxu0 0.0
        %2281 = vmatprep.subr.mxu0 0.0
        %2282 = vmatpush1.msra.mxu0 0.0
        %2283 = vmatprep.subr.mxu0 0.0
        %2284 = vmatpush1.msra.mxu0 0.0
        %2285 = vmatprep.subr.mxu0 0.0
        %2286 = vmatpush1.msra.mxu0 0.0
        %2287 = vmatprep.subr.mxu0 0.0
        %2288 = vmatpush1.msra.mxu0 0.0
        %2289 = vmatprep.subr.mxu0 0.0
        %2290 = vmatpush1.msra.mxu0 0.0
        %2291 = vmatprep.subr.mxu0 %v1009
        %2292 = vmatpush1.msra.mxu0 %v1008
        %2293 = vmatprep.subr.mxu0 %v977
        %2294 = vmatpush1.msra.mxu0 %v976
        %2295 = vmatprep.subr.mxu0 %v945
        %2296 = vmatpush1.msra.mxu0 %v944
        %2297 = vmatprep.subr.mxu0 %v913
        %2298 = vmatpush1.msra.mxu0 %v912
        %2299 = vmatprep.subr.mxu0 %v881
        %2300 = vmatpush1.msra.mxu0 %v880
        %2301 = vmatprep.subr.mxu0 %v849
        %2302 = vmatpush1.msra.mxu0 %v848
        %2303 = vmatprep.subr.mxu0 %v817
        %2304 = vmatpush1.msra.mxu0 %v816
        %2305 = vmatprep.subr.mxu0 %v785
        %2306 = vmatpush1.msra.mxu0 %v784
        %2307 = vmatprep.subr.mxu0 0.0
        %2308 = vmatpush2.msra.mxu0 0.0
        %2309 = vmatprep.subr.mxu0 0.0
        %2310 = vmatpush2.msra.mxu0 0.0
        %2311 = vmatprep.subr.mxu0 0.0
        %2312 = vmatpush2.msra.mxu0 0.0
        %2313 = vmatprep.subr.mxu0 0.0
        %2314 = vmatpush2.msra.mxu0 0.0
        %2315 = vmatprep.subr.mxu0 0.0
        %2316 = vmatpush2.msra.mxu0 0.0
        %2317 = vmatprep.subr.mxu0 0.0
        %2318 = vmatpush2.msra.mxu0 0.0
        %2319 = vmatprep.subr.mxu0 0.0
        %2320 = vmatpush2.msra.mxu0 0.0
        %2321 = vmatprep.subr.mxu0 0.0
        %2322 = vmatpush2.msra.mxu0 0.0
        %2323 = vmatprep.subr.mxu0 0.0
        %2324 = vmatpush2.msra.mxu0 0.0
        %2325 = vmatprep.subr.mxu0 0.0
        %2326 = vmatpush2.msra.mxu0 0.0
        %2327 = vmatprep.subr.mxu0 0.0
        %2328 = vmatpush2.msra.mxu0 0.0
        %2329 = vmatprep.subr.mxu0 0.0
        %2330 = vmatpush2.msra.mxu0 0.0
        %2331 = vmatprep.subr.mxu0 0.0
        %2332 = vmatpush2.msra.mxu0 0.0
        %2333 = vmatprep.subr.mxu0 0.0
        %2334 = vmatpush2.msra.mxu0 0.0
        %2335 = vmatprep.subr.mxu0 0.0
        %2336 = vmatpush2.msra.mxu0 0.0
        %2337 = vmatprep.subr.mxu0 0.0
        %2338 = vmatpush2.msra.mxu0 0.0
        %2339 = vmatprep.mubr.f32.mxu0 0.0
        %2340 = vmatmul.mubr.f32.gmra.mxu0 %v1018
        %v2341 = vpop.f32.mrf.mxu0
        %v2342 = vadd.f32 0.0, %v2341
        %v2343 = vpop.f32.mrf.mxu0
        %v2344 = vadd.f32 0.0, %v2343
        %2345 = vmatprep.mubr.f32.mxu0 0.0
        %2346 = vmatmul.mubr.f32.gmra.mxu0 %v1021
        %v2347 = vpop.f32.mrf.mxu0
        %v2348 = vadd.f32 0.0, %v2347
        %v2349 = vpop.f32.mrf.mxu0
        %v2350 = vadd.f32 0.0, %v2349
        %2351 = vmatprep.mubr.f32.mxu0 0.0
        %2352 = vmatmul.mubr.f32.gmra.mxu0 %v1024
        %v2353 = vpop.f32.mrf.mxu0
        %v2354 = vadd.f32 0.0, %v2353
        %v2355 = vpop.f32.mrf.mxu0
        %v2356 = vadd.f32 0.0, %v2355
        %2357 = vmatprep.mubr.f32.mxu0 0.0
        %2358 = vmatmul.mubr.f32.gmra.mxu0 %v1027
        %v2359 = vpop.f32.mrf.mxu0
        %v2360 = vadd.f32 0.0, %v2359
        %v2361 = vpop.f32.mrf.mxu0
        %v2362 = vadd.f32 0.0, %v2361
        %2363 = vdwg.mxu0
        %2364 = vmatprep.subr.mxu0 0.0
        %2365 = vmatpush1.msra.mxu0 0.0
        %2366 = vmatprep.subr.mxu0 0.0
        %2367 = vmatpush1.msra.mxu0 0.0
        %2368 = vmatprep.subr.mxu0 0.0
        %2369 = vmatpush1.msra.mxu0 0.0
        %2370 = vmatprep.subr.mxu0 0.0
        %2371 = vmatpush1.msra.mxu0 0.0
        %2372 = vmatprep.subr.mxu0 0.0
        %2373 = vmatpush1.msra.mxu0 0.0
        %2374 = vmatprep.subr.mxu0 0.0
        %2375 = vmatpush1.msra.mxu0 0.0
        %2376 = vmatprep.subr.mxu0 0.0
        %2377 = vmatpush1.msra.mxu0 0.0
        %2378 = vmatprep.subr.mxu0 0.0
        %2379 = vmatpush1.msra.mxu0 0.0
        %2380 = vmatprep.subr.mxu0 %v1011
        %2381 = vmatpush1.msra.mxu0 %v1010
        %2382 = vmatprep.subr.mxu0 %v979
        %2383 = vmatpush1.msra.mxu0 %v978
        %2384 = vmatprep.subr.mxu0 %v947
        %2385 = vmatpush1.msra.mxu0 %v946
        %2386 = vmatprep.subr.mxu0 %v915
        %2387 = vmatpush1.msra.mxu0 %v914
        %2388 = vmatprep.subr.mxu0 %v883
        %2389 = vmatpush1.msra.mxu0 %v882
        %2390 = vmatprep.subr.mxu0 %v851
        %2391 = vmatpush1.msra.mxu0 %v850
        %2392 = vmatprep.subr.mxu0 %v819
        %2393 = vmatpush1.msra.mxu0 %v818
        %2394 = vmatprep.subr.mxu0 %v787
        %2395 = vmatpush1.msra.mxu0 %v786
        %2396 = vmatprep.subr.mxu0 0.0
        %2397 = vmatpush2.msra.mxu0 0.0
        %2398 = vmatprep.subr.mxu0 0.0
        %2399 = vmatpush2.msra.mxu0 0.0
        %2400 = vmatprep.subr.mxu0 0.0
        %2401 = vmatpush2.msra.mxu0 0.0
        %2402 = vmatprep.subr.mxu0 0.0
        %2403 = vmatpush2.msra.mxu0 0.0
        %2404 = vmatprep.subr.mxu0 0.0
        %2405 = vmatpush2.msra.mxu0 0.0
        %2406 = vmatprep.subr.mxu0 0.0
        %2407 = vmatpush2.msra.mxu0 0.0
        %2408 = vmatprep.subr.mxu0 0.0
        %2409 = vmatpush2.msra.mxu0 0.0
        %2410 = vmatprep.subr.mxu0 0.0
        %2411 = vmatpush2.msra.mxu0 0.0
        %2412 = vmatprep.subr.mxu0 0.0
        %2413 = vmatpush2.msra.mxu0 0.0
        %2414 = vmatprep.subr.mxu0 0.0
        %2415 = vmatpush2.msra.mxu0 0.0
        %2416 = vmatprep.subr.mxu0 0.0
        %2417 = vmatpush2.msra.mxu0 0.0
        %2418 = vmatprep.subr.mxu0 0.0
        %2419 = vmatpush2.msra.mxu0 0.0
        %2420 = vmatprep.subr.mxu0 0.0
        %2421 = vmatpush2.msra.mxu0 0.0
        %2422 = vmatprep.subr.mxu0 0.0
        %2423 = vmatpush2.msra.mxu0 0.0
        %2424 = vmatprep.subr.mxu0 0.0
        %2425 = vmatpush2.msra.mxu0 0.0
        %2426 = vmatprep.subr.mxu0 0.0
        %2427 = vmatpush2.msra.mxu0 0.0
        %2428 = vmatprep.mubr.f32.mxu0 0.0
        %2429 = vmatmul.mubr.f32.gmra.mxu0 %v1018
        %v2430 = vpop.f32.mrf.mxu0
        %v2431 = vadd.f32 0.0, %v2430
        %v2432 = vpop.f32.mrf.mxu0
        %v2433 = vadd.f32 0.0, %v2432
        %2434 = vmatprep.mubr.f32.mxu0 0.0
        %2435 = vmatmul.mubr.f32.gmra.mxu0 %v1021
        %v2436 = vpop.f32.mrf.mxu0
        %v2437 = vadd.f32 0.0, %v2436
        %v2438 = vpop.f32.mrf.mxu0
        %v2439 = vadd.f32 0.0, %v2438
        %2440 = vmatprep.mubr.f32.mxu0 0.0
        %2441 = vmatmul.mubr.f32.gmra.mxu0 %v1024
        %v2442 = vpop.f32.mrf.mxu0
        %v2443 = vadd.f32 0.0, %v2442
        %v2444 = vpop.f32.mrf.mxu0
        %v2445 = vadd.f32 0.0, %v2444
        %2446 = vmatprep.mubr.f32.mxu0 0.0
        %2447 = vmatmul.mubr.f32.gmra.mxu0 %v1027
        %v2448 = vpop.f32.mrf.mxu0
        %v2449 = vadd.f32 0.0, %v2448
        %v2450 = vpop.f32.mrf.mxu0
        %v2451 = vadd.f32 0.0, %v2450
        %2452 = vdwg.mxu0
        %v2453 = vmul.f32 %v1096, %v1808
        %v2454 = vmul.f32 %v1098, %v1810
        %v2455 = vmul.f32 %v1185, %v1897
        %v2456 = vmul.f32 %v1187, %v1899
        %v2457 = vmul.f32 %v1274, %v1986
        %v2458 = vmul.f32 %v1276, %v1988
        %v2459 = vmul.f32 %v1363, %v2075
        %v2460 = vmul.f32 %v1365, %v2077
        %v2461 = vmul.f32 %v1452, %v2164
        %v2462 = vmul.f32 %v1454, %v2166
        %v2463 = vmul.f32 %v1541, %v2253
        %v2464 = vmul.f32 %v1543, %v2255
        %v2465 = vmul.f32 %v1630, %v2342
        %v2466 = vmul.f32 %v1632, %v2344
        %v2467 = vmul.f32 %v1719, %v2431
        %v2468 = vmul.f32 %v1721, %v2433
        %v2469 = vmul.f32 %v1102, %v1814
        %v2470 = vmul.f32 %v1104, %v1816
        %v2471 = vmul.f32 %v1191, %v1903
        %v2472 = vmul.f32 %v1193, %v1905
        %v2473 = vmul.f32 %v1280, %v1992
        %v2474 = vmul.f32 %v1282, %v1994
        %v2475 = vmul.f32 %v1369, %v2081
        %v2476 = vmul.f32 %v1371, %v2083
        %v2477 = vmul.f32 %v1458, %v2170
        %v2478 = vmul.f32 %v1460, %v2172
        %v2479 = vmul.f32 %v1547, %v2259
        %v2480 = vmul.f32 %v1549, %v2261
        %v2481 = vmul.f32 %v1636, %v2348
        %v2482 = vmul.f32 %v1638, %v2350
        %v2483 = vmul.f32 %v1725, %v2437
        %v2484 = vmul.f32 %v1727, %v2439
        %v2485 = vmul.f32 %v1108, %v1820
        %v2486 = vmul.f32 %v1110, %v1822
        %v2487 = vmul.f32 %v1197, %v1909
        %v2488 = vmul.f32 %v1199, %v1911
        %v2489 = vmul.f32 %v1286, %v1998
        %v2490 = vmul.f32 %v1288, %v2000
        %v2491 = vmul.f32 %v1375, %v2087
        %v2492 = vmul.f32 %v1377, %v2089
        %v2493 = vmul.f32 %v1464, %v2176
        %v2494 = vmul.f32 %v1466, %v2178
        %v2495 = vmul.f32 %v1553, %v2265
        %v2496 = vmul.f32 %v1555, %v2267
        %v2497 = vmul.f32 %v1642, %v2354
        %v2498 = vmul.f32 %v1644, %v2356
        %v2499 = vmul.f32 %v1731, %v2443
        %v2500 = vmul.f32 %v1733, %v2445
        %v2501 = vmul.f32 %v1114, %v1826
        %v2502 = vmul.f32 %v1116, %v1828
        %v2503 = vmul.f32 %v1203, %v1915
        %v2504 = vmul.f32 %v1205, %v1917
        %v2505 = vmul.f32 %v1292, %v2004
        %v2506 = vmul.f32 %v1294, %v2006
        %v2507 = vmul.f32 %v1381, %v2093
        %v2508 = vmul.f32 %v1383, %v2095
        %v2509 = vmul.f32 %v1470, %v2182
        %v2510 = vmul.f32 %v1472, %v2184
        %v2511 = vmul.f32 %v1559, %v2271
        %v2512 = vmul.f32 %v1561, %v2273
        %v2513 = vmul.f32 %v1648, %v2360
        %v2514 = vmul.f32 %v1650, %v2362
        %v2515 = vmul.f32 %v1737, %v2449
        %v2516 = vmul.f32 %v1739, %v2451
        %v2517 = vld [vmem:[%s2] sm:$0xf]
        %v2518 = vld [vmem:[%s3] sm:$0xf]
        %2520 = vset.pattern.permute.xlu0 0
        %2521 = vperm.xlu0 %2520, %v2518
        %v2522 = vpop.permute.xlu0 %2521
        %vm2524 = vcmask 261120
        %v2526 = vsel %vm2524, %v2517, 0
        %2528 = vmatprep.subr.mxu0 0.0
        %2529 = vmatpush1.msra.mxu0 0.0
        %2530 = vmatprep.subr.mxu0 0.0
        %2531 = vmatpush1.msra.mxu0 0.0
        %2532 = vmatprep.subr.mxu0 0.0
        %2533 = vmatpush1.msra.mxu0 0.0
        %2534 = vmatprep.subr.mxu0 0.0
        %2535 = vmatpush1.msra.mxu0 0.0
        %2536 = vmatprep.subr.mxu0 0.0
        %2537 = vmatpush1.msra.mxu0 0.0
        %2538 = vmatprep.subr.mxu0 0.0
        %2539 = vmatpush1.msra.mxu0 0.0
        %2540 = vmatprep.subr.mxu0 0.0
        %2541 = vmatpush1.msra.mxu0 0.0
        %2542 = vmatprep.subr.mxu0 0.0
        %2543 = vmatpush1.msra.mxu0 0.0
        %2544 = vmatprep.subr.mxu0 0.0
        %2545 = vmatpush1.msra.mxu0 0.0
        %2546 = vmatprep.subr.mxu0 0.0
        %2547 = vmatpush1.msra.mxu0 0.0
        %2548 = vmatprep.subr.mxu0 0.0
        %2549 = vmatpush1.msra.mxu0 0.0
        %2550 = vmatprep.subr.mxu0 0.0
        %2551 = vmatpush1.msra.mxu0 0.0
        %2552 = vmatprep.subr.mxu0 %v2502
        %2553 = vmatpush1.msra.mxu0 %v2501
        %2554 = vmatprep.subr.mxu0 %v2486
        %2555 = vmatpush1.msra.mxu0 %v2485
        %2556 = vmatprep.subr.mxu0 %v2470
        %2557 = vmatpush1.msra.mxu0 %v2469
        %2558 = vmatprep.subr.mxu0 %v2454
        %2559 = vmatpush1.msra.mxu0 %v2453
        %2560 = vmatprep.subr.mxu0 0.0
        %2561 = vmatpush2.msra.mxu0 0.0
        %2562 = vmatprep.subr.mxu0 0.0
        %2563 = vmatpush2.msra.mxu0 0.0
        %2564 = vmatprep.subr.mxu0 0.0
        %2565 = vmatpush2.msra.mxu0 0.0
        %2566 = vmatprep.subr.mxu0 0.0
        %2567 = vmatpush2.msra.mxu0 0.0
        %2568 = vmatprep.subr.mxu0 0.0
        %2569 = vmatpush2.msra.mxu0 0.0
        %2570 = vmatprep.subr.mxu0 0.0
        %2571 = vmatpush2.msra.mxu0 0.0
        %2572 = vmatprep.subr.mxu0 0.0
        %2573 = vmatpush2.msra.mxu0 0.0
        %2574 = vmatprep.subr.mxu0 0.0
        %2575 = vmatpush2.msra.mxu0 0.0
        %2576 = vmatprep.subr.mxu0 0.0
        %2577 = vmatpush2.msra.mxu0 0.0
        %2578 = vmatprep.subr.mxu0 0.0
        %2579 = vmatpush2.msra.mxu0 0.0
        %2580 = vmatprep.subr.mxu0 0.0
        %2581 = vmatpush2.msra.mxu0 0.0
        %2582 = vmatprep.subr.mxu0 0.0
        %2583 = vmatpush2.msra.mxu0 0.0
        %2584 = vmatprep.subr.mxu0 0.0
        %2585 = vmatpush2.msra.mxu0 0.0
        %2586 = vmatprep.subr.mxu0 0.0
        %2587 = vmatpush2.msra.mxu0 0.0
        %2588 = vmatprep.subr.mxu0 0.0
        %2589 = vmatpush2.msra.mxu0 0.0
        %2590 = vmatprep.subr.mxu0 0.0
        %2591 = vmatpush2.msra.mxu0 0.0
        %2592 = vmatprep.mubr.f32.mxu0 0.0
        %2593 = vmatmul.mubr.f32.gmra.mxu0 %v2526
        %v2594 = vpop.f32.mrf.mxu0
        %v2595 = vadd.f32 %v2522, %v2594
        %v2596 = vpop.f32.mrf.mxu0
        %v2597 = vadd.f32 %v2522, %v2596
        %2598 = vdwg.mxu0
        %2599 = vmatprep.subr.mxu0 0.0
        %2600 = vmatpush1.msra.mxu0 0.0
        %2601 = vmatprep.subr.mxu0 0.0
        %2602 = vmatpush1.msra.mxu0 0.0
        %2603 = vmatprep.subr.mxu0 0.0
        %2604 = vmatpush1.msra.mxu0 0.0
        %2605 = vmatprep.subr.mxu0 0.0
        %2606 = vmatpush1.msra.mxu0 0.0
        %2607 = vmatprep.subr.mxu0 0.0
        %2608 = vmatpush1.msra.mxu0 0.0
        %2609 = vmatprep.subr.mxu0 0.0
        %2610 = vmatpush1.msra.mxu0 0.0
        %2611 = vmatprep.subr.mxu0 0.0
        %2612 = vmatpush1.msra.mxu0 0.0
        %2613 = vmatprep.subr.mxu0 0.0
        %2614 = vmatpush1.msra.mxu0 0.0
        %2615 = vmatprep.subr.mxu0 0.0
        %2616 = vmatpush1.msra.mxu0 0.0
        %2617 = vmatprep.subr.mxu0 0.0
        %2618 = vmatpush1.msra.mxu0 0.0
        %2619 = vmatprep.subr.mxu0 0.0
        %2620 = vmatpush1.msra.mxu0 0.0
        %2621 = vmatprep.subr.mxu0 0.0
        %2622 = vmatpush1.msra.mxu0 0.0
        %2623 = vmatprep.subr.mxu0 %v2504
        %2624 = vmatpush1.msra.mxu0 %v2503
        %2625 = vmatprep.subr.mxu0 %v2488
        %2626 = vmatpush1.msra.mxu0 %v2487
        %2627 = vmatprep.subr.mxu0 %v2472
        %2628 = vmatpush1.msra.mxu0 %v2471
        %2629 = vmatprep.subr.mxu0 %v2456
        %2630 = vmatpush1.msra.mxu0 %v2455
        %2631 = vmatprep.subr.mxu0 0.0
        %2632 = vmatpush2.msra.mxu0 0.0
        %2633 = vmatprep.subr.mxu0 0.0
        %2634 = vmatpush2.msra.mxu0 0.0
        %2635 = vmatprep.subr.mxu0 0.0
        %2636 = vmatpush2.msra.mxu0 0.0
        %2637 = vmatprep.subr.mxu0 0.0
        %2638 = vmatpush2.msra.mxu0 0.0
        %2639 = vmatprep.subr.mxu0 0.0
        %2640 = vmatpush2.msra.mxu0 0.0
        %2641 = vmatprep.subr.mxu0 0.0
        %2642 = vmatpush2.msra.mxu0 0.0
        %2643 = vmatprep.subr.mxu0 0.0
        %2644 = vmatpush2.msra.mxu0 0.0
        %2645 = vmatprep.subr.mxu0 0.0
        %2646 = vmatpush2.msra.mxu0 0.0
        %2647 = vmatprep.subr.mxu0 0.0
        %2648 = vmatpush2.msra.mxu0 0.0
        %2649 = vmatprep.subr.mxu0 0.0
        %2650 = vmatpush2.msra.mxu0 0.0
        %2651 = vmatprep.subr.mxu0 0.0
        %2652 = vmatpush2.msra.mxu0 0.0
        %2653 = vmatprep.subr.mxu0 0.0
        %2654 = vmatpush2.msra.mxu0 0.0
        %2655 = vmatprep.subr.mxu0 0.0
        %2656 = vmatpush2.msra.mxu0 0.0
        %2657 = vmatprep.subr.mxu0 0.0
        %2658 = vmatpush2.msra.mxu0 0.0
        %2659 = vmatprep.subr.mxu0 0.0
        %2660 = vmatpush2.msra.mxu0 0.0
        %2661 = vmatprep.subr.mxu0 0.0
        %2662 = vmatpush2.msra.mxu0 0.0
        %2663 = vmatprep.mubr.f32.mxu0 0.0
        %2664 = vmatmul.mubr.f32.gmra.mxu0 %v2526
        %v2665 = vpop.f32.mrf.mxu0
        %v2666 = vadd.f32 %v2522, %v2665
        %v2667 = vpop.f32.mrf.mxu0
        %v2668 = vadd.f32 %v2522, %v2667
        %2669 = vdwg.mxu0
        %2670 = vmatprep.subr.mxu0 0.0
        %2671 = vmatpush1.msra.mxu0 0.0
        %2672 = vmatprep.subr.mxu0 0.0
        %2673 = vmatpush1.msra.mxu0 0.0
        %2674 = vmatprep.subr.mxu0 0.0
        %2675 = vmatpush1.msra.mxu0 0.0
        %2676 = vmatprep.subr.mxu0 0.0
        %2677 = vmatpush1.msra.mxu0 0.0
        %2678 = vmatprep.subr.mxu0 0.0
        %2679 = vmatpush1.msra.mxu0 0.0
        %2680 = vmatprep.subr.mxu0 0.0
        %2681 = vmatpush1.msra.mxu0 0.0
        %2682 = vmatprep.subr.mxu0 0.0
        %2683 = vmatpush1.msra.mxu0 0.0
        %2684 = vmatprep.subr.mxu0 0.0
        %2685 = vmatpush1.msra.mxu0 0.0
        %2686 = vmatprep.subr.mxu0 0.0
        %2687 = vmatpush1.msra.mxu0 0.0
        %2688 = vmatprep.subr.mxu0 0.0
        %2689 = vmatpush1.msra.mxu0 0.0
        %2690 = vmatprep.subr.mxu0 0.0
        %2691 = vmatpush1.msra.mxu0 0.0
        %2692 = vmatprep.subr.mxu0 0.0
        %2693 = vmatpush1.msra.mxu0 0.0
        %2694 = vmatprep.subr.mxu0 %v2506
        %2695 = vmatpush1.msra.mxu0 %v2505
        %2696 = vmatprep.subr.mxu0 %v2490
        %2697 = vmatpush1.msra.mxu0 %v2489
        %2698 = vmatprep.subr.mxu0 %v2474
        %2699 = vmatpush1.msra.mxu0 %v2473
        %2700 = vmatprep.subr.mxu0 %v2458
        %2701 = vmatpush1.msra.mxu0 %v2457
        %2702 = vmatprep.subr.mxu0 0.0
        %2703 = vmatpush2.msra.mxu0 0.0
        %2704 = vmatprep.subr.mxu0 0.0
        %2705 = vmatpush2.msra.mxu0 0.0
        %2706 = vmatprep.subr.mxu0 0.0
        %2707 = vmatpush2.msra.mxu0 0.0
        %2708 = vmatprep.subr.mxu0 0.0
        %2709 = vmatpush2.msra.mxu0 0.0
        %2710 = vmatprep.subr.mxu0 0.0
        %2711 = vmatpush2.msra.mxu0 0.0
        %2712 = vmatprep.subr.mxu0 0.0
        %2713 = vmatpush2.msra.mxu0 0.0
        %2714 = vmatprep.subr.mxu0 0.0
        %2715 = vmatpush2.msra.mxu0 0.0
        %2716 = vmatprep.subr.mxu0 0.0
        %2717 = vmatpush2.msra.mxu0 0.0
        %2718 = vmatprep.subr.mxu0 0.0
        %2719 = vmatpush2.msra.mxu0 0.0
        %2720 = vmatprep.subr.mxu0 0.0
        %2721 = vmatpush2.msra.mxu0 0.0
        %2722 = vmatprep.subr.mxu0 0.0
        %2723 = vmatpush2.msra.mxu0 0.0
        %2724 = vmatprep.subr.mxu0 0.0
        %2725 = vmatpush2.msra.mxu0 0.0
        %2726 = vmatprep.subr.mxu0 0.0
        %2727 = vmatpush2.msra.mxu0 0.0
        %2728 = vmatprep.subr.mxu0 0.0
        %2729 = vmatpush2.msra.mxu0 0.0
        %2730 = vmatprep.subr.mxu0 0.0
        %2731 = vmatpush2.msra.mxu0 0.0
        %2732 = vmatprep.subr.mxu0 0.0
        %2733 = vmatpush2.msra.mxu0 0.0
        %2734 = vmatprep.mubr.f32.mxu0 0.0
        %2735 = vmatmul.mubr.f32.gmra.mxu0 %v2526
        %v2736 = vpop.f32.mrf.mxu0
        %v2737 = vadd.f32 %v2522, %v2736
        %v2738 = vpop.f32.mrf.mxu0
        %v2739 = vadd.f32 %v2522, %v2738
        %2740 = vdwg.mxu0
        %2741 = vmatprep.subr.mxu0 0.0
        %2742 = vmatpush1.msra.mxu0 0.0
        %2743 = vmatprep.subr.mxu0 0.0
        %2744 = vmatpush1.msra.mxu0 0.0
        %2745 = vmatprep.subr.mxu0 0.0
        %2746 = vmatpush1.msra.mxu0 0.0
        %2747 = vmatprep.subr.mxu0 0.0
        %2748 = vmatpush1.msra.mxu0 0.0
        %2749 = vmatprep.subr.mxu0 0.0
        %2750 = vmatpush1.msra.mxu0 0.0
        %2751 = vmatprep.subr.mxu0 0.0
        %2752 = vmatpush1.msra.mxu0 0.0
        %2753 = vmatprep.subr.mxu0 0.0
        %2754 = vmatpush1.msra.mxu0 0.0
        %2755 = vmatprep.subr.mxu0 0.0
        %2756 = vmatpush1.msra.mxu0 0.0
        %2757 = vmatprep.subr.mxu0 0.0
        %2758 = vmatpush1.msra.mxu0 0.0
        %2759 = vmatprep.subr.mxu0 0.0
        %2760 = vmatpush1.msra.mxu0 0.0
        %2761 = vmatprep.subr.mxu0 0.0
        %2762 = vmatpush1.msra.mxu0 0.0
        %2763 = vmatprep.subr.mxu0 0.0
        %2764 = vmatpush1.msra.mxu0 0.0
        %2765 = vmatprep.subr.mxu0 %v2508
        %2766 = vmatpush1.msra.mxu0 %v2507
        %2767 = vmatprep.subr.mxu0 %v2492
        %2768 = vmatpush1.msra.mxu0 %v2491
        %2769 = vmatprep.subr.mxu0 %v2476
        %2770 = vmatpush1.msra.mxu0 %v2475
        %2771 = vmatprep.subr.mxu0 %v2460
        %2772 = vmatpush1.msra.mxu0 %v2459
        %2773 = vmatprep.subr.mxu0 0.0
        %2774 = vmatpush2.msra.mxu0 0.0
        %2775 = vmatprep.subr.mxu0 0.0
        %2776 = vmatpush2.msra.mxu0 0.0
        %2777 = vmatprep.subr.mxu0 0.0
        %2778 = vmatpush2.msra.mxu0 0.0
        %2779 = vmatprep.subr.mxu0 0.0
        %2780 = vmatpush2.msra.mxu0 0.0
        %2781 = vmatprep.subr.mxu0 0.0
        %2782 = vmatpush2.msra.mxu0 0.0
        %2783 = vmatprep.subr.mxu0 0.0
        %2784 = vmatpush2.msra.mxu0 0.0
        %2785 = vmatprep.subr.mxu0 0.0
        %2786 = vmatpush2.msra.mxu0 0.0
        %2787 = vmatprep.subr.mxu0 0.0
        %2788 = vmatpush2.msra.mxu0 0.0
        %2789 = vmatprep.subr.mxu0 0.0
        %2790 = vmatpush2.msra.mxu0 0.0
        %2791 = vmatprep.subr.mxu0 0.0
        %2792 = vmatpush2.msra.mxu0 0.0
        %2793 = vmatprep.subr.mxu0 0.0
        %2794 = vmatpush2.msra.mxu0 0.0
        %2795 = vmatprep.subr.mxu0 0.0
        %2796 = vmatpush2.msra.mxu0 0.0
        %2797 = vmatprep.subr.mxu0 0.0
        %2798 = vmatpush2.msra.mxu0 0.0
        %2799 = vmatprep.subr.mxu0 0.0
        %2800 = vmatpush2.msra.mxu0 0.0
        %2801 = vmatprep.subr.mxu0 0.0
        %2802 = vmatpush2.msra.mxu0 0.0
        %2803 = vmatprep.subr.mxu0 0.0
        %2804 = vmatpush2.msra.mxu0 0.0
        %2805 = vmatprep.mubr.f32.mxu0 0.0
        %2806 = vmatmul.mubr.f32.gmra.mxu0 %v2526
        %v2807 = vpop.f32.mrf.mxu0
        %v2808 = vadd.f32 %v2522, %v2807
        %v2809 = vpop.f32.mrf.mxu0
        %v2810 = vadd.f32 %v2522, %v2809
        %2811 = vdwg.mxu0
        %2812 = vmatprep.subr.mxu0 0.0
        %2813 = vmatpush1.msra.mxu0 0.0
        %2814 = vmatprep.subr.mxu0 0.0
        %2815 = vmatpush1.msra.mxu0 0.0
        %2816 = vmatprep.subr.mxu0 0.0
        %2817 = vmatpush1.msra.mxu0 0.0
        %2818 = vmatprep.subr.mxu0 0.0
        %2819 = vmatpush1.msra.mxu0 0.0
        %2820 = vmatprep.subr.mxu0 0.0
        %2821 = vmatpush1.msra.mxu0 0.0
        %2822 = vmatprep.subr.mxu0 0.0
        %2823 = vmatpush1.msra.mxu0 0.0
        %2824 = vmatprep.subr.mxu0 0.0
        %2825 = vmatpush1.msra.mxu0 0.0
        %2826 = vmatprep.subr.mxu0 0.0
        %2827 = vmatpush1.msra.mxu0 0.0
        %2828 = vmatprep.subr.mxu0 0.0
        %2829 = vmatpush1.msra.mxu0 0.0
        %2830 = vmatprep.subr.mxu0 0.0
        %2831 = vmatpush1.msra.mxu0 0.0
        %2832 = vmatprep.subr.mxu0 0.0
        %2833 = vmatpush1.msra.mxu0 0.0
        %2834 = vmatprep.subr.mxu0 0.0
        %2835 = vmatpush1.msra.mxu0 0.0
        %2836 = vmatprep.subr.mxu0 %v2510
        %2837 = vmatpush1.msra.mxu0 %v2509
        %2838 = vmatprep.subr.mxu0 %v2494
        %2839 = vmatpush1.msra.mxu0 %v2493
        %2840 = vmatprep.subr.mxu0 %v2478
        %2841 = vmatpush1.msra.mxu0 %v2477
        %2842 = vmatprep.subr.mxu0 %v2462
        %2843 = vmatpush1.msra.mxu0 %v2461
        %2844 = vmatprep.subr.mxu0 0.0
        %2845 = vmatpush2.msra.mxu0 0.0
        %2846 = vmatprep.subr.mxu0 0.0
        %2847 = vmatpush2.msra.mxu0 0.0
        %2848 = vmatprep.subr.mxu0 0.0
        %2849 = vmatpush2.msra.mxu0 0.0
        %2850 = vmatprep.subr.mxu0 0.0
        %2851 = vmatpush2.msra.mxu0 0.0
        %2852 = vmatprep.subr.mxu0 0.0
        %2853 = vmatpush2.msra.mxu0 0.0
        %2854 = vmatprep.subr.mxu0 0.0
        %2855 = vmatpush2.msra.mxu0 0.0
        %2856 = vmatprep.subr.mxu0 0.0
        %2857 = vmatpush2.msra.mxu0 0.0
        %2858 = vmatprep.subr.mxu0 0.0
        %2859 = vmatpush2.msra.mxu0 0.0
        %2860 = vmatprep.subr.mxu0 0.0
        %2861 = vmatpush2.msra.mxu0 0.0
        %2862 = vmatprep.subr.mxu0 0.0
        %2863 = vmatpush2.msra.mxu0 0.0
        %2864 = vmatprep.subr.mxu0 0.0
        %2865 = vmatpush2.msra.mxu0 0.0
        %2866 = vmatprep.subr.mxu0 0.0
        %2867 = vmatpush2.msra.mxu0 0.0
        %2868 = vmatprep.subr.mxu0 0.0
        %2869 = vmatpush2.msra.mxu0 0.0
        %2870 = vmatprep.subr.mxu0 0.0
        %2871 = vmatpush2.msra.mxu0 0.0
        %2872 = vmatprep.subr.mxu0 0.0
        %2873 = vmatpush2.msra.mxu0 0.0
        %2874 = vmatprep.subr.mxu0 0.0
        %2875 = vmatpush2.msra.mxu0 0.0
        %2876 = vmatprep.mubr.f32.mxu0 0.0
        %2877 = vmatmul.mubr.f32.gmra.mxu0 %v2526
        %v2878 = vpop.f32.mrf.mxu0
        %v2879 = vadd.f32 %v2522, %v2878
        %v2880 = vpop.f32.mrf.mxu0
        %v2881 = vadd.f32 %v2522, %v2880
        %2882 = vdwg.mxu0
        %2883 = vmatprep.subr.mxu0 0.0
        %2884 = vmatpush1.msra.mxu0 0.0
        %2885 = vmatprep.subr.mxu0 0.0
        %2886 = vmatpush1.msra.mxu0 0.0
        %2887 = vmatprep.subr.mxu0 0.0
        %2888 = vmatpush1.msra.mxu0 0.0
        %2889 = vmatprep.subr.mxu0 0.0
        %2890 = vmatpush1.msra.mxu0 0.0
        %2891 = vmatprep.subr.mxu0 0.0
        %2892 = vmatpush1.msra.mxu0 0.0
        %2893 = vmatprep.subr.mxu0 0.0
        %2894 = vmatpush1.msra.mxu0 0.0
        %2895 = vmatprep.subr.mxu0 0.0
        %2896 = vmatpush1.msra.mxu0 0.0
        %2897 = vmatprep.subr.mxu0 0.0
        %2898 = vmatpush1.msra.mxu0 0.0
        %2899 = vmatprep.subr.mxu0 0.0
        %2900 = vmatpush1.msra.mxu0 0.0
        %2901 = vmatprep.subr.mxu0 0.0
        %2902 = vmatpush1.msra.mxu0 0.0
        %2903 = vmatprep.subr.mxu0 0.0
        %2904 = vmatpush1.msra.mxu0 0.0
        %2905 = vmatprep.subr.mxu0 0.0
        %2906 = vmatpush1.msra.mxu0 0.0
        %2907 = vmatprep.subr.mxu0 %v2512
        %2908 = vmatpush1.msra.mxu0 %v2511
        %2909 = vmatprep.subr.mxu0 %v2496
        %2910 = vmatpush1.msra.mxu0 %v2495
        %2911 = vmatprep.subr.mxu0 %v2480
        %2912 = vmatpush1.msra.mxu0 %v2479
        %2913 = vmatprep.subr.mxu0 %v2464
        %2914 = vmatpush1.msra.mxu0 %v2463
        %2915 = vmatprep.subr.mxu0 0.0
        %2916 = vmatpush2.msra.mxu0 0.0
        %2917 = vmatprep.subr.mxu0 0.0
        %2918 = vmatpush2.msra.mxu0 0.0
        %2919 = vmatprep.subr.mxu0 0.0
        %2920 = vmatpush2.msra.mxu0 0.0
        %2921 = vmatprep.subr.mxu0 0.0
        %2922 = vmatpush2.msra.mxu0 0.0
        %2923 = vmatprep.subr.mxu0 0.0
        %2924 = vmatpush2.msra.mxu0 0.0
        %2925 = vmatprep.subr.mxu0 0.0
        %2926 = vmatpush2.msra.mxu0 0.0
        %2927 = vmatprep.subr.mxu0 0.0
        %2928 = vmatpush2.msra.mxu0 0.0
        %2929 = vmatprep.subr.mxu0 0.0
        %2930 = vmatpush2.msra.mxu0 0.0
        %2931 = vmatprep.subr.mxu0 0.0
        %2932 = vmatpush2.msra.mxu0 0.0
        %2933 = vmatprep.subr.mxu0 0.0
        %2934 = vmatpush2.msra.mxu0 0.0
        %2935 = vmatprep.subr.mxu0 0.0
        %2936 = vmatpush2.msra.mxu0 0.0
        %2937 = vmatprep.subr.mxu0 0.0
        %2938 = vmatpush2.msra.mxu0 0.0
        %2939 = vmatprep.subr.mxu0 0.0
        %2940 = vmatpush2.msra.mxu0 0.0
        %2941 = vmatprep.subr.mxu0 0.0
        %2942 = vmatpush2.msra.mxu0 0.0
        %2943 = vmatprep.subr.mxu0 0.0
        %2944 = vmatpush2.msra.mxu0 0.0
        %2945 = vmatprep.subr.mxu0 0.0
        %2946 = vmatpush2.msra.mxu0 0.0
        %2947 = vmatprep.mubr.f32.mxu0 0.0
        %2948 = vmatmul.mubr.f32.gmra.mxu0 %v2526
        %v2949 = vpop.f32.mrf.mxu0
        %v2950 = vadd.f32 %v2522, %v2949
        %v2951 = vpop.f32.mrf.mxu0
        %v2952 = vadd.f32 %v2522, %v2951
        %2953 = vdwg.mxu0
        %2954 = vmatprep.subr.mxu0 0.0
        %2955 = vmatpush1.msra.mxu0 0.0
        %2956 = vmatprep.subr.mxu0 0.0
        %2957 = vmatpush1.msra.mxu0 0.0
        %2958 = vmatprep.subr.mxu0 0.0
        %2959 = vmatpush1.msra.mxu0 0.0
        %2960 = vmatprep.subr.mxu0 0.0
        %2961 = vmatpush1.msra.mxu0 0.0
        %2962 = vmatprep.subr.mxu0 0.0
        %2963 = vmatpush1.msra.mxu0 0.0
        %2964 = vmatprep.subr.mxu0 0.0
        %2965 = vmatpush1.msra.mxu0 0.0
        %2966 = vmatprep.subr.mxu0 0.0
        %2967 = vmatpush1.msra.mxu0 0.0
        %2968 = vmatprep.subr.mxu0 0.0
        %2969 = vmatpush1.msra.mxu0 0.0
        %2970 = vmatprep.subr.mxu0 0.0
        %2971 = vmatpush1.msra.mxu0 0.0
        %2972 = vmatprep.subr.mxu0 0.0
        %2973 = vmatpush1.msra.mxu0 0.0
        %2974 = vmatprep.subr.mxu0 0.0
        %2975 = vmatpush1.msra.mxu0 0.0
        %2976 = vmatprep.subr.mxu0 0.0
        %2977 = vmatpush1.msra.mxu0 0.0
        %2978 = vmatprep.subr.mxu0 %v2514
        %2979 = vmatpush1.msra.mxu0 %v2513
        %2980 = vmatprep.subr.mxu0 %v2498
        %2981 = vmatpush1.msra.mxu0 %v2497
        %2982 = vmatprep.subr.mxu0 %v2482
        %2983 = vmatpush1.msra.mxu0 %v2481
        %2984 = vmatprep.subr.mxu0 %v2466
        %2985 = vmatpush1.msra.mxu0 %v2465
        %2986 = vmatprep.subr.mxu0 0.0
        %2987 = vmatpush2.msra.mxu0 0.0
        %2988 = vmatprep.subr.mxu0 0.0
        %2989 = vmatpush2.msra.mxu0 0.0
        %2990 = vmatprep.subr.mxu0 0.0
        %2991 = vmatpush2.msra.mxu0 0.0
        %2992 = vmatprep.subr.mxu0 0.0
        %2993 = vmatpush2.msra.mxu0 0.0
        %2994 = vmatprep.subr.mxu0 0.0
        %2995 = vmatpush2.msra.mxu0 0.0
        %2996 = vmatprep.subr.mxu0 0.0
        %2997 = vmatpush2.msra.mxu0 0.0
        %2998 = vmatprep.subr.mxu0 0.0
        %2999 = vmatpush2.msra.mxu0 0.0
        %3000 = vmatprep.subr.mxu0 0.0
        %3001 = vmatpush2.msra.mxu0 0.0
        %3002 = vmatprep.subr.mxu0 0.0
        %3003 = vmatpush2.msra.mxu0 0.0
        %3004 = vmatprep.subr.mxu0 0.0
        %3005 = vmatpush2.msra.mxu0 0.0
        %3006 = vmatprep.subr.mxu0 0.0
        %3007 = vmatpush2.msra.mxu0 0.0
        %3008 = vmatprep.subr.mxu0 0.0
        %3009 = vmatpush2.msra.mxu0 0.0
        %3010 = vmatprep.subr.mxu0 0.0
        %3011 = vmatpush2.msra.mxu0 0.0
        %3012 = vmatprep.subr.mxu0 0.0
        %3013 = vmatpush2.msra.mxu0 0.0
        %3014 = vmatprep.subr.mxu0 0.0
        %3015 = vmatpush2.msra.mxu0 0.0
        %3016 = vmatprep.subr.mxu0 0.0
        %3017 = vmatpush2.msra.mxu0 0.0
        %3018 = vmatprep.mubr.f32.mxu0 0.0
        %3019 = vmatmul.mubr.f32.gmra.mxu0 %v2526
        %v3020 = vpop.f32.mrf.mxu0
        %v3021 = vadd.f32 %v2522, %v3020
        %v3022 = vpop.f32.mrf.mxu0
        %v3023 = vadd.f32 %v2522, %v3022
        %3024 = vdwg.mxu0
        %3025 = vmatprep.subr.mxu0 0.0
        %3026 = vmatpush1.msra.mxu0 0.0
        %3027 = vmatprep.subr.mxu0 0.0
        %3028 = vmatpush1.msra.mxu0 0.0
        %3029 = vmatprep.subr.mxu0 0.0
        %3030 = vmatpush1.msra.mxu0 0.0
        %3031 = vmatprep.subr.mxu0 0.0
        %3032 = vmatpush1.msra.mxu0 0.0
        %3033 = vmatprep.subr.mxu0 0.0
        %3034 = vmatpush1.msra.mxu0 0.0
        %3035 = vmatprep.subr.mxu0 0.0
        %3036 = vmatpush1.msra.mxu0 0.0
        %3037 = vmatprep.subr.mxu0 0.0
        %3038 = vmatpush1.msra.mxu0 0.0
        %3039 = vmatprep.subr.mxu0 0.0
        %3040 = vmatpush1.msra.mxu0 0.0
        %3041 = vmatprep.subr.mxu0 0.0
        %3042 = vmatpush1.msra.mxu0 0.0
        %3043 = vmatprep.subr.mxu0 0.0
        %3044 = vmatpush1.msra.mxu0 0.0
        %3045 = vmatprep.subr.mxu0 0.0
        %3046 = vmatpush1.msra.mxu0 0.0
        %3047 = vmatprep.subr.mxu0 0.0
        %3048 = vmatpush1.msra.mxu0 0.0
        %3049 = vmatprep.subr.mxu0 %v2516
        %3050 = vmatpush1.msra.mxu0 %v2515
        %3051 = vmatprep.subr.mxu0 %v2500
        %3052 = vmatpush1.msra.mxu0 %v2499
        %3053 = vmatprep.subr.mxu0 %v2484
        %3054 = vmatpush1.msra.mxu0 %v2483
        %3055 = vmatprep.subr.mxu0 %v2468
        %3056 = vmatpush1.msra.mxu0 %v2467
        %3057 = vmatprep.subr.mxu0 0.0
        %3058 = vmatpush2.msra.mxu0 0.0
        %3059 = vmatprep.subr.mxu0 0.0
        %3060 = vmatpush2.msra.mxu0 0.0
        %3061 = vmatprep.subr.mxu0 0.0
        %3062 = vmatpush2.msra.mxu0 0.0
        %3063 = vmatprep.subr.mxu0 0.0
        %3064 = vmatpush2.msra.mxu0 0.0
        %3065 = vmatprep.subr.mxu0 0.0
        %3066 = vmatpush2.msra.mxu0 0.0
        %3067 = vmatprep.subr.mxu0 0.0
        %3068 = vmatpush2.msra.mxu0 0.0
        %3069 = vmatprep.subr.mxu0 0.0
        %3070 = vmatpush2.msra.mxu0 0.0
        %3071 = vmatprep.subr.mxu0 0.0
        %3072 = vmatpush2.msra.mxu0 0.0
        %3073 = vmatprep.subr.mxu0 0.0
        %3074 = vmatpush2.msra.mxu0 0.0
        %3075 = vmatprep.subr.mxu0 0.0
        %3076 = vmatpush2.msra.mxu0 0.0
        %3077 = vmatprep.subr.mxu0 0.0
        %3078 = vmatpush2.msra.mxu0 0.0
        %3079 = vmatprep.subr.mxu0 0.0
        %3080 = vmatpush2.msra.mxu0 0.0
        %3081 = vmatprep.subr.mxu0 0.0
        %3082 = vmatpush2.msra.mxu0 0.0
        %3083 = vmatprep.subr.mxu0 0.0
        %3084 = vmatpush2.msra.mxu0 0.0
        %3085 = vmatprep.subr.mxu0 0.0
        %3086 = vmatpush2.msra.mxu0 0.0
        %3087 = vmatprep.subr.mxu0 0.0
        %3088 = vmatpush2.msra.mxu0 0.0
        %3089 = vmatprep.mubr.f32.mxu0 0.0
        %3090 = vmatmul.mubr.f32.gmra.mxu0 %v2526
        %v3091 = vpop.f32.mrf.mxu0
        %v3092 = vadd.f32 %v2522, %v3091
        %v3093 = vpop.f32.mrf.mxu0
        %v3094 = vadd.f32 %v2522, %v3093
        %3095 = vdwg.mxu0
        %vm3096 = vcmask 1043456
        %v3097 = vsel %vm3096, %v2595, -inf
        %v3098 = vrot.slane %v3097, 4
        %v3099 = vmax.f32 %v3097, %v3098
        %v3100 = vrot.slane %v3099, 2
        %v3101 = vmax.f32 %v3099, %v3100
        %v3102 = vrot.slane %v3101, 1
        %v3103 = vmax.f32 %v3101, %v3102
        %v3104 = vsel %vm3096, %v2597, -inf
        %v3105 = vrot.slane %v3104, 4
        %v3106 = vmax.f32 %v3104, %v3105
        %v3107 = vrot.slane %v3106, 2
        %v3108 = vmax.f32 %v3106, %v3107
        %v3109 = vrot.slane %v3108, 1
        %v3110 = vmax.f32 %v3108, %v3109
        %v3111 = vsel %vm3096, %v2666, -inf
        %v3112 = vrot.slane %v3111, 4
        %v3113 = vmax.f32 %v3111, %v3112
        %v3114 = vrot.slane %v3113, 2
        %v3115 = vmax.f32 %v3113, %v3114
        %v3116 = vrot.slane %v3115, 1
        %v3117 = vmax.f32 %v3115, %v3116
        %v3118 = vsel %vm3096, %v2668, -inf
        %v3119 = vrot.slane %v3118, 4
        %v3120 = vmax.f32 %v3118, %v3119
        %v3121 = vrot.slane %v3120, 2
        %v3122 = vmax.f32 %v3120, %v3121
        %v3123 = vrot.slane %v3122, 1
        %v3124 = vmax.f32 %v3122, %v3123
        %v3125 = vsel %vm3096, %v2737, -inf
        %v3126 = vrot.slane %v3125, 4
        %v3127 = vmax.f32 %v3125, %v3126
        %v3128 = vrot.slane %v3127, 2
        %v3129 = vmax.f32 %v3127, %v3128
        %v3130 = vrot.slane %v3129, 1
        %v3131 = vmax.f32 %v3129, %v3130
        %v3132 = vsel %vm3096, %v2739, -inf
        %v3133 = vrot.slane %v3132, 4
        %v3134 = vmax.f32 %v3132, %v3133
        %v3135 = vrot.slane %v3134, 2
        %v3136 = vmax.f32 %v3134, %v3135
        %v3137 = vrot.slane %v3136, 1
        %v3138 = vmax.f32 %v3136, %v3137
        %v3139 = vsel %vm3096, %v2808, -inf
        %v3140 = vrot.slane %v3139, 4
        %v3141 = vmax.f32 %v3139, %v3140
        %v3142 = vrot.slane %v3141, 2
        %v3143 = vmax.f32 %v3141, %v3142
        %v3144 = vrot.slane %v3143, 1
        %v3145 = vmax.f32 %v3143, %v3144
        %v3146 = vsel %vm3096, %v2810, -inf
        %v3147 = vrot.slane %v3146, 4
        %v3148 = vmax.f32 %v3146, %v3147
        %v3149 = vrot.slane %v3148, 2
        %v3150 = vmax.f32 %v3148, %v3149
        %v3151 = vrot.slane %v3150, 1
        %v3152 = vmax.f32 %v3150, %v3151
        %v3153 = vsel %vm3096, %v2879, -inf
        %v3154 = vrot.slane %v3153, 4
        %v3155 = vmax.f32 %v3153, %v3154
        %v3156 = vrot.slane %v3155, 2
        %v3157 = vmax.f32 %v3155, %v3156
        %v3158 = vrot.slane %v3157, 1
        %v3159 = vmax.f32 %v3157, %v3158
        %v3160 = vsel %vm3096, %v2881, -inf
        %v3161 = vrot.slane %v3160, 4
        %v3162 = vmax.f32 %v3160, %v3161
        %v3163 = vrot.slane %v3162, 2
        %v3164 = vmax.f32 %v3162, %v3163
        %v3165 = vrot.slane %v3164, 1
        %v3166 = vmax.f32 %v3164, %v3165
        %v3167 = vsel %vm3096, %v2950, -inf
        %v3168 = vrot.slane %v3167, 4
        %v3169 = vmax.f32 %v3167, %v3168
        %v3170 = vrot.slane %v3169, 2
        %v3171 = vmax.f32 %v3169, %v3170
        %v3172 = vrot.slane %v3171, 1
        %v3173 = vmax.f32 %v3171, %v3172
        %v3174 = vsel %vm3096, %v2952, -inf
        %v3175 = vrot.slane %v3174, 4
        %v3176 = vmax.f32 %v3174, %v3175
        %v3177 = vrot.slane %v3176, 2
        %v3178 = vmax.f32 %v3176, %v3177
        %v3179 = vrot.slane %v3178, 1
        %v3180 = vmax.f32 %v3178, %v3179
        %v3181 = vsel %vm3096, %v3021, -inf
        %v3182 = vrot.slane %v3181, 4
        %v3183 = vmax.f32 %v3181, %v3182
        %v3184 = vrot.slane %v3183, 2
        %v3185 = vmax.f32 %v3183, %v3184
        %v3186 = vrot.slane %v3185, 1
        %v3187 = vmax.f32 %v3185, %v3186
        %v3188 = vsel %vm3096, %v3023, -inf
        %v3189 = vrot.slane %v3188, 4
        %v3190 = vmax.f32 %v3188, %v3189
        %v3191 = vrot.slane %v3190, 2
        %v3192 = vmax.f32 %v3190, %v3191
        %v3193 = vrot.slane %v3192, 1
        %v3194 = vmax.f32 %v3192, %v3193
        %v3195 = vsel %vm3096, %v3092, -inf
        %v3196 = vrot.slane %v3195, 4
        %v3197 = vmax.f32 %v3195, %v3196
        %v3198 = vrot.slane %v3197, 2
        %v3199 = vmax.f32 %v3197, %v3198
        %v3200 = vrot.slane %v3199, 1
        %v3201 = vmax.f32 %v3199, %v3200
        %v3202 = vsel %vm3096, %v3094, -inf
        %v3203 = vrot.slane %v3202, 4
        %v3204 = vmax.f32 %v3202, %v3203
        %v3205 = vrot.slane %v3204, 2
        %v3206 = vmax.f32 %v3204, %v3205
        %v3207 = vrot.slane %v3206, 1
        %v3208 = vmax.f32 %v3206, %v3207
        %v3209 = vsub.f32 %v2595, %v3103
        %v3210 = vsub.f32 %v2597, %v3110
        %v3211 = vsub.f32 %v2666, %v3117
        %v3212 = vsub.f32 %v2668, %v3124
        %v3213 = vsub.f32 %v2737, %v3131
        %v3214 = vsub.f32 %v2739, %v3138
        %v3215 = vsub.f32 %v2808, %v3145
        %v3216 = vsub.f32 %v2810, %v3152
        %v3217 = vsub.f32 %v2879, %v3159
        %v3218 = vsub.f32 %v2881, %v3166
        %v3219 = vsub.f32 %v2950, %v3173
        %v3220 = vsub.f32 %v2952, %v3180
        %v3221 = vsub.f32 %v3021, %v3187
        %v3222 = vsub.f32 %v3023, %v3194
        %v3223 = vsub.f32 %v3092, %v3201
        %v3224 = vsub.f32 %v3094, %v3208
        %v3225 = vmul.f32 %v3209, 1.442695
        %v3226 = vpow.pop %v3225
        %v3227 = vmul.f32 %v3210, 1.442695
        %v3228 = vpow.pop %v3227
        %v3229 = vmul.f32 %v3211, 1.442695
        %v3230 = vpow.pop %v3229
        %v3231 = vmul.f32 %v3212, 1.442695
        %v3232 = vpow.pop %v3231
        %v3233 = vmul.f32 %v3213, 1.442695
        %v3234 = vpow.pop %v3233
        %v3235 = vmul.f32 %v3214, 1.442695
        %v3236 = vpow.pop %v3235
        %v3237 = vmul.f32 %v3215, 1.442695
        %v3238 = vpow.pop %v3237
        %v3239 = vmul.f32 %v3216, 1.442695
        %v3240 = vpow.pop %v3239
        %v3241 = vmul.f32 %v3217, 1.442695
        %v3242 = vpow.pop %v3241
        %v3243 = vmul.f32 %v3218, 1.442695
        %v3244 = vpow.pop %v3243
        %v3245 = vmul.f32 %v3219, 1.442695
        %v3246 = vpow.pop %v3245
        %v3247 = vmul.f32 %v3220, 1.442695
        %v3248 = vpow.pop %v3247
        %v3249 = vmul.f32 %v3221, 1.442695
        %v3250 = vpow.pop %v3249
        %v3251 = vmul.f32 %v3222, 1.442695
        %v3252 = vpow.pop %v3251
        %v3253 = vmul.f32 %v3223, 1.442695
        %v3254 = vpow.pop %v3253
        %v3255 = vmul.f32 %v3224, 1.442695
        %v3256 = vpow.pop %v3255
        %v3257 = vsel %vm3096, %v3226, 0.0
        %v3258 = vrot.slane %v3257, 4
        %v3259 = vadd.f32 %v3257, %v3258
        %v3260 = vrot.slane %v3259, 2
        %v3261 = vadd.f32 %v3259, %v3260
        %v3262 = vrot.slane %v3261, 1
        %v3263 = vadd.f32 %v3261, %v3262
        %v3264 = vsel %vm3096, %v3228, 0.0
        %v3265 = vrot.slane %v3264, 4
        %v3266 = vadd.f32 %v3264, %v3265
        %v3267 = vrot.slane %v3266, 2
        %v3268 = vadd.f32 %v3266, %v3267
        %v3269 = vrot.slane %v3268, 1
        %v3270 = vadd.f32 %v3268, %v3269
        %v3271 = vsel %vm3096, %v3230, 0.0
        %v3272 = vrot.slane %v3271, 4
        %v3273 = vadd.f32 %v3271, %v3272
        %v3274 = vrot.slane %v3273, 2
        %v3275 = vadd.f32 %v3273, %v3274
        %v3276 = vrot.slane %v3275, 1
        %v3277 = vadd.f32 %v3275, %v3276
        %v3278 = vsel %vm3096, %v3232, 0.0
        %v3279 = vrot.slane %v3278, 4
        %v3280 = vadd.f32 %v3278, %v3279
        %v3281 = vrot.slane %v3280, 2
        %v3282 = vadd.f32 %v3280, %v3281
        %v3283 = vrot.slane %v3282, 1
        %v3284 = vadd.f32 %v3282, %v3283
        %v3285 = vsel %vm3096, %v3234, 0.0
        %v3286 = vrot.slane %v3285, 4
        %v3287 = vadd.f32 %v3285, %v3286
        %v3288 = vrot.slane %v3287, 2
        %v3289 = vadd.f32 %v3287, %v3288
        %v3290 = vrot.slane %v3289, 1
        %v3291 = vadd.f32 %v3289, %v3290
        %v3292 = vsel %vm3096, %v3236, 0.0
        %v3293 = vrot.slane %v3292, 4
        %v3294 = vadd.f32 %v3292, %v3293
        %v3295 = vrot.slane %v3294, 2
        %v3296 = vadd.f32 %v3294, %v3295
        %v3297 = vrot.slane %v3296, 1
        %v3298 = vadd.f32 %v3296, %v3297
        %v3299 = vsel %vm3096, %v3238, 0.0
        %v3300 = vrot.slane %v3299, 4
        %v3301 = vadd.f32 %v3299, %v3300
        %v3302 = vrot.slane %v3301, 2
        %v3303 = vadd.f32 %v3301, %v3302
        %v3304 = vrot.slane %v3303, 1
        %v3305 = vadd.f32 %v3303, %v3304
        %v3306 = vsel %vm3096, %v3240, 0.0
        %v3307 = vrot.slane %v3306, 4
        %v3308 = vadd.f32 %v3306, %v3307
        %v3309 = vrot.slane %v3308, 2
        %v3310 = vadd.f32 %v3308, %v3309
        %v3311 = vrot.slane %v3310, 1
        %v3312 = vadd.f32 %v3310, %v3311
        %v3313 = vsel %vm3096, %v3242, 0.0
        %v3314 = vrot.slane %v3313, 4
        %v3315 = vadd.f32 %v3313, %v3314
        %v3316 = vrot.slane %v3315, 2
        %v3317 = vadd.f32 %v3315, %v3316
        %v3318 = vrot.slane %v3317, 1
        %v3319 = vadd.f32 %v3317, %v3318
        %v3320 = vsel %vm3096, %v3244, 0.0
        %v3321 = vrot.slane %v3320, 4
        %v3322 = vadd.f32 %v3320, %v3321
        %v3323 = vrot.slane %v3322, 2
        %v3324 = vadd.f32 %v3322, %v3323
        %v3325 = vrot.slane %v3324, 1
        %v3326 = vadd.f32 %v3324, %v3325
        %v3327 = vsel %vm3096, %v3246, 0.0
        %v3328 = vrot.slane %v3327, 4
        %v3329 = vadd.f32 %v3327, %v3328
        %v3330 = vrot.slane %v3329, 2
        %v3331 = vadd.f32 %v3329, %v3330
        %v3332 = vrot.slane %v3331, 1
        %v3333 = vadd.f32 %v3331, %v3332
        %v3334 = vsel %vm3096, %v3248, 0.0
        %v3335 = vrot.slane %v3334, 4
        %v3336 = vadd.f32 %v3334, %v3335
        %v3337 = vrot.slane %v3336, 2
        %v3338 = vadd.f32 %v3336, %v3337
        %v3339 = vrot.slane %v3338, 1
        %v3340 = vadd.f32 %v3338, %v3339
        %v3341 = vsel %vm3096, %v3250, 0.0
        %v3342 = vrot.slane %v3341, 4
        %v3343 = vadd.f32 %v3341, %v3342
        %v3344 = vrot.slane %v3343, 2
        %v3345 = vadd.f32 %v3343, %v3344
        %v3346 = vrot.slane %v3345, 1
        %v3347 = vadd.f32 %v3345, %v3346
        %v3348 = vsel %vm3096, %v3252, 0.0
        %v3349 = vrot.slane %v3348, 4
        %v3350 = vadd.f32 %v3348, %v3349
        %v3351 = vrot.slane %v3350, 2
        %v3352 = vadd.f32 %v3350, %v3351
        %v3353 = vrot.slane %v3352, 1
        %v3354 = vadd.f32 %v3352, %v3353
        %v3355 = vsel %vm3096, %v3254, 0.0
        %v3356 = vrot.slane %v3355, 4
        %v3357 = vadd.f32 %v3355, %v3356
        %v3358 = vrot.slane %v3357, 2
        %v3359 = vadd.f32 %v3357, %v3358
        %v3360 = vrot.slane %v3359, 1
        %v3361 = vadd.f32 %v3359, %v3360
        %v3362 = vsel %vm3096, %v3256, 0.0
        %v3363 = vrot.slane %v3362, 4
        %v3364 = vadd.f32 %v3362, %v3363
        %v3365 = vrot.slane %v3364, 2
        %v3366 = vadd.f32 %v3364, %v3365
        %v3367 = vrot.slane %v3366, 1
        %v3368 = vadd.f32 %v3366, %v3367
        %v3369 = vrcp.pop %v3263
        %v3370 = vmul.f32 %v3226, %v3369
        %v3371 = vrcp.pop %v3270
        %v3372 = vmul.f32 %v3228, %v3371
        %v3373 = vrcp.pop %v3277
        %v3374 = vmul.f32 %v3230, %v3373
        %v3375 = vrcp.pop %v3284
        %v3376 = vmul.f32 %v3232, %v3375
        %v3377 = vrcp.pop %v3291
        %v3378 = vmul.f32 %v3234, %v3377
        %v3379 = vrcp.pop %v3298
        %v3380 = vmul.f32 %v3236, %v3379
        %v3381 = vrcp.pop %v3305
        %v3382 = vmul.f32 %v3238, %v3381
        %v3383 = vrcp.pop %v3312
        %v3384 = vmul.f32 %v3240, %v3383
        %v3385 = vrcp.pop %v3319
        %v3386 = vmul.f32 %v3242, %v3385
        %v3387 = vrcp.pop %v3326
        %v3388 = vmul.f32 %v3244, %v3387
        %v3389 = vrcp.pop %v3333
        %v3390 = vmul.f32 %v3246, %v3389
        %v3391 = vrcp.pop %v3340
        %v3392 = vmul.f32 %v3248, %v3391
        %v3393 = vrcp.pop %v3347
        %v3394 = vmul.f32 %v3250, %v3393
        %v3395 = vrcp.pop %v3354
        %v3396 = vmul.f32 %v3252, %v3395
        %v3397 = vrcp.pop %v3361
        %v3398 = vmul.f32 %v3254, %v3397
        %v3399 = vrcp.pop %v3368
        %v3400 = vmul.f32 %v3256, %v3399
        %v3417 = vcombine.low %v3370, %v3372
        %v3418 = vcombine.low %v3374, %v3376
        %v3419 = vcombine.low %v3378, %v3380
        %v3420 = vcombine.low %v3382, %v3384
        %v3421 = vcombine.low %v3386, %v3388
        %v3422 = vcombine.low %v3390, %v3392
        %v3423 = vcombine.low %v3394, %v3396
        %v3424 = vcombine.low %v3398, %v3400
        %3433 = vst [vmem:[%s228] sm:$0xff] %v3417
        %3434 = vst [vmem:[%s228 + $0x8] sm:$0xff] %v3418
        %3435 = vst [vmem:[%s228 + $0x10] sm:$0xff] %v3419
        %3436 = vst [vmem:[%s228 + $0x18] sm:$0xff] %v3420
        %3437 = vst [vmem:[%s228 + $0x20] sm:$0xff] %v3421
        %3438 = vst [vmem:[%s228 + $0x28] sm:$0xff] %v3422
        %3439 = vst [vmem:[%s228 + $0x30] sm:$0xff] %v3423
        %3440 = vst [vmem:[%s228 + $0x38] sm:$0xff] %v3424
        %s3441 = sand.u32 %s119, 1
        %s3442 = scalar_lea.sflag [#allocation4], %s3441
        %s3443 = sand.u32 %s119, 1
        %s3444 = smul.addr %s3443, 64
        %s3445 = scalar_lea.vmem [#allocation7], %s3444
        // Predicated region
        $region45: #{tpu_custom_call.1} parent=35 // pred_check
          %p3446 = pneg %p129
        $region46: #{tpu_custom_call.1} parent=35 // pred_check_branch
          %3448 = sbr.rel (%p3446) target = $region48
        $region47: #{tpu_custom_call.1} parent=35 // pred_region
          %s3449 = smul.u32 16, %s22
          %s3451 = ssub.s32 1024, 1024
          %3452 = vsyncadd %s3442, %s3451
          %s3453 = smul.addr %s3449, 64
          %s3454 = scalar_lea.hbm %s4, %s3453
          %s3456 = sshll.u32 %s3445, 4
          %s3457 = int_to_ptr.vmem [resolvable:$true] %s3456
          %3459 = dma.vmem_to_hbm [thread:$0]  %s3457, 1024, %s3454, %s3442
        $region48: #{tpu_custom_call.1} parent=35 // pred_fallthru
          _
      $region36: #{tpu_custom_call.1} parent=5 // pred_fallthru
        _
      %p3460 = scmp.le.s32.totalorder 2, %s17
      // Predicated region
      $region49: #{tpu_custom_call.1} parent=5 // pred_check
        %p3461 = pneg %p3460
      $region50: #{tpu_custom_call.1} parent=5 // pred_check_branch
        %3463 = sbr.rel (%p3461) target = $region52
      $region51: #{tpu_custom_call.1} parent=5 // pred_region
        %s3464 = ssub.s32 %s17, 2
        // Predicated region
        $region53: #{tpu_custom_call.1} parent=51 // pred_check
          %p3465 = pneg %p135
        $region54: #{tpu_custom_call.1} parent=51 // pred_check_branch
          %3467 = sbr.rel (%p3465) target = $region56
        $region55: #{tpu_custom_call.1} parent=51 // pred_region
          %s3468 = sand.u32 %s120, 1
          %s3469 = scalar_lea.sflag [#allocation4], %s3468
          %s3470 = sand.u32 %s120, 1
          %s3471 = smul.addr %s3470, 64
          %s3472 = scalar_lea.vmem [#allocation7], %s3471
          %3473 = dma.done %s3469, 1024
        $region56: #{tpu_custom_call.1} parent=51 // pred_fallthru
          _
      $region52: #{tpu_custom_call.1} parent=5 // pred_fallthru
        _
    $region6: #{tpu_custom_call.1} parent=1 // loop_footer
      %s21 = sadd.s32 1, %s17
    $region7: #{tpu_custom_call.1} parent=1 // loop_footer_branch
      %16 = sbr.rel target = $region3
    $region8: #{tpu_custom_call.1} parent=1 // loop_exit
      _
    %3474 = vsyncpa [#allocation3], 1
    %s3475 = scalar_lea.sflag [#allocation3], 1
    %3476 = vsyncpa %s3475, 1
    %3477 = vsyncpa [#allocation6], 1
    %3478 = vsyncpa [#allocation4], 1
    %s3479 = scalar_lea.sflag [#allocation4], 1
    %3480 = vsyncpa %s3479, 1

</llo_original>
